<compile_context>
chip_gen: v7x
topology: tpu7x:2x2x1
jax: 0.10.0
libtpu: 0.0.40
codegen_flags: <defaults>
</compile_context>

<pallas_src>
import math

import jax
import jax.numpy as jnp
from jax.experimental import pallas as pl
from jax.experimental.pallas import tpu as pltpu


# ----------------------------- Pallas kernel --------------------------------
def diffusion_prior_kernel(
    x_ref, tproj_ref, c_ref,
    wt1_ref, bt1_ref, wt2_ref, bt2_ref,          # TimestepEmbedding (Linear/SiLU/Linear)
    wc_ref, bc_ref,                              # cond_embedding
    win_ref, bin_ref, gin_ref, betain_ref,       # input_layer (Linear, LayerNorm)
    wh_ref, bh_ref, gh_ref, betah_ref,           # stacked hidden layers
    wout_ref, bout_ref,                          # output_layer
    out_ref,
):
    f32 = jnp.float32
    eps = 1e-5  # torch.nn.LayerNorm default

    def linear(x, w, b):
        # bf16 x bf16 on the MXU, f32 accumulation; bias add in f32.
        return jnp.dot(x.astype(w.dtype), w, preferred_element_type=f32) + b

    def silu(v):
        return v * jax.nn.sigmoid(v)

    def layernorm(v, gamma, beta):
        # single-pass variance: mean(x^2) - mu^2; rsqrt lands on the EUP slot.
        mu = jnp.mean(v, axis=-1, keepdims=True)
        var = jnp.mean(v * v, axis=-1, keepdims=True) - mu * mu
        return (v - mu) * jax.lax.rsqrt(var + eps) * gamma + beta

    # Time embedding MLP: Linear -> SiLU -> Linear
    t = silu(linear(tproj_ref[...], wt1_ref[...], bt1_ref[...]))
    t = linear(t, wt2_ref[...], bt2_ref[...])

    # Condition embedding
    c = linear(c_ref[...], wc_ref[...], bc_ref[...])

    # Loop-invariant residual addend (hoisted out of the hidden-layer loop).
    tc = t + c

    # Input layer: Linear -> LayerNorm -> SiLU
    x = silu(layernorm(linear(x_ref[...], win_ref[...], bin_ref[...]),
                       gin_ref[...], betain_ref[...]))

    # Hidden residual blocks (statically unrolled; Dropout(p=0.0) is a no-op)
    num_layers = wh_ref.shape[0]
    for l in range(num_layers):
        x = x + tc
        h = silu(layernorm(linear(x, wh_ref[l], bh_ref[l]),
                           gh_ref[l], betah_ref[l]))
        x = x + h

    # Output projection
    out_ref[...] = linear(x, wout_ref[...], bout_ref[...]).astype(out_ref.dtype)


# ------------------------------- wrapper -------------------------------------
def timestep_proj(t, dim):
    """diffusers.Timesteps(dim, flip_sin_to_cos=True, downscale_freq_shift=0)."""
    half = dim // 2
    exponent = -math.log(10000.0) * jnp.arange(half, dtype=jnp.float32) / half
    freqs = jnp.exp(exponent)
    args = t.astype(jnp.float32)[:, None] * freqs[None, :]
    # flip_sin_to_cos=True -> [cos, sin]
    return jnp.concatenate([jnp.cos(args), jnp.sin(args)], axis=-1)


def make_params(key, embed_dim, cond_dim, hidden_dim, time_embed_dim, n_layers):
    """Deterministic synthetic parameters (torch-style uniform(-1/sqrt(fan_in), ...))."""
    def lin(k, fan_in, fan_out):
        k1, k2 = jax.random.split(k)
        bound = 1.0 / math.sqrt(fan_in)
        w = jax.random.uniform(k1, (fan_in, fan_out), jnp.float32, -bound, bound)
        b = jax.random.uniform(k2, (1, fan_out), jnp.float32, -bound, bound)
        return w, b

    keys = jax.random.split(key, 8 + n_layers)
    p = {}
    p["wt1"], p["bt1"] = lin(keys[0], time_embed_dim, hidden_dim)
    p["wt2"], p["bt2"] = lin(keys[1], hidden_dim, hidden_dim)
    p["wc"], p["bc"] = lin(keys[2], cond_dim, hidden_dim)
    p["win"], p["bin"] = lin(keys[3], embed_dim, hidden_dim)
    p["gin"] = jnp.ones((1, hidden_dim), jnp.float32)
    p["betain"] = jnp.zeros((1, hidden_dim), jnp.float32)
    whs, bhs = [], []
    for l in range(n_layers):
        w, b = lin(keys[4 + l], hidden_dim, hidden_dim)
        whs.append(w)
        bhs.append(b)
    p["wh"] = jnp.stack(whs)                                   # (L, H, H)
    p["bh"] = jnp.stack(bhs)                                   # (L, 1, H)
    p["gh"] = jnp.ones((n_layers, 1, hidden_dim), jnp.float32)
    p["betah"] = jnp.zeros((n_layers, 1, hidden_dim), jnp.float32)
    p["wout"], p["bout"] = lin(keys[4 + n_layers], hidden_dim, embed_dim)
    return p


def _pad_contraction(act, w, multiple=128):
    """Zero-pad a [B, K] activation and its [K, N] weight so K % 128 == 0."""
    k = act.shape[-1]
    kp = ((k + multiple - 1) // multiple) * multiple
    if kp == k:
        return act, w
    act = jnp.pad(act, ((0, 0), (0, kp - k)))
    w = jnp.pad(w, ((0, kp - k), (0, 0)))
    return act, w


def diffusion_prior_forward(x, t, c, params, time_embed_dim, *, block_m=128):
    B, embed_dim = x.shape
    hidden_dim = params["win"].shape[1]
    n_layers = params["wh"].shape[0]

    # Sinusoidal projection is cheap glue -> plain JAX.
    tproj = timestep_proj(t, time_embed_dim)                   # [B, T_embed]

    # Lane-pad the small contraction dims (cond_dim, time_embed_dim) to 128.
    tproj, wt1 = _pad_contraction(tproj, params["wt1"])
    c_pad, wc = _pad_contraction(c, params["wc"])

    bf16 = jnp.bfloat16
    # bf16 weight matrices (native MXU rate); biases / LN params stay f32.
    weight_args = dict(
        wt1=wt1.astype(bf16), bt1=params["bt1"],
        wt2=params["wt2"].astype(bf16), bt2=params["bt2"],
        wc=wc.astype(bf16), bc=params["bc"],
        win=params["win"].astype(bf16), bin=params["bin"],
        gin=params["gin"], betain=params["betain"],
        wh=params["wh"].astype(bf16), bh=params["bh"],
        gh=params["gh"], betah=params["betah"],
        wout=params["wout"].astype(bf16), bout=params["bout"],
    )
    order = ["wt1", "bt1", "wt2", "bt2", "wc", "bc", "win", "bin", "gin",
             "betain", "wh", "bh", "gh", "betah", "wout", "bout"]

    # Batch tiling.
    bm = min(block_m, B)
    assert B % bm == 0, (B, bm)
    grid = (B // bm,)

    def batch_spec(arr):
        return pl.BlockSpec((bm, arr.shape[1]), lambda i: (i, 0))

    def const_spec(arr):
        # Constant index_map -> weights are fetched once and stay VMEM-resident
        # across all grid steps.
        nd = arr.ndim
        return pl.BlockSpec(arr.shape, lambda i, _nd=nd: (0,) * _nd)

    args = [x, tproj, c_pad] + [weight_args[k] for k in order]
    in_specs = [batch_spec(x), batch_spec(tproj), batch_spec(c_pad)]
    in_specs += [const_spec(weight_args[k]) for k in order]
    out_specs = pl.BlockSpec((bm, embed_dim), lambda i: (i, 0))

    # Advisory cost estimate (per-forward totals).
    tk, ck = tproj.shape[1], c_pad.shape[1]
    flops = 2 * B * (tk * hidden_dim + hidden_dim * hidden_dim
                     + ck * hidden_dim + embed_dim * hidden_dim
                     + n_layers * hidden_dim * hidden_dim
                     + hidden_dim * embed_dim)
    transcendentals = B * hidden_dim * (2 + n_layers)          # SiLU sigmoids
    bytes_accessed = int(sum(a.nbytes for a in args) + B * embed_dim * x.dtype.itemsize)

    # NOTE: at large hidden_dim (e.g. H>=2048) the stacked wh no longer fits
    # v7x's 64 MiB VMEM; stream it from HBM (memory_space=pl.ANY + per-layer
    # DMA or a layer grid axis) and raise vmem_limit_bytes explicitly.
    out = pl.pallas_call(
        diffusion_prior_kernel,
        out_shape=jax.ShapeDtypeStruct((B, embed_dim), x.dtype),
        grid=grid,
        in_specs=in_specs,
        out_specs=out_specs,
        compiler_params=pltpu.CompilerParams(
            dimension_semantics=("parallel",)),
        cost_estimate=pl.CostEstimate(
            flops=int(flops),
            transcendentals=int(transcendentals),
            bytes_accessed=bytes_accessed),
    )(*args)
    return out


# ----------------------------- pure-JAX reference ----------------------------
def reference_forward(x, t, c, p, time_embed_dim):
    eps = 1e-5

    def silu(v):
        return v * jax.nn.sigmoid(v)

    def ln(v, g, b):
        mu = jnp.mean(v, axis=-1, keepdims=True)
        var = jnp.mean((v - mu) ** 2, axis=-1, keepdims=True)
        return (v - mu) / jnp.sqrt(var + eps) * g + b

    tp = timestep_proj(t, time_embed_dim)
    te = silu(tp @ p["wt1"] + p["bt1"]) @ p["wt2"] + p["bt2"]
    ce = c @ p["wc"] + p["bc"]
    h = silu(ln(x @ p["win"] + p["bin"], p["gin"], p["betain"]))
    for l in range(p["wh"].shape[0]):
        h = h + te + ce
        h = silu(ln(h @ p["wh"][l] + p["bh"][l], p["gh"][l], p["betah"][l])) + h
    return h @ p["wout"] + p["bout"]


# ---------------------------------- main --------------------------------------
if __name__ == "__main__":
    # Small shapes consistent with the module's forward (scaled down from the
    # 1024/42/1024/512 defaults).  B=256 so the batch grid has >1 step.
    B, EMBED, COND, HIDDEN, T_EMBED, LAYERS = 256, 128, 16, 128, 64, 4

    key = jax.random.PRNGKey(0)
    kx, kt, kc, kp = jax.random.split(key, 4)

    x = jax.random.normal(kx, (B, EMBED), jnp.float32)
    t = jax.random.randint(kt, (B,), 0, 1000).astype(jnp.float32)
    c = jax.random.normal(kc, (B, COND), jnp.float32)
    params = make_params(kp, EMBED, COND, HIDDEN, T_EMBED, LAYERS)

    out = diffusion_prior_forward(x, t, c, params, T_EMBED, block_m=128)
    out = jax.block_until_ready(out)

    ref = reference_forward(x, t, c, params, T_EMBED)
    assert out.shape == (B, EMBED), out.shape
    # Tolerance widened for bf16 weights (f32 reference, f32 accumulation).
    assert jnp.allclose(out, ref, atol=5e-2, rtol=5e-2), (
        float(jnp.max(jnp.abs(out - ref))))

    print("KERNEL_OK")
</pallas_src>

<mosaic_0001>
module attributes {stable_mosaic.version = 11 : i64} {
  func.func @diffusion_prior_kernel(%arg0: i32, %arg1: memref<128x128xf32, #tpu.memory_space<vmem>>, %arg2: memref<128x128xf32, #tpu.memory_space<vmem>>, %arg3: memref<128x128xf32, #tpu.memory_space<vmem>>, %arg4: memref<128x128xbf16, #tpu.memory_space<vmem>>, %arg5: memref<1x128xf32, #tpu.memory_space<vmem>>, %arg6: memref<128x128xbf16, #tpu.memory_space<vmem>>, %arg7: memref<1x128xf32, #tpu.memory_space<vmem>>, %arg8: memref<128x128xbf16, #tpu.memory_space<vmem>>, %arg9: memref<1x128xf32, #tpu.memory_space<vmem>>, %arg10: memref<128x128xbf16, #tpu.memory_space<vmem>>, %arg11: memref<1x128xf32, #tpu.memory_space<vmem>>, %arg12: memref<1x128xf32, #tpu.memory_space<vmem>>, %arg13: memref<1x128xf32, #tpu.memory_space<vmem>>, %arg14: memref<4x128x128xbf16, #tpu.memory_space<vmem>>, %arg15: memref<4x1x128xf32, #tpu.memory_space<vmem>>, %arg16: memref<4x1x128xf32, #tpu.memory_space<vmem>>, %arg17: memref<4x1x128xf32, #tpu.memory_space<vmem>>, %arg18: memref<128x128xbf16, #tpu.memory_space<vmem>>, %arg19: memref<1x128xf32, #tpu.memory_space<vmem>>, %arg20: memref<128x128xf32, #tpu.memory_space<vmem>>) attributes {dimension_semantics = [#tpu.dimension_semantics<parallel>], iteration_bounds = array<i64: 2>, scalar_prefetch = 0 : i64, scratch_operands = 0 : i64, tpu.core_type = #tpu.core_type<tc>, window_params = [{transform_indices = @transform_0, window_bounds = array<i64: 128, 128>}, {transform_indices = @transform_1, window_bounds = array<i64: 128, 128>}, {transform_indices = @transform_2, window_bounds = array<i64: 128, 128>}, {pipeline_mode = #tpu.pipeline_mode<synchronous>, transform_indices = @transform_3, window_bounds = array<i64: 128, 128>}, {pipeline_mode = #tpu.pipeline_mode<synchronous>, transform_indices = @transform_4, window_bounds = array<i64: 1, 128>}, {pipeline_mode = #tpu.pipeline_mode<synchronous>, transform_indices = @transform_5, window_bounds = array<i64: 128, 128>}, {pipeline_mode = #tpu.pipeline_mode<synchronous>, transform_indices = @transform_6, window_bounds = array<i64: 1, 128>}, {pipeline_mode = #tpu.pipeline_mode<synchronous>, transform_indices = @transform_7, window_bounds = array<i64: 128, 128>}, {pipeline_mode = #tpu.pipeline_mode<synchronous>, transform_indices = @transform_8, window_bounds = array<i64: 1, 128>}, {pipeline_mode = #tpu.pipeline_mode<synchronous>, transform_indices = @transform_9, window_bounds = array<i64: 128, 128>}, {pipeline_mode = #tpu.pipeline_mode<synchronous>, transform_indices = @transform_10, window_bounds = array<i64: 1, 128>}, {pipeline_mode = #tpu.pipeline_mode<synchronous>, transform_indices = @transform_11, window_bounds = array<i64: 1, 128>}, {pipeline_mode = #tpu.pipeline_mode<synchronous>, transform_indices = @transform_12, window_bounds = array<i64: 1, 128>}, {pipeline_mode = #tpu.pipeline_mode<synchronous>, transform_indices = @transform_13, window_bounds = array<i64: 4, 128, 128>}, {pipeline_mode = #tpu.pipeline_mode<synchronous>, transform_indices = @transform_14, window_bounds = array<i64: 4, 1, 128>}, {pipeline_mode = #tpu.pipeline_mode<synchronous>, transform_indices = @transform_15, window_bounds = array<i64: 4, 1, 128>}, {pipeline_mode = #tpu.pipeline_mode<synchronous>, transform_indices = @transform_16, window_bounds = array<i64: 4, 1, 128>}, {pipeline_mode = #tpu.pipeline_mode<synchronous>, transform_indices = @transform_17, window_bounds = array<i64: 128, 128>}, {pipeline_mode = #tpu.pipeline_mode<synchronous>, transform_indices = @transform_18, window_bounds = array<i64: 1, 128>}, {transform_indices = @transform_19, window_bounds = array<i64: 128, 128>}]} {
    %c0 = arith.constant 0 : index
    %c0_0 = arith.constant 0 : index
    %0 = vector.load %arg2[%c0, %c0_0] : memref<128x128xf32, #tpu.memory_space<vmem>>, vector<128x128xf32>
    %c0_1 = arith.constant 0 : index
    %c0_2 = arith.constant 0 : index
    %1 = vector.load %arg4[%c0_1, %c0_2] : memref<128x128xbf16, #tpu.memory_space<vmem>>, vector<128x128xbf16>
    %c0_3 = arith.constant 0 : index
    %c0_4 = arith.constant 0 : index
    %2 = vector.load %arg5[%c0_3, %c0_4] : memref<1x128xf32, #tpu.memory_space<vmem>>, vector<1x128xf32>
    %3 = arith.truncf %0 : vector<128x128xf32> to vector<128x128xbf16>
    %cst = arith.constant dense<0.000000e+00> : vector<128x128xf32>
    %4 = tpu.matmul %3, %1, %cst {dimension_numbers = #tpu.dot_dimension_numbers<[1], [0], [0], [1], [0, 0, 1, 1], [], []>} : vector<128x128xbf16>, vector<128x128xbf16>, vector<128x128xf32> -> vector<128x128xf32>
    %5 = vector.broadcast %2 : vector<1x128xf32> to vector<128x128xf32>
    %6 = arith.addf %4, %5 : vector<128x128xf32>
    %7 = arith.negf %6 : vector<128x128xf32>
    %8 = math.exp %7 : vector<128x128xf32>
    %cst_5 = arith.constant 1.000000e+00 : f32
    %9 = vector.broadcast %cst_5 : f32 to vector<128x128xf32>
    %10 = arith.addf %9, %8 : vector<128x128xf32>
    %11 = arith.divf %9, %10 : vector<128x128xf32>
    %12 = arith.mulf %6, %11 : vector<128x128xf32>
    %c0_6 = arith.constant 0 : index
    %c0_7 = arith.constant 0 : index
    %13 = vector.load %arg6[%c0_6, %c0_7] : memref<128x128xbf16, #tpu.memory_space<vmem>>, vector<128x128xbf16>
    %c0_8 = arith.constant 0 : index
    %c0_9 = arith.constant 0 : index
    %14 = vector.load %arg7[%c0_8, %c0_9] : memref<1x128xf32, #tpu.memory_space<vmem>>, vector<1x128xf32>
    %15 = arith.truncf %12 : vector<128x128xf32> to vector<128x128xbf16>
    %cst_10 = arith.constant dense<0.000000e+00> : vector<128x128xf32>
    %16 = tpu.matmul %15, %13, %cst_10 {dimension_numbers = #tpu.dot_dimension_numbers<[1], [0], [0], [1], [0, 0, 1, 1], [], []>} : vector<128x128xbf16>, vector<128x128xbf16>, vector<128x128xf32> -> vector<128x128xf32>
    %17 = vector.broadcast %14 : vector<1x128xf32> to vector<128x128xf32>
    %18 = arith.addf %16, %17 : vector<128x128xf32>
    %c0_11 = arith.constant 0 : index
    %c0_12 = arith.constant 0 : index
    %19 = vector.load %arg3[%c0_11, %c0_12] : memref<128x128xf32, #tpu.memory_space<vmem>>, vector<128x128xf32>
    %c0_13 = arith.constant 0 : index
    %c0_14 = arith.constant 0 : index
    %20 = vector.load %arg8[%c0_13, %c0_14] : memref<128x128xbf16, #tpu.memory_space<vmem>>, vector<128x128xbf16>
    %c0_15 = arith.constant 0 : index
    %c0_16 = arith.constant 0 : index
    %21 = vector.load %arg9[%c0_15, %c0_16] : memref<1x128xf32, #tpu.memory_space<vmem>>, vector<1x128xf32>
    %22 = arith.truncf %19 : vector<128x128xf32> to vector<128x128xbf16>
    %cst_17 = arith.constant dense<0.000000e+00> : vector<128x128xf32>
    %23 = tpu.matmul %22, %20, %cst_17 {dimension_numbers = #tpu.dot_dimension_numbers<[1], [0], [0], [1], [0, 0, 1, 1], [], []>} : vector<128x128xbf16>, vector<128x128xbf16>, vector<128x128xf32> -> vector<128x128xf32>
    %24 = vector.broadcast %21 : vector<1x128xf32> to vector<128x128xf32>
    %25 = arith.addf %23, %24 : vector<128x128xf32>
    %26 = arith.addf %18, %25 : vector<128x128xf32>
    %c0_18 = arith.constant 0 : index
    %c0_19 = arith.constant 0 : index
    %27 = vector.load %arg1[%c0_18, %c0_19] : memref<128x128xf32, #tpu.memory_space<vmem>>, vector<128x128xf32>
    %c0_20 = arith.constant 0 : index
    %c0_21 = arith.constant 0 : index
    %28 = vector.load %arg10[%c0_20, %c0_21] : memref<128x128xbf16, #tpu.memory_space<vmem>>, vector<128x128xbf16>
    %c0_22 = arith.constant 0 : index
    %c0_23 = arith.constant 0 : index
    %29 = vector.load %arg11[%c0_22, %c0_23] : memref<1x128xf32, #tpu.memory_space<vmem>>, vector<1x128xf32>
    %30 = arith.truncf %27 : vector<128x128xf32> to vector<128x128xbf16>
    %cst_24 = arith.constant dense<0.000000e+00> : vector<128x128xf32>
    %31 = tpu.matmul %30, %28, %cst_24 {dimension_numbers = #tpu.dot_dimension_numbers<[1], [0], [0], [1], [0, 0, 1, 1], [], []>} : vector<128x128xbf16>, vector<128x128xbf16>, vector<128x128xf32> -> vector<128x128xf32>
    %32 = vector.broadcast %29 : vector<1x128xf32> to vector<128x128xf32>
    %33 = arith.addf %31, %32 : vector<128x128xf32>
    %c0_25 = arith.constant 0 : index
    %c0_26 = arith.constant 0 : index
    %34 = vector.load %arg12[%c0_25, %c0_26] : memref<1x128xf32, #tpu.memory_space<vmem>>, vector<1x128xf32>
    %c0_27 = arith.constant 0 : index
    %c0_28 = arith.constant 0 : index
    %35 = vector.load %arg13[%c0_27, %c0_28] : memref<1x128xf32, #tpu.memory_space<vmem>>, vector<1x128xf32>
    %cst_29 = arith.constant dense<0.000000e+00> : vector<128xf32>
    %36 = vector.multi_reduction <add>, %33, %cst_29 [1] : vector<128x128xf32> to vector<128xf32>
    %37 = vector.shape_cast %36 : vector<128xf32> to vector<128x1xf32>
    %cst_30 = arith.constant 1.280000e+02 : f32
    %38 = vector.broadcast %cst_30 : f32 to vector<128x1xf32>
    %39 = arith.divf %37, %38 : vector<128x1xf32>
    %40 = arith.mulf %33, %33 : vector<128x128xf32>
    %cst_31 = arith.constant dense<0.000000e+00> : vector<128xf32>
    %41 = vector.multi_reduction <add>, %40, %cst_31 [1] : vector<128x128xf32> to vector<128xf32>
    %42 = vector.shape_cast %41 : vector<128xf32> to vector<128x1xf32>
    %cst_32 = arith.constant 1.280000e+02 : f32
    %43 = vector.broadcast %cst_32 : f32 to vector<128x1xf32>
    %44 = arith.divf %42, %43 : vector<128x1xf32>
    %45 = arith.mulf %39, %39 : vector<128x1xf32>
    %46 = arith.subf %44, %45 : vector<128x1xf32>
    %47 = vector.broadcast %39 : vector<128x1xf32> to vector<128x128xf32>
    %48 = arith.subf %33, %47 : vector<128x128xf32>
    %cst_33 = arith.constant 9.99999974E-6 : f32
    %49 = vector.broadcast %cst_33 : f32 to vector<128x1xf32>
    %50 = arith.addf %46, %49 : vector<128x1xf32>
    %51 = math.rsqrt %50 : vector<128x1xf32>
    %52 = vector.broadcast %51 : vector<128x1xf32> to vector<128x128xf32>
    %53 = arith.mulf %48, %52 : vector<128x128xf32>
    %54 = vector.broadcast %34 : vector<1x128xf32> to vector<128x128xf32>
    %55 = arith.mulf %53, %54 : vector<128x128xf32>
    %56 = vector.broadcast %35 : vector<1x128xf32> to vector<128x128xf32>
    %57 = arith.addf %55, %56 : vector<128x128xf32>
    %58 = arith.negf %57 : vector<128x128xf32>
    %59 = math.exp %58 : vector<128x128xf32>
    %cst_34 = arith.constant 1.000000e+00 : f32
    %60 = vector.broadcast %cst_34 : f32 to vector<128x128xf32>
    %61 = arith.addf %60, %59 : vector<128x128xf32>
    %62 = arith.divf %60, %61 : vector<128x128xf32>
    %63 = arith.mulf %57, %62 : vector<128x128xf32>
    %64 = arith.addf %63, %26 : vector<128x128xf32>
    %c0_35 = arith.constant 0 : index
    %c0_36 = arith.constant 0 : index
    %c0_37 = arith.constant 0 : index
    %65 = vector.load %arg14[%c0_35, %c0_36, %c0_37] : memref<4x128x128xbf16, #tpu.memory_space<vmem>>, vector<1x128x128xbf16>
    %66 = vector.shape_cast %65 : vector<1x128x128xbf16> to vector<128x128xbf16>
    %c0_38 = arith.constant 0 : index
    %c0_39 = arith.constant 0 : index
    %c0_40 = arith.constant 0 : index
    %67 = vector.load %arg15[%c0_38, %c0_39, %c0_40] : memref<4x1x128xf32, #tpu.memory_space<vmem>>, vector<1x1x128xf32>
    %68 = vector.shape_cast %67 : vector<1x1x128xf32> to vector<1x128xf32>
    %69 = arith.truncf %64 : vector<128x128xf32> to vector<128x128xbf16>
    %cst_41 = arith.constant dense<0.000000e+00> : vector<128x128xf32>
    %70 = tpu.matmul %69, %66, %cst_41 {dimension_numbers = #tpu.dot_dimension_numbers<[1], [0], [0], [1], [0, 0, 1, 1], [], []>} : vector<128x128xbf16>, vector<128x128xbf16>, vector<128x128xf32> -> vector<128x128xf32>
    %71 = vector.broadcast %68 : vector<1x128xf32> to vector<128x128xf32>
    %72 = arith.addf %70, %71 : vector<128x128xf32>
    %c0_42 = arith.constant 0 : index
    %c0_43 = arith.constant 0 : index
    %c0_44 = arith.constant 0 : index
    %73 = vector.load %arg16[%c0_42, %c0_43, %c0_44] : memref<4x1x128xf32, #tpu.memory_space<vmem>>, vector<1x1x128xf32>
    %74 = vector.shape_cast %73 : vector<1x1x128xf32> to vector<1x128xf32>
    %c0_45 = arith.constant 0 : index
    %c0_46 = arith.constant 0 : index
    %c0_47 = arith.constant 0 : index
    %75 = vector.load %arg17[%c0_45, %c0_46, %c0_47] : memref<4x1x128xf32, #tpu.memory_space<vmem>>, vector<1x1x128xf32>
    %76 = vector.shape_cast %75 : vector<1x1x128xf32> to vector<1x128xf32>
    %cst_48 = arith.constant dense<0.000000e+00> : vector<128xf32>
    %77 = vector.multi_reduction <add>, %72, %cst_48 [1] : vector<128x128xf32> to vector<128xf32>
    %78 = vector.shape_cast %77 : vector<128xf32> to vector<128x1xf32>
    %cst_49 = arith.constant 1.280000e+02 : f32
    %79 = vector.broadcast %cst_49 : f32 to vector<128x1xf32>
    %80 = arith.divf %78, %79 : vector<128x1xf32>
    %81 = arith.mulf %72, %72 : vector<128x128xf32>
    %cst_50 = arith.constant dense<0.000000e+00> : vector<128xf32>
    %82 = vector.multi_reduction <add>, %81, %cst_50 [1] : vector<128x128xf32> to vector<128xf32>
    %83 = vector.shape_cast %82 : vector<128xf32> to vector<128x1xf32>
    %cst_51 = arith.constant 1.280000e+02 : f32
    %84 = vector.broadcast %cst_51 : f32 to vector<128x1xf32>
    %85 = arith.divf %83, %84 : vector<128x1xf32>
    %86 = arith.mulf %80, %80 : vector<128x1xf32>
    %87 = arith.subf %85, %86 : vector<128x1xf32>
    %88 = vector.broadcast %80 : vector<128x1xf32> to vector<128x128xf32>
    %89 = arith.subf %72, %88 : vector<128x128xf32>
    %cst_52 = arith.constant 9.99999974E-6 : f32
    %90 = vector.broadcast %cst_52 : f32 to vector<128x1xf32>
    %91 = arith.addf %87, %90 : vector<128x1xf32>
    %92 = math.rsqrt %91 : vector<128x1xf32>
    %93 = vector.broadcast %92 : vector<128x1xf32> to vector<128x128xf32>
    %94 = arith.mulf %89, %93 : vector<128x128xf32>
    %95 = vector.broadcast %74 : vector<1x128xf32> to vector<128x128xf32>
    %96 = arith.mulf %94, %95 : vector<128x128xf32>
    %97 = vector.broadcast %76 : vector<1x128xf32> to vector<128x128xf32>
    %98 = arith.addf %96, %97 : vector<128x128xf32>
    %99 = arith.negf %98 : vector<128x128xf32>
    %100 = math.exp %99 : vector<128x128xf32>
    %cst_53 = arith.constant 1.000000e+00 : f32
    %101 = vector.broadcast %cst_53 : f32 to vector<128x128xf32>
    %102 = arith.addf %101, %100 : vector<128x128xf32>
    %103 = arith.divf %101, %102 : vector<128x128xf32>
    %104 = arith.mulf %98, %103 : vector<128x128xf32>
    %105 = arith.addf %64, %104 : vector<128x128xf32>
    %106 = arith.addf %105, %26 : vector<128x128xf32>
    %c1 = arith.constant 1 : index
    %c0_54 = arith.constant 0 : index
    %c0_55 = arith.constant 0 : index
    %107 = vector.load %arg14[%c1, %c0_54, %c0_55] : memref<4x128x128xbf16, #tpu.memory_space<vmem>>, vector<1x128x128xbf16>
    %108 = vector.shape_cast %107 : vector<1x128x128xbf16> to vector<128x128xbf16>
    %c1_56 = arith.constant 1 : index
    %c0_57 = arith.constant 0 : index
    %c0_58 = arith.constant 0 : index
    %109 = vector.load %arg15[%c1_56, %c0_57, %c0_58] : memref<4x1x128xf32, #tpu.memory_space<vmem>>, vector<1x1x128xf32>
    %110 = vector.shape_cast %109 : vector<1x1x128xf32> to vector<1x128xf32>
    %111 = arith.truncf %106 : vector<128x128xf32> to vector<128x128xbf16>
    %cst_59 = arith.constant dense<0.000000e+00> : vector<128x128xf32>
    %112 = tpu.matmul %111, %108, %cst_59 {dimension_numbers = #tpu.dot_dimension_numbers<[1], [0], [0], [1], [0, 0, 1, 1], [], []>} : vector<128x128xbf16>, vector<128x128xbf16>, vector<128x128xf32> -> vector<128x128xf32>
    %113 = vector.broadcast %110 : vector<1x128xf32> to vector<128x128xf32>
    %114 = arith.addf %112, %113 : vector<128x128xf32>
    %c1_60 = arith.constant 1 : index
    %c0_61 = arith.constant 0 : index
    %c0_62 = arith.constant 0 : index
    %115 = vector.load %arg16[%c1_60, %c0_61, %c0_62] : memref<4x1x128xf32, #tpu.memory_space<vmem>>, vector<1x1x128xf32>
    %116 = vector.shape_cast %115 : vector<1x1x128xf32> to vector<1x128xf32>
    %c1_63 = arith.constant 1 : index
    %c0_64 = arith.constant 0 : index
    %c0_65 = arith.constant 0 : index
    %117 = vector.load %arg17[%c1_63, %c0_64, %c0_65] : memref<4x1x128xf32, #tpu.memory_space<vmem>>, vector<1x1x128xf32>
    %118 = vector.shape_cast %117 : vector<1x1x128xf32> to vector<1x128xf32>
    %cst_66 = arith.constant dense<0.000000e+00> : vector<128xf32>
    %119 = vector.multi_reduction <add>, %114, %cst_66 [1] : vector<128x128xf32> to vector<128xf32>
    %120 = vector.shape_cast %119 : vector<128xf32> to vector<128x1xf32>
    %cst_67 = arith.constant 1.280000e+02 : f32
    %121 = vector.broadcast %cst_67 : f32 to vector<128x1xf32>
    %122 = arith.divf %120, %121 : vector<128x1xf32>
    %123 = arith.mulf %114, %114 : vector<128x128xf32>
    %cst_68 = arith.constant dense<0.000000e+00> : vector<128xf32>
    %124 = vector.multi_reduction <add>, %123, %cst_68 [1] : vector<128x128xf32> to vector<128xf32>
    %125 = vector.shape_cast %124 : vector<128xf32> to vector<128x1xf32>
    %cst_69 = arith.constant 1.280000e+02 : f32
    %126 = vector.broadcast %cst_69 : f32 to vector<128x1xf32>
    %127 = arith.divf %125, %126 : vector<128x1xf32>
    %128 = arith.mulf %122, %122 : vector<128x1xf32>
    %129 = arith.subf %127, %128 : vector<128x1xf32>
    %130 = vector.broadcast %122 : vector<128x1xf32> to vector<128x128xf32>
    %131 = arith.subf %114, %130 : vector<128x128xf32>
    %cst_70 = arith.constant 9.99999974E-6 : f32
    %132 = vector.broadcast %cst_70 : f32 to vector<128x1xf32>
    %133 = arith.addf %129, %132 : vector<128x1xf32>
    %134 = math.rsqrt %133 : vector<128x1xf32>
    %135 = vector.broadcast %134 : vector<128x1xf32> to vector<128x128xf32>
    %136 = arith.mulf %131, %135 : vector<128x128xf32>
    %137 = vector.broadcast %116 : vector<1x128xf32> to vector<128x128xf32>
    %138 = arith.mulf %136, %137 : vector<128x128xf32>
    %139 = vector.broadcast %118 : vector<1x128xf32> to vector<128x128xf32>
    %140 = arith.addf %138, %139 : vector<128x128xf32>
    %141 = arith.negf %140 : vector<128x128xf32>
    %142 = math.exp %141 : vector<128x128xf32>
    %cst_71 = arith.constant 1.000000e+00 : f32
    %143 = vector.broadcast %cst_71 : f32 to vector<128x128xf32>
    %144 = arith.addf %143, %142 : vector<128x128xf32>
    %145 = arith.divf %143, %144 : vector<128x128xf32>
    %146 = arith.mulf %140, %145 : vector<128x128xf32>
    %147 = arith.addf %106, %146 : vector<128x128xf32>
    %148 = arith.addf %147, %26 : vector<128x128xf32>
    %c2 = arith.constant 2 : index
    %c0_72 = arith.constant 0 : index
    %c0_73 = arith.constant 0 : index
    %149 = vector.load %arg14[%c2, %c0_72, %c0_73] : memref<4x128x128xbf16, #tpu.memory_space<vmem>>, vector<1x128x128xbf16>
    %150 = vector.shape_cast %149 : vector<1x128x128xbf16> to vector<128x128xbf16>
    %c2_74 = arith.constant 2 : index
    %c0_75 = arith.constant 0 : index
    %c0_76 = arith.constant 0 : index
    %151 = vector.load %arg15[%c2_74, %c0_75, %c0_76] : memref<4x1x128xf32, #tpu.memory_space<vmem>>, vector<1x1x128xf32>
    %152 = vector.shape_cast %151 : vector<1x1x128xf32> to vector<1x128xf32>
    %153 = arith.truncf %148 : vector<128x128xf32> to vector<128x128xbf16>
    %cst_77 = arith.constant dense<0.000000e+00> : vector<128x128xf32>
    %154 = tpu.matmul %153, %150, %cst_77 {dimension_numbers = #tpu.dot_dimension_numbers<[1], [0], [0], [1], [0, 0, 1, 1], [], []>} : vector<128x128xbf16>, vector<128x128xbf16>, vector<128x128xf32> -> vector<128x128xf32>
    %155 = vector.broadcast %152 : vector<1x128xf32> to vector<128x128xf32>
    %156 = arith.addf %154, %155 : vector<128x128xf32>
    %c2_78 = arith.constant 2 : index
    %c0_79 = arith.constant 0 : index
    %c0_80 = arith.constant 0 : index
    %157 = vector.load %arg16[%c2_78, %c0_79, %c0_80] : memref<4x1x128xf32, #tpu.memory_space<vmem>>, vector<1x1x128xf32>
    %158 = vector.shape_cast %157 : vector<1x1x128xf32> to vector<1x128xf32>
    %c2_81 = arith.constant 2 : index
    %c0_82 = arith.constant 0 : index
    %c0_83 = arith.constant 0 : index
    %159 = vector.load %arg17[%c2_81, %c0_82, %c0_83] : memref<4x1x128xf32, #tpu.memory_space<vmem>>, vector<1x1x128xf32>
    %160 = vector.shape_cast %159 : vector<1x1x128xf32> to vector<1x128xf32>
    %cst_84 = arith.constant dense<0.000000e+00> : vector<128xf32>
    %161 = vector.multi_reduction <add>, %156, %cst_84 [1] : vector<128x128xf32> to vector<128xf32>
    %162 = vector.shape_cast %161 : vector<128xf32> to vector<128x1xf32>
    %cst_85 = arith.constant 1.280000e+02 : f32
    %163 = vector.broadcast %cst_85 : f32 to vector<128x1xf32>
    %164 = arith.divf %162, %163 : vector<128x1xf32>
    %165 = arith.mulf %156, %156 : vector<128x128xf32>
    %cst_86 = arith.constant dense<0.000000e+00> : vector<128xf32>
    %166 = vector.multi_reduction <add>, %165, %cst_86 [1] : vector<128x128xf32> to vector<128xf32>
    %167 = vector.shape_cast %166 : vector<128xf32> to vector<128x1xf32>
    %cst_87 = arith.constant 1.280000e+02 : f32
    %168 = vector.broadcast %cst_87 : f32 to vector<128x1xf32>
    %169 = arith.divf %167, %168 : vector<128x1xf32>
    %170 = arith.mulf %164, %164 : vector<128x1xf32>
    %171 = arith.subf %169, %170 : vector<128x1xf32>
    %172 = vector.broadcast %164 : vector<128x1xf32> to vector<128x128xf32>
    %173 = arith.subf %156, %172 : vector<128x128xf32>
    %cst_88 = arith.constant 9.99999974E-6 : f32
    %174 = vector.broadcast %cst_88 : f32 to vector<128x1xf32>
    %175 = arith.addf %171, %174 : vector<128x1xf32>
    %176 = math.rsqrt %175 : vector<128x1xf32>
    %177 = vector.broadcast %176 : vector<128x1xf32> to vector<128x128xf32>
    %178 = arith.mulf %173, %177 : vector<128x128xf32>
    %179 = vector.broadcast %158 : vector<1x128xf32> to vector<128x128xf32>
    %180 = arith.mulf %178, %179 : vector<128x128xf32>
    %181 = vector.broadcast %160 : vector<1x128xf32> to vector<128x128xf32>
    %182 = arith.addf %180, %181 : vector<128x128xf32>
    %183 = arith.negf %182 : vector<128x128xf32>
    %184 = math.exp %183 : vector<128x128xf32>
    %cst_89 = arith.constant 1.000000e+00 : f32
    %185 = vector.broadcast %cst_89 : f32 to vector<128x128xf32>
    %186 = arith.addf %185, %184 : vector<128x128xf32>
    %187 = arith.divf %185, %186 : vector<128x128xf32>
    %188 = arith.mulf %182, %187 : vector<128x128xf32>
    %189 = arith.addf %148, %188 : vector<128x128xf32>
    %190 = arith.addf %189, %26 : vector<128x128xf32>
    %c3 = arith.constant 3 : index
    %c0_90 = arith.constant 0 : index
    %c0_91 = arith.constant 0 : index
    %191 = vector.load %arg14[%c3, %c0_90, %c0_91] : memref<4x128x128xbf16, #tpu.memory_space<vmem>>, vector<1x128x128xbf16>
    %192 = vector.shape_cast %191 : vector<1x128x128xbf16> to vector<128x128xbf16>
    %c3_92 = arith.constant 3 : index
    %c0_93 = arith.constant 0 : index
    %c0_94 = arith.constant 0 : index
    %193 = vector.load %arg15[%c3_92, %c0_93, %c0_94] : memref<4x1x128xf32, #tpu.memory_space<vmem>>, vector<1x1x128xf32>
    %194 = vector.shape_cast %193 : vector<1x1x128xf32> to vector<1x128xf32>
    %195 = arith.truncf %190 : vector<128x128xf32> to vector<128x128xbf16>
    %cst_95 = arith.constant dense<0.000000e+00> : vector<128x128xf32>
    %196 = tpu.matmul %195, %192, %cst_95 {dimension_numbers = #tpu.dot_dimension_numbers<[1], [0], [0], [1], [0, 0, 1, 1], [], []>} : vector<128x128xbf16>, vector<128x128xbf16>, vector<128x128xf32> -> vector<128x128xf32>
    %197 = vector.broadcast %194 : vector<1x128xf32> to vector<128x128xf32>
    %198 = arith.addf %196, %197 : vector<128x128xf32>
    %c3_96 = arith.constant 3 : index
    %c0_97 = arith.constant 0 : index
    %c0_98 = arith.constant 0 : index
    %199 = vector.load %arg16[%c3_96, %c0_97, %c0_98] : memref<4x1x128xf32, #tpu.memory_space<vmem>>, vector<1x1x128xf32>
    %200 = vector.shape_cast %199 : vector<1x1x128xf32> to vector<1x128xf32>
    %c3_99 = arith.constant 3 : index
    %c0_100 = arith.constant 0 : index
    %c0_101 = arith.constant 0 : index
    %201 = vector.load %arg17[%c3_99, %c0_100, %c0_101] : memref<4x1x128xf32, #tpu.memory_space<vmem>>, vector<1x1x128xf32>
    %202 = vector.shape_cast %201 : vector<1x1x128xf32> to vector<1x128xf32>
    %cst_102 = arith.constant dense<0.000000e+00> : vector<128xf32>
    %203 = vector.multi_reduction <add>, %198, %cst_102 [1] : vector<128x128xf32> to vector<128xf32>
    %204 = vector.shape_cast %203 : vector<128xf32> to vector<128x1xf32>
    %cst_103 = arith.constant 1.280000e+02 : f32
    %205 = vector.broadcast %cst_103 : f32 to vector<128x1xf32>
    %206 = arith.divf %204, %205 : vector<128x1xf32>
    %207 = arith.mulf %198, %198 : vector<128x128xf32>
    %cst_104 = arith.constant dense<0.000000e+00> : vector<128xf32>
    %208 = vector.multi_reduction <add>, %207, %cst_104 [1] : vector<128x128xf32> to vector<128xf32>
    %209 = vector.shape_cast %208 : vector<128xf32> to vector<128x1xf32>
    %cst_105 = arith.constant 1.280000e+02 : f32
    %210 = vector.broadcast %cst_105 : f32 to vector<128x1xf32>
    %211 = arith.divf %209, %210 : vector<128x1xf32>
    %212 = arith.mulf %206, %206 : vector<128x1xf32>
    %213 = arith.subf %211, %212 : vector<128x1xf32>
    %214 = vector.broadcast %206 : vector<128x1xf32> to vector<128x128xf32>
    %215 = arith.subf %198, %214 : vector<128x128xf32>
    %cst_106 = arith.constant 9.99999974E-6 : f32
    %216 = vector.broadcast %cst_106 : f32 to vector<128x1xf32>
    %217 = arith.addf %213, %216 : vector<128x1xf32>
    %218 = math.rsqrt %217 : vector<128x1xf32>
    %219 = vector.broadcast %218 : vector<128x1xf32> to vector<128x128xf32>
    %220 = arith.mulf %215, %219 : vector<128x128xf32>
    %221 = vector.broadcast %200 : vector<1x128xf32> to vector<128x128xf32>
    %222 = arith.mulf %220, %221 : vector<128x128xf32>
    %223 = vector.broadcast %202 : vector<1x128xf32> to vector<128x128xf32>
    %224 = arith.addf %222, %223 : vector<128x128xf32>
    %225 = arith.negf %224 : vector<128x128xf32>
    %226 = math.exp %225 : vector<128x128xf32>
    %cst_107 = arith.constant 1.000000e+00 : f32
    %227 = vector.broadcast %cst_107 : f32 to vector<128x128xf32>
    %228 = arith.addf %227, %226 : vector<128x128xf32>
    %229 = arith.divf %227, %228 : vector<128x128xf32>
    %230 = arith.mulf %224, %229 : vector<128x128xf32>
    %231 = arith.addf %190, %230 : vector<128x128xf32>
    %c0_108 = arith.constant 0 : index
    %c0_109 = arith.constant 0 : index
    %232 = vector.load %arg18[%c0_108, %c0_109] : memref<128x128xbf16, #tpu.memory_space<vmem>>, vector<128x128xbf16>
    %c0_110 = arith.constant 0 : index
    %c0_111 = arith.constant 0 : index
    %233 = vector.load %arg19[%c0_110, %c0_111] : memref<1x128xf32, #tpu.memory_space<vmem>>, vector<1x128xf32>
    %234 = arith.truncf %231 : vector<128x128xf32> to vector<128x128xbf16>
    %cst_112 = arith.constant dense<0.000000e+00> : vector<128x128xf32>
    %235 = tpu.matmul %234, %232, %cst_112 {dimension_numbers = #tpu.dot_dimension_numbers<[1], [0], [0], [1], [0, 0, 1, 1], [], []>} : vector<128x128xbf16>, vector<128x128xbf16>, vector<128x128xf32> -> vector<128x128xf32>
    %236 = vector.broadcast %233 : vector<1x128xf32> to vector<128x128xf32>
    %237 = arith.addf %235, %236 : vector<128x128xf32>
    %c0_113 = arith.constant 0 : index
    %c0_114 = arith.constant 0 : index
    %238 = vector.load %arg20[%c0_113, %c0_114] : memref<128x128xf32, #tpu.memory_space<vmem>>, vector<128x128xf32>
    tpu.vector_store %arg20[%c0_113, %c0_114], %237 {strides = array<i32>} : memref<128x128xf32, #tpu.memory_space<vmem>>, vector<128x128xf32>,
    return
  }
  func.func @transform_0(%arg0: i32) -> (i32, i32) {
    %c0_i32 = arith.constant 0 : i32
    %c0_i32_0 = arith.constant 0 : i32
    return %arg0, %c0_i32 : i32, i32
  }
  func.func @transform_1(%arg0: i32) -> (i32, i32) {
    %c0_i32 = arith.constant 0 : i32
    %c0_i32_0 = arith.constant 0 : i32
    return %arg0, %c0_i32 : i32, i32
  }
  func.func @transform_2(%arg0: i32) -> (i32, i32) {
    %c0_i32 = arith.constant 0 : i32
    %c0_i32_0 = arith.constant 0 : i32
    return %arg0, %c0_i32 : i32, i32
  }
  func.func @transform_3(%arg0: i32) -> (i32, i32) {
    %c0_i32 = arith.constant 0 : i32
    %c0_i32_0 = arith.constant 0 : i32
    %c0_i32_1 = arith.constant 0 : i32
    return %c0_i32, %c0_i32_0 : i32, i32
  }
  func.func @transform_4(%arg0: i32) -> (i32, i32) {
    %c0_i32 = arith.constant 0 : i32
    %c0_i32_0 = arith.constant 0 : i32
    %c0_i32_1 = arith.constant 0 : i32
    return %c0_i32, %c0_i32_0 : i32, i32
  }
  func.func @transform_5(%arg0: i32) -> (i32, i32) {
    %c0_i32 = arith.constant 0 : i32
    %c0_i32_0 = arith.constant 0 : i32
    %c0_i32_1 = arith.constant 0 : i32
    return %c0_i32, %c0_i32_0 : i32, i32
  }
  func.func @transform_6(%arg0: i32) -> (i32, i32) {
    %c0_i32 = arith.constant 0 : i32
    %c0_i32_0 = arith.constant 0 : i32
    %c0_i32_1 = arith.constant 0 : i32
    return %c0_i32, %c0_i32_0 : i32, i32
  }
  func.func @transform_7(%arg0: i32) -> (i32, i32) {
    %c0_i32 = arith.constant 0 : i32
    %c0_i32_0 = arith.constant 0 : i32
    %c0_i32_1 = arith.constant 0 : i32
    return %c0_i32, %c0_i32_0 : i32, i32
  }
  func.func @transform_8(%arg0: i32) -> (i32, i32) {
    %c0_i32 = arith.constant 0 : i32
    %c0_i32_0 = arith.constant 0 : i32
    %c0_i32_1 = arith.constant 0 : i32
    return %c0_i32, %c0_i32_0 : i32, i32
  }
  func.func @transform_9(%arg0: i32) -> (i32, i32) {
    %c0_i32 = arith.constant 0 : i32
    %c0_i32_0 = arith.constant 0 : i32
    %c0_i32_1 = arith.constant 0 : i32
    return %c0_i32, %c0_i32_0 : i32, i32
  }
  func.func @transform_10(%arg0: i32) -> (i32, i32) {
    %c0_i32 = arith.constant 0 : i32
    %c0_i32_0 = arith.constant 0 : i32
    %c0_i32_1 = arith.constant 0 : i32
    return %c0_i32, %c0_i32_0 : i32, i32
  }
  func.func @transform_11(%arg0: i32) -> (i32, i32) {
    %c0_i32 = arith.constant 0 : i32
    %c0_i32_0 = arith.constant 0 : i32
    %c0_i32_1 = arith.constant 0 : i32
    return %c0_i32, %c0_i32_0 : i32, i32
  }
  func.func @transform_12(%arg0: i32) -> (i32, i32) {
    %c0_i32 = arith.constant 0 : i32
    %c0_i32_0 = arith.constant 0 : i32
    %c0_i32_1 = arith.constant 0 : i32
    return %c0_i32, %c0_i32_0 : i32, i32
  }
  func.func @transform_13(%arg0: i32) -> (i32, i32, i32) {
    %c0_i32 = arith.constant 0 : i32
    %c0_i32_0 = arith.constant 0 : i32
    %c0_i32_1 = arith.constant 0 : i32
    %c0_i32_2 = arith.constant 0 : i32
    return %c0_i32, %c0_i32_0, %c0_i32_1 : i32, i32, i32
  }
  func.func @transform_14(%arg0: i32) -> (i32, i32, i32) {
    %c0_i32 = arith.constant 0 : i32
    %c0_i32_0 = arith.constant 0 : i32
    %c0_i32_1 = arith.constant 0 : i32
    %c0_i32_2 = arith.constant 0 : i32
    return %c0_i32, %c0_i32_0, %c0_i32_1 : i32, i32, i32
  }
  func.func @transform_15(%arg0: i32) -> (i32, i32, i32) {
    %c0_i32 = arith.constant 0 : i32
    %c0_i32_0 = arith.constant 0 : i32
    %c0_i32_1 = arith.constant 0 : i32
    %c0_i32_2 = arith.constant 0 : i32
    return %c0_i32, %c0_i32_0, %c0_i32_1 : i32, i32, i32
  }
  func.func @transform_16(%arg0: i32) -> (i32, i32, i32) {
    %c0_i32 = arith.constant 0 : i32
    %c0_i32_0 = arith.constant 0 : i32
    %c0_i32_1 = arith.constant 0 : i32
    %c0_i32_2 = arith.constant 0 : i32
    return %c0_i32, %c0_i32_0, %c0_i32_1 : i32, i32, i32
  }
  func.func @transform_17(%arg0: i32) -> (i32, i32) {
    %c0_i32 = arith.constant 0 : i32
    %c0_i32_0 = arith.constant 0 : i32
    %c0_i32_1 = arith.constant 0 : i32
    return %c0_i32, %c0_i32_0 : i32, i32
  }
  func.func @transform_18(%arg0: i32) -> (i32, i32) {
    %c0_i32 = arith.constant 0 : i32
    %c0_i32_0 = arith.constant 0 : i32
    %c0_i32_1 = arith.constant 0 : i32
    return %c0_i32, %c0_i32_0 : i32, i32
  }
  func.func @transform_19(%arg0: i32) -> (i32, i32) {
    %c0_i32 = arith.constant 0 : i32
    %c0_i32_0 = arith.constant 0 : i32
    return %arg0, %c0_i32 : i32, i32
  }
}

</mosaic_0001>

<llo_original>
// kernel: tpu_custom_call.1
$region0: #{tpu_custom_call.1}
  #allocation0 [shape = 'u32[]', space=smem, size = 0x4, offset = 0x4, fixed_abs, tag = 'smem constant byte address 0x4 - core index']
  #allocation1 [shape = 'u32[144,128]{1,0:T(1,128)}', space=vmem, size = 0x12000, scoped, tag = 'internal scratch']
  %s0 = inlined_call_operand.hbm [shape: f32[256,128], index: 0, kind: input, shape index: {}]
  %s1 = inlined_call_operand.hbm [shape: f32[256,128], index: 1, kind: input, shape index: {}]
  %s2 = inlined_call_operand.hbm [shape: f32[256,128], index: 2, kind: input, shape index: {}]
  %s3 = inlined_call_operand.hbm [shape: bf16[128,128], index: 3, kind: input, shape index: {}]
  %s4 = inlined_call_operand.hbm [shape: f32[1,128], index: 4, kind: input, shape index: {}]
  %s5 = inlined_call_operand.hbm [shape: bf16[128,128], index: 5, kind: input, shape index: {}]
  %s6 = inlined_call_operand.hbm [shape: f32[1,128], index: 6, kind: input, shape index: {}]
  %s7 = inlined_call_operand.hbm [shape: bf16[128,128], index: 7, kind: input, shape index: {}]
  %s8 = inlined_call_operand.hbm [shape: f32[1,128], index: 8, kind: input, shape index: {}]
  %s9 = inlined_call_operand.hbm [shape: bf16[128,128], index: 9, kind: input, shape index: {}]
  %s10 = inlined_call_operand.hbm [shape: f32[1,128], index: 10, kind: input, shape index: {}]
  %s11 = inlined_call_operand.hbm [shape: f32[1,128], index: 11, kind: input, shape index: {}]
  %s12 = inlined_call_operand.hbm [shape: f32[1,128], index: 12, kind: input, shape index: {}]
  %s13 = inlined_call_operand.hbm [shape: bf16[4,128,128], index: 13, kind: input, shape index: {}]
  %s14 = inlined_call_operand.hbm [shape: f32[4,1,128], index: 14, kind: input, shape index: {}]
  %s15 = inlined_call_operand.hbm [shape: f32[4,1,128], index: 15, kind: input, shape index: {}]
  %s16 = inlined_call_operand.hbm [shape: f32[4,1,128], index: 16, kind: input, shape index: {}]
  %s17 = inlined_call_operand.vmem [shape: bf16[128,128], index: 17, kind: input, shape index: {}]
  %s18 = inlined_call_operand.vmem [shape: f32[1,128], index: 18, kind: input, shape index: {}]
  %s19 = inlined_call_operand.hbm [shape: f32[256,128], index: 19, kind: output, shape index: {}]
  %s20 = sld [smem:[#allocation0]]
  $region177: #{tpu_custom_call.1} parent=0
    _
  %s22 = ssub.s32 1, %s20
  %s23 = scalar_select 0, %s22, %s20
  $region1: #{tpu_custom_call.1} parent=0
    #allocation2 [shape = 'u8[131072]{0}', space=vmem, size = 0x20000, scoped, tag = 'input window, operand 0']
    #allocation3 [shape = 's32[2]{0}', space=sflag, size = 0x8, scoped, tag = 'scoped memory for tpu_custom_call.1']
    #allocation4 [shape = 's32[2]{0}', space=sflag, size = 0x8, scoped, tag = 'scoped memory for tpu_custom_call.1']
    #allocation5 [shape = 'u8[131072]{0}', space=vmem, size = 0x20000, scoped, tag = 'input window, operand 1']
    #allocation6 [shape = 's32[2]{0}', space=sflag, size = 0x8, scoped, tag = 'scoped memory for tpu_custom_call.1']
    #allocation7 [shape = 'u8[131072]{0}', space=vmem, size = 0x20000, scoped, tag = 'input window, operand 2']
    #allocation8 [shape = 'u8[32768]{0}', space=vmem, size = 0x8000, scoped, tag = 'input window, operand 3, single buffered']
    #allocation9 [shape = 's32[1]{0}', space=sflag, size = 0x4, scoped, tag = 'scoped memory for tpu_custom_call.1']
    #allocation10 [shape = 'u8[512]{0}', space=vmem, size = 0x400, scoped, tag = 'input window, operand 4, single buffered']
    #allocation11 [shape = 'u8[32768]{0}', space=vmem, size = 0x8000, scoped, tag = 'input window, operand 5, single buffered']
    #allocation12 [shape = 's32[1]{0}', space=sflag, size = 0x4, scoped, tag = 'scoped memory for tpu_custom_call.1']
    #allocation13 [shape = 'u8[512]{0}', space=vmem, size = 0x400, scoped, tag = 'input window, operand 6, single buffered']
    #allocation14 [shape = 'u8[32768]{0}', space=vmem, size = 0x8000, scoped, tag = 'input window, operand 7, single buffered']
    #allocation15 [shape = 's32[1]{0}', space=sflag, size = 0x4, scoped, tag = 'scoped memory for tpu_custom_call.1']
    #allocation16 [shape = 'u8[512]{0}', space=vmem, size = 0x400, scoped, tag = 'input window, operand 8, single buffered']
    #allocation17 [shape = 'u8[32768]{0}', space=vmem, size = 0x8000, scoped, tag = 'input window, operand 9, single buffered']
    #allocation18 [shape = 's32[1]{0}', space=sflag, size = 0x4, scoped, tag = 'scoped memory for tpu_custom_call.1']
    #allocation19 [shape = 'u8[512]{0}', space=vmem, size = 0x400, scoped, tag = 'input window, operand 10, single buffered']
    #allocation20 [shape = 'u8[512]{0}', space=vmem, size = 0x400, scoped, tag = 'input window, operand 11, single buffered']
    #allocation21 [shape = 's32[1]{0}', space=sflag, size = 0x4, scoped, tag = 'scoped memory for tpu_custom_call.1']
    #allocation22 [shape = 'u8[512]{0}', space=vmem, size = 0x400, scoped, tag = 'input window, operand 12, single buffered']
    #allocation23 [shape = 'u8[131072]{0}', space=vmem, size = 0x20000, scoped, tag = 'input window, operand 13, single buffered']
    #allocation24 [shape = 's32[1]{0}', space=sflag, size = 0x4, scoped, tag = 'scoped memory for tpu_custom_call.1']
    #allocation25 [shape = 'u8[2048]{0}', space=vmem, size = 0x800, scoped, tag = 'input window, operand 14, single buffered']
    #allocation26 [shape = 'u8[2048]{0}', space=vmem, size = 0x800, scoped, tag = 'input window, operand 15, single buffered']
    #allocation27 [shape = 's32[1]{0}', space=sflag, size = 0x4, scoped, tag = 'scoped memory for tpu_custom_call.1']
    #allocation28 [shape = 'u8[2048]{0}', space=vmem, size = 0x800, scoped, tag = 'input window, operand 16, single buffered']
    #allocation29 [shape = 'u8[131072]{0}', space=vmem, size = 0x20000, scoped, tag = 'output window, operand 0']
    %24 = vsyncpa [#allocation3], 0
    %s25 = scalar_lea.sflag [#allocation3], 1
    %26 = vsyncpa %s25, 0
    %27 = vsyncpa [#allocation6], 0
    %s28 = scalar_lea.sflag [#allocation6], 1
    %29 = vsyncpa %s28, 0
    %30 = vsyncpa [#allocation9], 0
    %31 = vsyncpa [#allocation12], 0
    %32 = vsyncpa [#allocation15], 0
    %33 = vsyncpa [#allocation18], 0
    %34 = vsyncpa [#allocation21], 0
    %35 = vsyncpa [#allocation24], 0
    %36 = vsyncpa [#allocation27], 0
    %37 = vsyncpa [#allocation4], 0
    %s38 = scalar_lea.sflag [#allocation4], 1
    %39 = vsyncpa %s38, 0
    loop: start=0, step=1, limit=4
    $region2: #{tpu_custom_call.1} parent=1 // loop_pre_header
      _
    $region3: #{tpu_custom_call.1} parent=1 // loop_header
      %s41 = sphi 0, %s45
      %p42 = scmp.ge.s32.totalorder %s41, 4
      %s51 = sphi 0, %s53
      %s54 = sphi 0, %s51
      %s55 = sphi 0, %s54
      %s71 = sphi 0, %s55
      %s77 = sphi 0, %s79
      %s80 = sphi 0, %s77
      %s81 = sphi 0, %s80
      %s97 = sphi 0, %s81
      %s103 = sphi 0, %s105
      %s106 = sphi 0, %s103
      %s107 = sphi 0, %s106
      %s123 = sphi 0, %s107
      %s127 = sphi 0, %s127
      %s129 = sphi 0, %s127
      %s130 = sphi 0, %s129
      %s144 = sphi 0, %s130
      %s148 = sphi 0, %s148
      %s150 = sphi 0, %s148
      %s151 = sphi 0, %s150
      %s165 = sphi 0, %s151
      %s169 = sphi 0, %s169
      %s171 = sphi 0, %s169
      %s172 = sphi 0, %s171
      %s186 = sphi 0, %s172
      %s190 = sphi 0, %s190
      %s192 = sphi 0, %s190
      %s193 = sphi 0, %s192
      %s207 = sphi 0, %s193
      %s211 = sphi 0, %s211
      %s213 = sphi 0, %s211
      %s214 = sphi 0, %s213
      %s228 = sphi 0, %s214
      %s232 = sphi 0, %s232
      %s234 = sphi 0, %s232
      %s235 = sphi 0, %s234
      %s249 = sphi 0, %s235
      %s253 = sphi 0, %s253
      %s255 = sphi 0, %s253
      %s256 = sphi 0, %s255
      %s270 = sphi 0, %s256
      %s274 = sphi 0, %s274
      %s276 = sphi 0, %s274
      %s277 = sphi 0, %s276
      %s291 = sphi 0, %s277
      %s295 = sphi 0, %s295
      %s297 = sphi 0, %s295
      %s298 = sphi 0, %s297
      %s312 = sphi 0, %s298
      %s316 = sphi 0, %s316
      %s318 = sphi 0, %s316
      %s319 = sphi 0, %s318
      %s333 = sphi 0, %s319
      %s337 = sphi 0, %s337
      %s339 = sphi 0, %s337
      %s340 = sphi 0, %s339
      %s354 = sphi 0, %s340
      %s358 = sphi 0, %s358
      %s360 = sphi 0, %s358
      %s361 = sphi 0, %s360
      %s375 = sphi 0, %s361
      %s379 = sphi 0, %s379
      %s381 = sphi 0, %s379
      %s382 = sphi 0, %s381
      %s396 = sphi 0, %s382
      %s400 = sphi 0, %s400
      %s402 = sphi 0, %s400
      %s403 = sphi 0, %s402
      %s417 = sphi 0, %s403
      %s421 = sphi 0, %s421
      %s423 = sphi 0, %s421
      %s424 = sphi 0, %s423
      %s438 = sphi 0, %s424
      %s442 = sphi 0, %s442
      %s444 = sphi 0, %s442
      %s445 = sphi 0, %s444
      %s459 = sphi 0, %s445
      %s465 = sphi 0, %s467
      %s468 = sphi 0, %s465
      %s469 = sphi 0, %s468
      %s485 = sphi 0, %s469
    $region4: #{tpu_custom_call.1} parent=1 // loop_header_branch
      %44 = sbr.rel (%p42) target = $region8
    $region5: #{tpu_custom_call.1} parent=1 // loop_body
      %s46 = ssub.s32 %s41, 1
      %s47 = ssub.s32 %s41, 2
      %s48 = sadd.s32 %s41, 1
      %s49 = ssub.s32 %s41, %s48
      %p50 = scmp.eq.s32.totalorder %s49, 0
      %s52 = sadd.s32 %s51, 1
      %s53 = scalar_select %p50, %s51, %s52
      %p56 = pneg %p50
      %p57 = scmp.eq.s32.totalorder %s41, 1
      %p58 = por %p56, %p57
      %p59 = scmp.ne.s32.totalorder %s51, %s54
      %p60 = scmp.eq.s32.totalorder %s41, 0
      %p61 = por %p59, %p60
      %p62 = scmp.ne.s32.totalorder %s51, %s54
      %p63 = scmp.eq.s32.totalorder %s46, 1
      %p64 = por %p62, %p63
      %p65 = scmp.ne.s32.totalorder %s54, %s55
      %p66 = scmp.eq.s32.totalorder %s46, 0
      %p67 = por %p65, %p66
      %p68 = scmp.ne.s32.totalorder %s54, %s55
      %p69 = scmp.eq.s32.totalorder %s47, 1
      %p70 = por %p68, %p69
      %p72 = scmp.ne.s32.totalorder %s55, %s71
      %p73 = scmp.eq.s32.totalorder %s47, 0
      %p74 = por %p72, %p73
      %s75 = ssub.s32 %s41, %s48
      %p76 = scmp.eq.s32.totalorder %s75, 0
      %s78 = sadd.s32 %s77, 1
      %s79 = scalar_select %p76, %s77, %s78
      %p82 = pneg %p76
      %p83 = scmp.eq.s32.totalorder %s41, 1
      %p84 = por %p82, %p83
      %p85 = scmp.ne.s32.totalorder %s77, %s80
      %p86 = scmp.eq.s32.totalorder %s41, 0
      %p87 = por %p85, %p86
      %p88 = scmp.ne.s32.totalorder %s77, %s80
      %p89 = scmp.eq.s32.totalorder %s46, 1
      %p90 = por %p88, %p89
      %p91 = scmp.ne.s32.totalorder %s80, %s81
      %p92 = scmp.eq.s32.totalorder %s46, 0
      %p93 = por %p91, %p92
      %p94 = scmp.ne.s32.totalorder %s80, %s81
      %p95 = scmp.eq.s32.totalorder %s47, 1
      %p96 = por %p94, %p95
      %p98 = scmp.ne.s32.totalorder %s81, %s97
      %p99 = scmp.eq.s32.totalorder %s47, 0
      %p100 = por %p98, %p99
      %s101 = ssub.s32 %s41, %s48
      %p102 = scmp.eq.s32.totalorder %s101, 0
      %s104 = sadd.s32 %s103, 1
      %s105 = scalar_select %p102, %s103, %s104
      %p108 = pneg %p102
      %p109 = scmp.eq.s32.totalorder %s41, 1
      %p110 = por %p108, %p109
      %p111 = scmp.ne.s32.totalorder %s103, %s106
      %p112 = scmp.eq.s32.totalorder %s41, 0
      %p113 = por %p111, %p112
      %p114 = scmp.ne.s32.totalorder %s103, %s106
      %p115 = scmp.eq.s32.totalorder %s46, 1
      %p116 = por %p114, %p115
      %p117 = scmp.ne.s32.totalorder %s106, %s107
      %p118 = scmp.eq.s32.totalorder %s46, 0
      %p119 = por %p117, %p118
      %p120 = scmp.ne.s32.totalorder %s106, %s107
      %p121 = scmp.eq.s32.totalorder %s47, 1
      %p122 = por %p120, %p121
      %p124 = scmp.ne.s32.totalorder %s107, %s123
      %p125 = scmp.eq.s32.totalorder %s47, 0
      %p126 = por %p124, %p125
      %s128 = sadd.s32 %s127, 1
      %p131 = scmp.eq.s32.totalorder %s41, 1
      %p132 = scmp.ne.s32.totalorder %s127, %s129
      %p133 = scmp.eq.s32.totalorder %s41, 0
      %p134 = por %p132, %p133
      %p135 = scmp.ne.s32.totalorder %s127, %s129
      %p136 = scmp.eq.s32.totalorder %s46, 1
      %p137 = por %p135, %p136
      %p138 = scmp.ne.s32.totalorder %s129, %s130
      %p139 = scmp.eq.s32.totalorder %s46, 0
      %p140 = por %p138, %p139
      %p141 = scmp.ne.s32.totalorder %s129, %s130
      %p142 = scmp.eq.s32.totalorder %s47, 1
      %p143 = por %p141, %p142
      %p145 = scmp.ne.s32.totalorder %s130, %s144
      %p146 = scmp.eq.s32.totalorder %s47, 0
      %p147 = por %p145, %p146
      %s149 = sadd.s32 %s148, 1
      %p152 = scmp.eq.s32.totalorder %s41, 1
      %p153 = scmp.ne.s32.totalorder %s148, %s150
      %p154 = scmp.eq.s32.totalorder %s41, 0
      %p155 = por %p153, %p154
      %p156 = scmp.ne.s32.totalorder %s148, %s150
      %p157 = scmp.eq.s32.totalorder %s46, 1
      %p158 = por %p156, %p157
      %p159 = scmp.ne.s32.totalorder %s150, %s151
      %p160 = scmp.eq.s32.totalorder %s46, 0
      %p161 = por %p159, %p160
      %p162 = scmp.ne.s32.totalorder %s150, %s151
      %p163 = scmp.eq.s32.totalorder %s47, 1
      %p164 = por %p162, %p163
      %p166 = scmp.ne.s32.totalorder %s151, %s165
      %p167 = scmp.eq.s32.totalorder %s47, 0
      %p168 = por %p166, %p167
      %s170 = sadd.s32 %s169, 1
      %p173 = scmp.eq.s32.totalorder %s41, 1
      %p174 = scmp.ne.s32.totalorder %s169, %s171
      %p175 = scmp.eq.s32.totalorder %s41, 0
      %p176 = por %p174, %p175
      %p177 = scmp.ne.s32.totalorder %s169, %s171
      %p178 = scmp.eq.s32.totalorder %s46, 1
      %p179 = por %p177, %p178
      %p180 = scmp.ne.s32.totalorder %s171, %s172
      %p181 = scmp.eq.s32.totalorder %s46, 0
      %p182 = por %p180, %p181
      %p183 = scmp.ne.s32.totalorder %s171, %s172
      %p184 = scmp.eq.s32.totalorder %s47, 1
      %p185 = por %p183, %p184
      %p187 = scmp.ne.s32.totalorder %s172, %s186
      %p188 = scmp.eq.s32.totalorder %s47, 0
      %p189 = por %p187, %p188
      %s191 = sadd.s32 %s190, 1
      %p194 = scmp.eq.s32.totalorder %s41, 1
      %p195 = scmp.ne.s32.totalorder %s190, %s192
      %p196 = scmp.eq.s32.totalorder %s41, 0
      %p197 = por %p195, %p196
      %p198 = scmp.ne.s32.totalorder %s190, %s192
      %p199 = scmp.eq.s32.totalorder %s46, 1
      %p200 = por %p198, %p199
      %p201 = scmp.ne.s32.totalorder %s192, %s193
      %p202 = scmp.eq.s32.totalorder %s46, 0
      %p203 = por %p201, %p202
      %p204 = scmp.ne.s32.totalorder %s192, %s193
      %p205 = scmp.eq.s32.totalorder %s47, 1
      %p206 = por %p204, %p205
      %p208 = scmp.ne.s32.totalorder %s193, %s207
      %p209 = scmp.eq.s32.totalorder %s47, 0
      %p210 = por %p208, %p209
      %s212 = sadd.s32 %s211, 1
      %p215 = scmp.eq.s32.totalorder %s41, 1
      %p216 = scmp.ne.s32.totalorder %s211, %s213
      %p217 = scmp.eq.s32.totalorder %s41, 0
      %p218 = por %p216, %p217
      %p219 = scmp.ne.s32.totalorder %s211, %s213
      %p220 = scmp.eq.s32.totalorder %s46, 1
      %p221 = por %p219, %p220
      %p222 = scmp.ne.s32.totalorder %s213, %s214
      %p223 = scmp.eq.s32.totalorder %s46, 0
      %p224 = por %p222, %p223
      %p225 = scmp.ne.s32.totalorder %s213, %s214
      %p226 = scmp.eq.s32.totalorder %s47, 1
      %p227 = por %p225, %p226
      %p229 = scmp.ne.s32.totalorder %s214, %s228
      %p230 = scmp.eq.s32.totalorder %s47, 0
      %p231 = por %p229, %p230
      %s233 = sadd.s32 %s232, 1
      %p236 = scmp.eq.s32.totalorder %s41, 1
      %p237 = scmp.ne.s32.totalorder %s232, %s234
      %p238 = scmp.eq.s32.totalorder %s41, 0
      %p239 = por %p237, %p238
      %p240 = scmp.ne.s32.totalorder %s232, %s234
      %p241 = scmp.eq.s32.totalorder %s46, 1
      %p242 = por %p240, %p241
      %p243 = scmp.ne.s32.totalorder %s234, %s235
      %p244 = scmp.eq.s32.totalorder %s46, 0
      %p245 = por %p243, %p244
      %p246 = scmp.ne.s32.totalorder %s234, %s235
      %p247 = scmp.eq.s32.totalorder %s47, 1
      %p248 = por %p246, %p247
      %p250 = scmp.ne.s32.totalorder %s235, %s249
      %p251 = scmp.eq.s32.totalorder %s47, 0
      %p252 = por %p250, %p251
      %s254 = sadd.s32 %s253, 1
      %p257 = scmp.eq.s32.totalorder %s41, 1
      %p258 = scmp.ne.s32.totalorder %s253, %s255
      %p259 = scmp.eq.s32.totalorder %s41, 0
      %p260 = por %p258, %p259
      %p261 = scmp.ne.s32.totalorder %s253, %s255
      %p262 = scmp.eq.s32.totalorder %s46, 1
      %p263 = por %p261, %p262
      %p264 = scmp.ne.s32.totalorder %s255, %s256
      %p265 = scmp.eq.s32.totalorder %s46, 0
      %p266 = por %p264, %p265
      %p267 = scmp.ne.s32.totalorder %s255, %s256
      %p268 = scmp.eq.s32.totalorder %s47, 1
      %p269 = por %p267, %p268
      %p271 = scmp.ne.s32.totalorder %s256, %s270
      %p272 = scmp.eq.s32.totalorder %s47, 0
      %p273 = por %p271, %p272
      %s275 = sadd.s32 %s274, 1
      %p278 = scmp.eq.s32.totalorder %s41, 1
      %p279 = scmp.ne.s32.totalorder %s274, %s276
      %p280 = scmp.eq.s32.totalorder %s41, 0
      %p281 = por %p279, %p280
      %p282 = scmp.ne.s32.totalorder %s274, %s276
      %p283 = scmp.eq.s32.totalorder %s46, 1
      %p284 = por %p282, %p283
      %p285 = scmp.ne.s32.totalorder %s276, %s277
      %p286 = scmp.eq.s32.totalorder %s46, 0
      %p287 = por %p285, %p286
      %p288 = scmp.ne.s32.totalorder %s276, %s277
      %p289 = scmp.eq.s32.totalorder %s47, 1
      %p290 = por %p288, %p289
      %p292 = scmp.ne.s32.totalorder %s277, %s291
      %p293 = scmp.eq.s32.totalorder %s47, 0
      %p294 = por %p292, %p293
      %s296 = sadd.s32 %s295, 1
      %p299 = scmp.eq.s32.totalorder %s41, 1
      %p300 = scmp.ne.s32.totalorder %s295, %s297
      %p301 = scmp.eq.s32.totalorder %s41, 0
      %p302 = por %p300, %p301
      %p303 = scmp.ne.s32.totalorder %s295, %s297
      %p304 = scmp.eq.s32.totalorder %s46, 1
      %p305 = por %p303, %p304
      %p306 = scmp.ne.s32.totalorder %s297, %s298
      %p307 = scmp.eq.s32.totalorder %s46, 0
      %p308 = por %p306, %p307
      %p309 = scmp.ne.s32.totalorder %s297, %s298
      %p310 = scmp.eq.s32.totalorder %s47, 1
      %p311 = por %p309, %p310
      %p313 = scmp.ne.s32.totalorder %s298, %s312
      %p314 = scmp.eq.s32.totalorder %s47, 0
      %p315 = por %p313, %p314
      %s317 = sadd.s32 %s316, 1
      %p320 = scmp.eq.s32.totalorder %s41, 1
      %p321 = scmp.ne.s32.totalorder %s316, %s318
      %p322 = scmp.eq.s32.totalorder %s41, 0
      %p323 = por %p321, %p322
      %p324 = scmp.ne.s32.totalorder %s316, %s318
      %p325 = scmp.eq.s32.totalorder %s46, 1
      %p326 = por %p324, %p325
      %p327 = scmp.ne.s32.totalorder %s318, %s319
      %p328 = scmp.eq.s32.totalorder %s46, 0
      %p329 = por %p327, %p328
      %p330 = scmp.ne.s32.totalorder %s318, %s319
      %p331 = scmp.eq.s32.totalorder %s47, 1
      %p332 = por %p330, %p331
      %p334 = scmp.ne.s32.totalorder %s319, %s333
      %p335 = scmp.eq.s32.totalorder %s47, 0
      %p336 = por %p334, %p335
      %s338 = sadd.s32 %s337, 1
      %p341 = scmp.eq.s32.totalorder %s41, 1
      %p342 = scmp.ne.s32.totalorder %s337, %s339
      %p343 = scmp.eq.s32.totalorder %s41, 0
      %p344 = por %p342, %p343
      %p345 = scmp.ne.s32.totalorder %s337, %s339
      %p346 = scmp.eq.s32.totalorder %s46, 1
      %p347 = por %p345, %p346
      %p348 = scmp.ne.s32.totalorder %s339, %s340
      %p349 = scmp.eq.s32.totalorder %s46, 0
      %p350 = por %p348, %p349
      %p351 = scmp.ne.s32.totalorder %s339, %s340
      %p352 = scmp.eq.s32.totalorder %s47, 1
      %p353 = por %p351, %p352
      %p355 = scmp.ne.s32.totalorder %s340, %s354
      %p356 = scmp.eq.s32.totalorder %s47, 0
      %p357 = por %p355, %p356
      %s359 = sadd.s32 %s358, 1
      %p362 = scmp.eq.s32.totalorder %s41, 1
      %p363 = scmp.ne.s32.totalorder %s358, %s360
      %p364 = scmp.eq.s32.totalorder %s41, 0
      %p365 = por %p363, %p364
      %p366 = scmp.ne.s32.totalorder %s358, %s360
      %p367 = scmp.eq.s32.totalorder %s46, 1
      %p368 = por %p366, %p367
      %p369 = scmp.ne.s32.totalorder %s360, %s361
      %p370 = scmp.eq.s32.totalorder %s46, 0
      %p371 = por %p369, %p370
      %p372 = scmp.ne.s32.totalorder %s360, %s361
      %p373 = scmp.eq.s32.totalorder %s47, 1
      %p374 = por %p372, %p373
      %p376 = scmp.ne.s32.totalorder %s361, %s375
      %p377 = scmp.eq.s32.totalorder %s47, 0
      %p378 = por %p376, %p377
      %s380 = sadd.s32 %s379, 1
      %p383 = scmp.eq.s32.totalorder %s41, 1
      %p384 = scmp.ne.s32.totalorder %s379, %s381
      %p385 = scmp.eq.s32.totalorder %s41, 0
      %p386 = por %p384, %p385
      %p387 = scmp.ne.s32.totalorder %s379, %s381
      %p388 = scmp.eq.s32.totalorder %s46, 1
      %p389 = por %p387, %p388
      %p390 = scmp.ne.s32.totalorder %s381, %s382
      %p391 = scmp.eq.s32.totalorder %s46, 0
      %p392 = por %p390, %p391
      %p393 = scmp.ne.s32.totalorder %s381, %s382
      %p394 = scmp.eq.s32.totalorder %s47, 1
      %p395 = por %p393, %p394
      %p397 = scmp.ne.s32.totalorder %s382, %s396
      %p398 = scmp.eq.s32.totalorder %s47, 0
      %p399 = por %p397, %p398
      %s401 = sadd.s32 %s400, 1
      %p404 = scmp.eq.s32.totalorder %s41, 1
      %p405 = scmp.ne.s32.totalorder %s400, %s402
      %p406 = scmp.eq.s32.totalorder %s41, 0
      %p407 = por %p405, %p406
      %p408 = scmp.ne.s32.totalorder %s400, %s402
      %p409 = scmp.eq.s32.totalorder %s46, 1
      %p410 = por %p408, %p409
      %p411 = scmp.ne.s32.totalorder %s402, %s403
      %p412 = scmp.eq.s32.totalorder %s46, 0
      %p413 = por %p411, %p412
      %p414 = scmp.ne.s32.totalorder %s402, %s403
      %p415 = scmp.eq.s32.totalorder %s47, 1
      %p416 = por %p414, %p415
      %p418 = scmp.ne.s32.totalorder %s403, %s417
      %p419 = scmp.eq.s32.totalorder %s47, 0
      %p420 = por %p418, %p419
      %s422 = sadd.s32 %s421, 1
      %p425 = scmp.eq.s32.totalorder %s41, 1
      %p426 = scmp.ne.s32.totalorder %s421, %s423
      %p427 = scmp.eq.s32.totalorder %s41, 0
      %p428 = por %p426, %p427
      %p429 = scmp.ne.s32.totalorder %s421, %s423
      %p430 = scmp.eq.s32.totalorder %s46, 1
      %p431 = por %p429, %p430
      %p432 = scmp.ne.s32.totalorder %s423, %s424
      %p433 = scmp.eq.s32.totalorder %s46, 0
      %p434 = por %p432, %p433
      %p435 = scmp.ne.s32.totalorder %s423, %s424
      %p436 = scmp.eq.s32.totalorder %s47, 1
      %p437 = por %p435, %p436
      %p439 = scmp.ne.s32.totalorder %s424, %s438
      %p440 = scmp.eq.s32.totalorder %s47, 0
      %p441 = por %p439, %p440
      %s443 = sadd.s32 %s442, 1
      %p446 = scmp.eq.s32.totalorder %s41, 1
      %p447 = scmp.ne.s32.totalorder %s442, %s444
      %p448 = scmp.eq.s32.totalorder %s41, 0
      %p449 = por %p447, %p448
      %p450 = scmp.ne.s32.totalorder %s442, %s444
      %p451 = scmp.eq.s32.totalorder %s46, 1
      %p452 = por %p450, %p451
      %p453 = scmp.ne.s32.totalorder %s444, %s445
      %p454 = scmp.eq.s32.totalorder %s46, 0
      %p455 = por %p453, %p454
      %p456 = scmp.ne.s32.totalorder %s444, %s445
      %p457 = scmp.eq.s32.totalorder %s47, 1
      %p458 = por %p456, %p457
      %p460 = scmp.ne.s32.totalorder %s445, %s459
      %p461 = scmp.eq.s32.totalorder %s47, 0
      %p462 = por %p460, %p461
      %s463 = ssub.s32 %s41, %s48
      %p464 = scmp.eq.s32.totalorder %s463, 0
      %s466 = sadd.s32 %s465, 1
      %s467 = scalar_select %p464, %s465, %s466
      %p470 = pneg %p464
      %p471 = scmp.eq.s32.totalorder %s41, 1
      %p472 = por %p470, %p471
      %p473 = scmp.ne.s32.totalorder %s465, %s468
      %p474 = scmp.eq.s32.totalorder %s41, 0
      %p475 = por %p473, %p474
      %p476 = scmp.ne.s32.totalorder %s465, %s468
      %p477 = scmp.eq.s32.totalorder %s46, 1
      %p478 = por %p476, %p477
      %p479 = scmp.ne.s32.totalorder %s468, %s469
      %p480 = scmp.eq.s32.totalorder %s46, 0
      %p481 = por %p479, %p480
      %p482 = scmp.ne.s32.totalorder %s468, %s469
      %p483 = scmp.eq.s32.totalorder %s47, 1
      %p484 = por %p482, %p483
      %p486 = scmp.ne.s32.totalorder %s469, %s485
      %p487 = scmp.eq.s32.totalorder %s47, 0
      %p488 = por %p486, %p487
      %p489 = scmp.le.s32.totalorder 1, %s41
      %p490 = scmp.lt.s32.totalorder %s41, 3
      %p491 = pnand %p489, %p490
      %p492 = pneg %p491
      // Predicated region
      $region9: #{tpu_custom_call.1} parent=5 // pred_check
        _
      $region10: #{tpu_custom_call.1} parent=5 // pred_check_branch
        %494 = sbr.rel (%p491) target = $region12
      $region11: #{tpu_custom_call.1} parent=5 // pred_region
        %s495 = ssub.s32 %s41, 1
        // Predicated region
        $region13: #{tpu_custom_call.1} parent=11 // pred_check
          %p496 = pneg %p140
        $region14: #{tpu_custom_call.1} parent=11 // pred_check_branch
          %498 = sbr.rel (%p496) target = $region16
        $region15: #{tpu_custom_call.1} parent=11 // pred_region
          %s500 = ssub.s32 1024, 1024
          %501 = vsyncadd [#allocation9], %s500
          %s502 = sshll.u32 [#allocation8], 4
          %s503 = int_to_ptr.vmem [resolvable:$true] %s502
          %508 = dma.hbm_to_vmem [thread:$0]  %s3, 1024, %s503, [#allocation9], 64, 64, 4
        $region16: #{tpu_custom_call.1} parent=11 // pred_fallthru
          _
        // Predicated region
        $region17: #{tpu_custom_call.1} parent=11 // pred_check
          %p509 = pneg %p161
        $region18: #{tpu_custom_call.1} parent=11 // pred_check_branch
          %511 = sbr.rel (%p509) target = $region20
        $region19: #{tpu_custom_call.1} parent=11 // pred_region
          %s513 = ssub.s32 16, 16
          %514 = vsyncadd [#allocation9], %s513
          %s516 = sshll.u32 [#allocation10], 4
          %s517 = int_to_ptr.vmem [resolvable:$true] %s516
          %519 = dma.hbm_to_vmem [thread:$0]  %s4, 16, %s517, [#allocation9]
        $region20: #{tpu_custom_call.1} parent=11 // pred_fallthru
          _
        // Predicated region
        $region21: #{tpu_custom_call.1} parent=11 // pred_check
          %p520 = pneg %p182
        $region22: #{tpu_custom_call.1} parent=11 // pred_check_branch
          %522 = sbr.rel (%p520) target = $region24
        $region23: #{tpu_custom_call.1} parent=11 // pred_region
          %s524 = ssub.s32 1024, 1024
          %525 = vsyncadd [#allocation12], %s524
          %s526 = sshll.u32 [#allocation11], 4
          %s527 = int_to_ptr.vmem [resolvable:$true] %s526
          %532 = dma.hbm_to_vmem [thread:$0]  %s5, 1024, %s527, [#allocation12], 64, 64, 4
        $region24: #{tpu_custom_call.1} parent=11 // pred_fallthru
          _
        // Predicated region
        $region25: #{tpu_custom_call.1} parent=11 // pred_check
          %p533 = pneg %p203
        $region26: #{tpu_custom_call.1} parent=11 // pred_check_branch
          %535 = sbr.rel (%p533) target = $region28
        $region27: #{tpu_custom_call.1} parent=11 // pred_region
          %s537 = ssub.s32 16, 16
          %538 = vsyncadd [#allocation12], %s537
          %s540 = sshll.u32 [#allocation13], 4
          %s541 = int_to_ptr.vmem [resolvable:$true] %s540
          %543 = dma.hbm_to_vmem [thread:$0]  %s6, 16, %s541, [#allocation12]
        $region28: #{tpu_custom_call.1} parent=11 // pred_fallthru
          _
        // Predicated region
        $region29: #{tpu_custom_call.1} parent=11 // pred_check
          %p544 = pneg %p224
        $region30: #{tpu_custom_call.1} parent=11 // pred_check_branch
          %546 = sbr.rel (%p544) target = $region32
        $region31: #{tpu_custom_call.1} parent=11 // pred_region
          %s548 = ssub.s32 1024, 1024
          %549 = vsyncadd [#allocation15], %s548
          %s550 = sshll.u32 [#allocation14], 4
          %s551 = int_to_ptr.vmem [resolvable:$true] %s550
          %556 = dma.hbm_to_vmem [thread:$0]  %s7, 1024, %s551, [#allocation15], 64, 64, 4
        $region32: #{tpu_custom_call.1} parent=11 // pred_fallthru
          _
        // Predicated region
        $region33: #{tpu_custom_call.1} parent=11 // pred_check
          %p557 = pneg %p245
        $region34: #{tpu_custom_call.1} parent=11 // pred_check_branch
          %559 = sbr.rel (%p557) target = $region36
        $region35: #{tpu_custom_call.1} parent=11 // pred_region
          %s561 = ssub.s32 16, 16
          %562 = vsyncadd [#allocation15], %s561
          %s564 = sshll.u32 [#allocation16], 4
          %s565 = int_to_ptr.vmem [resolvable:$true] %s564
          %567 = dma.hbm_to_vmem [thread:$0]  %s8, 16, %s565, [#allocation15]
        $region36: #{tpu_custom_call.1} parent=11 // pred_fallthru
          _
        // Predicated region
        $region37: #{tpu_custom_call.1} parent=11 // pred_check
          %p568 = pneg %p266
        $region38: #{tpu_custom_call.1} parent=11 // pred_check_branch
          %570 = sbr.rel (%p568) target = $region40
        $region39: #{tpu_custom_call.1} parent=11 // pred_region
          %s572 = ssub.s32 1024, 1024
          %573 = vsyncadd [#allocation18], %s572
          %s574 = sshll.u32 [#allocation17], 4
          %s575 = int_to_ptr.vmem [resolvable:$true] %s574
          %580 = dma.hbm_to_vmem [thread:$0]  %s9, 1024, %s575, [#allocation18], 64, 64, 4
        $region40: #{tpu_custom_call.1} parent=11 // pred_fallthru
          _
        // Predicated region
        $region41: #{tpu_custom_call.1} parent=11 // pred_check
          %p581 = pneg %p287
        $region42: #{tpu_custom_call.1} parent=11 // pred_check_branch
          %583 = sbr.rel (%p581) target = $region44
        $region43: #{tpu_custom_call.1} parent=11 // pred_region
          %s585 = ssub.s32 16, 16
          %586 = vsyncadd [#allocation18], %s585
          %s588 = sshll.u32 [#allocation19], 4
          %s589 = int_to_ptr.vmem [resolvable:$true] %s588
          %591 = dma.hbm_to_vmem [thread:$0]  %s10, 16, %s589, [#allocation18]
        $region44: #{tpu_custom_call.1} parent=11 // pred_fallthru
          _
        // Predicated region
        $region45: #{tpu_custom_call.1} parent=11 // pred_check
          %p592 = pneg %p308
        $region46: #{tpu_custom_call.1} parent=11 // pred_check_branch
          %594 = sbr.rel (%p592) target = $region48
        $region47: #{tpu_custom_call.1} parent=11 // pred_region
          %s596 = ssub.s32 16, 16
          %597 = vsyncadd [#allocation21], %s596
          %s599 = sshll.u32 [#allocation20], 4
          %s600 = int_to_ptr.vmem [resolvable:$true] %s599
          %602 = dma.hbm_to_vmem [thread:$0]  %s11, 16, %s600, [#allocation21]
        $region48: #{tpu_custom_call.1} parent=11 // pred_fallthru
          _
        // Predicated region
        $region49: #{tpu_custom_call.1} parent=11 // pred_check
          %p603 = pneg %p329
        $region50: #{tpu_custom_call.1} parent=11 // pred_check_branch
          %605 = sbr.rel (%p603) target = $region52
        $region51: #{tpu_custom_call.1} parent=11 // pred_region
          %s607 = ssub.s32 16, 16
          %608 = vsyncadd [#allocation21], %s607
          %s610 = sshll.u32 [#allocation22], 4
          %s611 = int_to_ptr.vmem [resolvable:$true] %s610
          %613 = dma.hbm_to_vmem [thread:$0]  %s12, 16, %s611, [#allocation21]
        $region52: #{tpu_custom_call.1} parent=11 // pred_fallthru
          _
        // Predicated region
        $region53: #{tpu_custom_call.1} parent=11 // pred_check
          %p614 = pneg %p350
        $region54: #{tpu_custom_call.1} parent=11 // pred_check_branch
          %616 = sbr.rel (%p614) target = $region56
        $region55: #{tpu_custom_call.1} parent=11 // pred_region
          %s618 = ssub.s32 4096, 4096
          %619 = vsyncadd [#allocation24], %s618
          %s620 = sshll.u32 [#allocation23], 4
          %s621 = int_to_ptr.vmem [resolvable:$true] %s620
          %626 = dma.hbm_to_vmem [thread:$0]  %s13, 4096, %s621, [#allocation24], 64, 64, 4
        $region56: #{tpu_custom_call.1} parent=11 // pred_fallthru
          _
        // Predicated region
        $region57: #{tpu_custom_call.1} parent=11 // pred_check
          %p627 = pneg %p371
        $region58: #{tpu_custom_call.1} parent=11 // pred_check_branch
          %629 = sbr.rel (%p627) target = $region60
        $region59: #{tpu_custom_call.1} parent=11 // pred_region
          %s631 = ssub.s32 64, 64
          %632 = vsyncadd [#allocation24], %s631
          %s633 = sshll.u32 [#allocation25], 4
          %s634 = int_to_ptr.vmem [resolvable:$true] %s633
          %639 = dma.hbm_to_vmem [thread:$0]  %s14, 64, %s634, [#allocation24], 16, 16, 1
        $region60: #{tpu_custom_call.1} parent=11 // pred_fallthru
          _
        // Predicated region
        $region61: #{tpu_custom_call.1} parent=11 // pred_check
          %p640 = pneg %p392
        $region62: #{tpu_custom_call.1} parent=11 // pred_check_branch
          %642 = sbr.rel (%p640) target = $region64
        $region63: #{tpu_custom_call.1} parent=11 // pred_region
          %s644 = ssub.s32 64, 64
          %645 = vsyncadd [#allocation27], %s644
          %s646 = sshll.u32 [#allocation26], 4
          %s647 = int_to_ptr.vmem [resolvable:$true] %s646
          %652 = dma.hbm_to_vmem [thread:$0]  %s15, 64, %s647, [#allocation27], 16, 16, 1
        $region64: #{tpu_custom_call.1} parent=11 // pred_fallthru
          _
        // Predicated region
        $region65: #{tpu_custom_call.1} parent=11 // pred_check
          %p653 = pneg %p413
        $region66: #{tpu_custom_call.1} parent=11 // pred_check_branch
          %655 = sbr.rel (%p653) target = $region68
        $region67: #{tpu_custom_call.1} parent=11 // pred_region
          %s657 = ssub.s32 64, 64
          %658 = vsyncadd [#allocation27], %s657
          %s659 = sshll.u32 [#allocation28], 4
          %s660 = int_to_ptr.vmem [resolvable:$true] %s659
          %665 = dma.hbm_to_vmem [thread:$0]  %s16, 64, %s660, [#allocation27], 16, 16, 1
        $region68: #{tpu_custom_call.1} parent=11 // pred_fallthru
          _
        // Predicated region
        $region69: #{tpu_custom_call.1} parent=11 // pred_check
          %p666 = pneg %p434
        $region70: #{tpu_custom_call.1} parent=11 // pred_check_branch
          %668 = sbr.rel (%p666) target = $region72
        $region71: #{tpu_custom_call.1} parent=11 // pred_region
          _
        $region72: #{tpu_custom_call.1} parent=11 // pred_fallthru
          _
        // Predicated region
        $region73: #{tpu_custom_call.1} parent=11 // pred_check
          %p669 = pneg %p455
        $region74: #{tpu_custom_call.1} parent=11 // pred_check_branch
          %671 = sbr.rel (%p669) target = $region76
        $region75: #{tpu_custom_call.1} parent=11 // pred_region
          _
        $region76: #{tpu_custom_call.1} parent=11 // pred_fallthru
          _
      $region12: #{tpu_custom_call.1} parent=5 // pred_fallthru
        _
      %p672 = scmp.lt.s32.totalorder %s41, 2
      // Predicated region
      $region77: #{tpu_custom_call.1} parent=5 // pred_check
        %p673 = pneg %p672
      $region78: #{tpu_custom_call.1} parent=5 // pred_check_branch
        %675 = sbr.rel (%p673) target = $region80
      $region79: #{tpu_custom_call.1} parent=5 // pred_region
        // Predicated region
        $region81: #{tpu_custom_call.1} parent=79 // pred_check
          %p676 = pneg %p61
        $region82: #{tpu_custom_call.1} parent=79 // pred_check_branch
          %678 = sbr.rel (%p676) target = $region84
        $region83: #{tpu_custom_call.1} parent=79 // pred_region
          %s679 = sand.u32 %s51, 1
          %s680 = scalar_lea.sflag [#allocation3], %s679
          %s681 = sand.u32 %s51, 1
          %s682 = smul.addr %s681, 128
          %s683 = scalar_lea.vmem [#allocation2], %s682
          %s684 = smul.u32 16, %s41
          %s686 = ssub.s32 2048, 2048
          %687 = vsyncadd %s680, %s686
          %s688 = smul.addr %s684, 128
          %s689 = scalar_lea.hbm %s0, %s688
          %s690 = sshll.u32 %s683, 4
          %s691 = int_to_ptr.vmem [resolvable:$true] %s690
          %696 = dma.hbm_to_vmem [thread:$0]  %s689, 2048, %s691, %s680, 128, 128, 8
        $region84: #{tpu_custom_call.1} parent=79 // pred_fallthru
          _
        // Predicated region
        $region85: #{tpu_custom_call.1} parent=79 // pred_check
          %p697 = pneg %p87
        $region86: #{tpu_custom_call.1} parent=79 // pred_check_branch
          %699 = sbr.rel (%p697) target = $region88
        $region87: #{tpu_custom_call.1} parent=79 // pred_region
          %s700 = sand.u32 %s41, 1
          %s701 = scalar_lea.sflag [#allocation6], %s700
          %s702 = sand.u32 %s77, 1
          %s703 = smul.addr %s702, 128
          %s704 = scalar_lea.vmem [#allocation5], %s703
          %s705 = smul.u32 16, %s41
          %s707 = ssub.s32 2048, 2048
          %708 = vsyncadd %s701, %s707
          %s709 = smul.addr %s705, 128
          %s710 = scalar_lea.hbm %s1, %s709
          %s711 = sshll.u32 %s704, 4
          %s712 = int_to_ptr.vmem [resolvable:$true] %s711
          %717 = dma.hbm_to_vmem [thread:$0]  %s710, 2048, %s712, %s701, 128, 128, 8
        $region88: #{tpu_custom_call.1} parent=79 // pred_fallthru
          _
        // Predicated region
        $region89: #{tpu_custom_call.1} parent=79 // pred_check
          %p718 = pneg %p113
        $region90: #{tpu_custom_call.1} parent=79 // pred_check_branch
          %720 = sbr.rel (%p718) target = $region92
        $region91: #{tpu_custom_call.1} parent=79 // pred_region
          %s721 = sand.u32 %s41, 1
          %s722 = scalar_lea.sflag [#allocation6], %s721
          %s723 = sand.u32 %s103, 1
          %s724 = smul.addr %s723, 128
          %s725 = scalar_lea.vmem [#allocation7], %s724
          %s726 = smul.u32 16, %s41
          %s728 = ssub.s32 2048, 2048
          %729 = vsyncadd %s722, %s728
          %s730 = smul.addr %s726, 128
          %s731 = scalar_lea.hbm %s2, %s730
          %s732 = sshll.u32 %s725, 4
          %s733 = int_to_ptr.vmem [resolvable:$true] %s732
          %738 = dma.hbm_to_vmem [thread:$0]  %s731, 2048, %s733, %s722, 128, 128, 8
        $region92: #{tpu_custom_call.1} parent=79 // pred_fallthru
          _
      $region80: #{tpu_custom_call.1} parent=5 // pred_fallthru
        _
      %p739 = scmp.le.s32.totalorder 1, %s41
      %p740 = scmp.lt.s32.totalorder %s41, 3
      %p741 = pnand %p739, %p740
      %p742 = pneg %p741
      // Predicated region
      $region93: #{tpu_custom_call.1} parent=5 // pred_check
        _
      $region94: #{tpu_custom_call.1} parent=5 // pred_check_branch
        %744 = sbr.rel (%p741) target = $region96
      $region95: #{tpu_custom_call.1} parent=5 // pred_region
        %s745 = ssub.s32 %s41, 1
        %s746 = sand.u32 %s54, 1
        %s747 = scalar_lea.sflag [#allocation3], %s746
        %s748 = sand.u32 %s54, 1
        %s749 = smul.addr %s748, 128
        %s750 = scalar_lea.vmem [#allocation2], %s749
        // Predicated region
        $region97: #{tpu_custom_call.1} parent=95 // pred_check
          %p751 = pneg %p67
        $region98: #{tpu_custom_call.1} parent=95 // pred_check_branch
          %753 = sbr.rel (%p751) target = $region100
        $region99: #{tpu_custom_call.1} parent=95 // pred_region
          %754 = dma.done %s747, 2048
        $region100: #{tpu_custom_call.1} parent=95 // pred_fallthru
          _
        %s755 = sand.u32 %s46, 1
        %s756 = scalar_lea.sflag [#allocation6], %s755
        %s757 = sand.u32 %s80, 1
        %s758 = smul.addr %s757, 128
        %s759 = scalar_lea.vmem [#allocation5], %s758
        // Predicated region
        $region101: #{tpu_custom_call.1} parent=95 // pred_check
          %p760 = pneg %p93
        $region102: #{tpu_custom_call.1} parent=95 // pred_check_branch
          %762 = sbr.rel (%p760) target = $region104
        $region103: #{tpu_custom_call.1} parent=95 // pred_region
          %763 = dma.done %s756, 2048
        $region104: #{tpu_custom_call.1} parent=95 // pred_fallthru
          _
        %s764 = sand.u32 %s46, 1
        %s765 = scalar_lea.sflag [#allocation6], %s764
        %s766 = sand.u32 %s106, 1
        %s767 = smul.addr %s766, 128
        %s768 = scalar_lea.vmem [#allocation7], %s767
        // Predicated region
        $region105: #{tpu_custom_call.1} parent=95 // pred_check
          %p769 = pneg %p119
        $region106: #{tpu_custom_call.1} parent=95 // pred_check_branch
          %771 = sbr.rel (%p769) target = $region108
        $region107: #{tpu_custom_call.1} parent=95 // pred_region
          %772 = dma.done %s765, 2048
        $region108: #{tpu_custom_call.1} parent=95 // pred_fallthru
          _
        // Predicated region
        $region109: #{tpu_custom_call.1} parent=95 // pred_check
          %p773 = pneg %p140
        $region110: #{tpu_custom_call.1} parent=95 // pred_check_branch
          %775 = sbr.rel (%p773) target = $region112
        $region111: #{tpu_custom_call.1} parent=95 // pred_region
          %776 = dma.done [#allocation9], 1024
        $region112: #{tpu_custom_call.1} parent=95 // pred_fallthru
          _
        // Predicated region
        $region113: #{tpu_custom_call.1} parent=95 // pred_check
          %p777 = pneg %p161
        $region114: #{tpu_custom_call.1} parent=95 // pred_check_branch
          %779 = sbr.rel (%p777) target = $region116
        $region115: #{tpu_custom_call.1} parent=95 // pred_region
          %780 = dma.done [#allocation9], 16
        $region116: #{tpu_custom_call.1} parent=95 // pred_fallthru
          _
        // Predicated region
        $region117: #{tpu_custom_call.1} parent=95 // pred_check
          %p781 = pneg %p182
        $region118: #{tpu_custom_call.1} parent=95 // pred_check_branch
          %783 = sbr.rel (%p781) target = $region120
        $region119: #{tpu_custom_call.1} parent=95 // pred_region
          %784 = dma.done [#allocation12], 1024
        $region120: #{tpu_custom_call.1} parent=95 // pred_fallthru
          _
        // Predicated region
        $region121: #{tpu_custom_call.1} parent=95 // pred_check
          %p785 = pneg %p203
        $region122: #{tpu_custom_call.1} parent=95 // pred_check_branch
          %787 = sbr.rel (%p785) target = $region124
        $region123: #{tpu_custom_call.1} parent=95 // pred_region
          %788 = dma.done [#allocation12], 16
        $region124: #{tpu_custom_call.1} parent=95 // pred_fallthru
          _
        // Predicated region
        $region125: #{tpu_custom_call.1} parent=95 // pred_check
          %p789 = pneg %p224
        $region126: #{tpu_custom_call.1} parent=95 // pred_check_branch
          %791 = sbr.rel (%p789) target = $region128
        $region127: #{tpu_custom_call.1} parent=95 // pred_region
          %792 = dma.done [#allocation15], 1024
        $region128: #{tpu_custom_call.1} parent=95 // pred_fallthru
          _
        // Predicated region
        $region129: #{tpu_custom_call.1} parent=95 // pred_check
          %p793 = pneg %p245
        $region130: #{tpu_custom_call.1} parent=95 // pred_check_branch
          %795 = sbr.rel (%p793) target = $region132
        $region131: #{tpu_custom_call.1} parent=95 // pred_region
          %796 = dma.done [#allocation15], 16
        $region132: #{tpu_custom_call.1} parent=95 // pred_fallthru
          _
        // Predicated region
        $region133: #{tpu_custom_call.1} parent=95 // pred_check
          %p797 = pneg %p266
        $region134: #{tpu_custom_call.1} parent=95 // pred_check_branch
          %799 = sbr.rel (%p797) target = $region136
        $region135: #{tpu_custom_call.1} parent=95 // pred_region
          %800 = dma.done [#allocation18], 1024
        $region136: #{tpu_custom_call.1} parent=95 // pred_fallthru
          _
        // Predicated region
        $region137: #{tpu_custom_call.1} parent=95 // pred_check
          %p801 = pneg %p287
        $region138: #{tpu_custom_call.1} parent=95 // pred_check_branch
          %803 = sbr.rel (%p801) target = $region140
        $region139: #{tpu_custom_call.1} parent=95 // pred_region
          %804 = dma.done [#allocation18], 16
        $region140: #{tpu_custom_call.1} parent=95 // pred_fallthru
          _
        // Predicated region
        $region141: #{tpu_custom_call.1} parent=95 // pred_check
          %p805 = pneg %p308
        $region142: #{tpu_custom_call.1} parent=95 // pred_check_branch
          %807 = sbr.rel (%p805) target = $region144
        $region143: #{tpu_custom_call.1} parent=95 // pred_region
          %808 = dma.done [#allocation21], 16
        $region144: #{tpu_custom_call.1} parent=95 // pred_fallthru
          _
        // Predicated region
        $region145: #{tpu_custom_call.1} parent=95 // pred_check
          %p809 = pneg %p329
        $region146: #{tpu_custom_call.1} parent=95 // pred_check_branch
          %811 = sbr.rel (%p809) target = $region148
        $region147: #{tpu_custom_call.1} parent=95 // pred_region
          %812 = dma.done [#allocation21], 16
        $region148: #{tpu_custom_call.1} parent=95 // pred_fallthru
          _
        // Predicated region
        $region149: #{tpu_custom_call.1} parent=95 // pred_check
          %p813 = pneg %p350
        $region150: #{tpu_custom_call.1} parent=95 // pred_check_branch
          %815 = sbr.rel (%p813) target = $region152
        $region151: #{tpu_custom_call.1} parent=95 // pred_region
          %816 = dma.done [#allocation24], 4096
        $region152: #{tpu_custom_call.1} parent=95 // pred_fallthru
          _
        // Predicated region
        $region153: #{tpu_custom_call.1} parent=95 // pred_check
          %p817 = pneg %p371
        $region154: #{tpu_custom_call.1} parent=95 // pred_check_branch
          %819 = sbr.rel (%p817) target = $region156
        $region155: #{tpu_custom_call.1} parent=95 // pred_region
          %820 = dma.done [#allocation24], 64
        $region156: #{tpu_custom_call.1} parent=95 // pred_fallthru
          _
        // Predicated region
        $region157: #{tpu_custom_call.1} parent=95 // pred_check
          %p821 = pneg %p392
        $region158: #{tpu_custom_call.1} parent=95 // pred_check_branch
          %823 = sbr.rel (%p821) target = $region160
        $region159: #{tpu_custom_call.1} parent=95 // pred_region
          %824 = dma.done [#allocation27], 64
        $region160: #{tpu_custom_call.1} parent=95 // pred_fallthru
          _
        // Predicated region
        $region161: #{tpu_custom_call.1} parent=95 // pred_check
          %p825 = pneg %p413
        $region162: #{tpu_custom_call.1} parent=95 // pred_check_branch
          %827 = sbr.rel (%p825) target = $region164
        $region163: #{tpu_custom_call.1} parent=95 // pred_region
          %828 = dma.done [#allocation27], 64
        $region164: #{tpu_custom_call.1} parent=95 // pred_fallthru
          _
        %s829 = sand.u32 %s54, 1
        %s830 = scalar_lea.sflag [#allocation3], %s829
        %s831 = sand.u32 %s54, 1
        %s832 = smul.addr %s831, 128
        %s833 = scalar_lea.vmem [#allocation2], %s832
        %p834 = pneg %p67
        %p835 = pneg %p64
        %s836 = sand.u32 %s46, 1
        %s837 = scalar_lea.sflag [#allocation6], %s836
        %s838 = sand.u32 %s80, 1
        %s839 = smul.addr %s838, 128
        %s840 = scalar_lea.vmem [#allocation5], %s839
        %p841 = pneg %p93
        %p842 = pneg %p90
        %s843 = sand.u32 %s46, 1
        %s844 = scalar_lea.sflag [#allocation6], %s843
        %s845 = sand.u32 %s106, 1
        %s846 = smul.addr %s845, 128
        %s847 = scalar_lea.vmem [#allocation7], %s846
        %p848 = pneg %p119
        %p849 = pneg %p116
        %p850 = pneg %p140
        %p851 = pneg %p137
        %p852 = pneg %p161
        %p853 = pneg %p158
        %p854 = pneg %p182
        %p855 = pneg %p179
        %p856 = pneg %p203
        %p857 = pneg %p200
        %p858 = pneg %p224
        %p859 = pneg %p221
        %p860 = pneg %p245
        %p861 = pneg %p242
        %p862 = pneg %p266
        %p863 = pneg %p263
        %p864 = pneg %p287
        %p865 = pneg %p284
        %p866 = pneg %p308
        %p867 = pneg %p305
        %p868 = pneg %p329
        %p869 = pneg %p326
        %p870 = pneg %p350
        %p871 = pneg %p347
        %p872 = pneg %p371
        %p873 = pneg %p368
        %p874 = pneg %p392
        %p875 = pneg %p389
        %p876 = pneg %p413
        %p877 = pneg %p410
        %p878 = pneg %p434
        %p879 = pneg %p431
        %p880 = pneg %p455
        %p881 = pneg %p452
        %p882 = pneg %p481
        %p883 = pneg %p478
        %s884 = sand.u32 %s468, 1
        %s885 = scalar_lea.sflag [#allocation4], %s884
        %s886 = sand.u32 %s468, 1
        %s887 = smul.addr %s886, 128
        %s888 = scalar_lea.vmem [#allocation29], %s887
        %s889 = smul.u32 16, %s46
        %s890 = smul.u32 16, %s46
        %s891 = smul.u32 16, %s46
        %s892 = smul.u32 16, %s46
        %v894 = vld [vmem:[%s759] sm:$0xff]
        %v895 = vld [vmem:[%s759 + $0x8] sm:$0xff]
        %v896 = vld [vmem:[%s759 + $0x10] sm:$0xff]
        %v897 = vld [vmem:[%s759 + $0x18] sm:$0xff]
        %v898 = vld [vmem:[%s759 + $0x20] sm:$0xff]
        %v899 = vld [vmem:[%s759 + $0x28] sm:$0xff]
        %v900 = vld [vmem:[%s759 + $0x30] sm:$0xff]
        %v901 = vld [vmem:[%s759 + $0x38] sm:$0xff]
        %v902 = vld [vmem:[%s759 + $0x40] sm:$0xff]
        %v903 = vld [vmem:[%s759 + $0x48] sm:$0xff]
        %v904 = vld [vmem:[%s759 + $0x50] sm:$0xff]
        %v905 = vld [vmem:[%s759 + $0x58] sm:$0xff]
        %v906 = vld [vmem:[%s759 + $0x60] sm:$0xff]
        %v907 = vld [vmem:[%s759 + $0x68] sm:$0xff]
        %v908 = vld [vmem:[%s759 + $0x70] sm:$0xff]
        %v909 = vld [vmem:[%s759 + $0x78] sm:$0xff]
        %v910 = vld [vmem:[#allocation8] sm:$0xf]
        %v911 = vld [vmem:[#allocation8 + $0x4] sm:$0xf]
        %v912 = vld [vmem:[#allocation8 + $0x8] sm:$0xf]
        %v913 = vld [vmem:[#allocation8 + $0xc] sm:$0xf]
        %v914 = vld [vmem:[#allocation8 + $0x10] sm:$0xf]
        %v915 = vld [vmem:[#allocation8 + $0x14] sm:$0xf]
        %v916 = vld [vmem:[#allocation8 + $0x18] sm:$0xf]
        %v917 = vld [vmem:[#allocation8 + $0x1c] sm:$0xf]
        %v918 = vld [vmem:[#allocation8 + $0x20] sm:$0xf]
        %v919 = vld [vmem:[#allocation8 + $0x24] sm:$0xf]
        %v920 = vld [vmem:[#allocation8 + $0x28] sm:$0xf]
        %v921 = vld [vmem:[#allocation8 + $0x2c] sm:$0xf]
        %v922 = vld [vmem:[#allocation8 + $0x30] sm:$0xf]
        %v923 = vld [vmem:[#allocation8 + $0x34] sm:$0xf]
        %v924 = vld [vmem:[#allocation8 + $0x38] sm:$0xf]
        %v925 = vld [vmem:[#allocation8 + $0x3c] sm:$0xf]
        %v926 = vld [vmem:[#allocation10] sm:$0x1]
        %v927 = vpack.c.bf16 %v895, %v894
        %v928 = vpack.c.bf16 %v897, %v896
        %v929 = vpack.c.bf16 %v899, %v898
        %v930 = vpack.c.bf16 %v901, %v900
        %v931 = vpack.c.bf16 %v903, %v902
        %v932 = vpack.c.bf16 %v905, %v904
        %v933 = vpack.c.bf16 %v907, %v906
        %v934 = vpack.c.bf16 %v909, %v908
        %v936 = vlaneseq
        %v937 = vshrl.u32 %v936, 7
        %v938 = vsub.s32 0, %v937
        %v939 = vrot.slane %v926, %v938
        %v957 = vunpack.c.l.b16 %v910
        %v958 = vunpack.c.l.b16 %v911
        %v959 = vunpack.c.l.b16 %v912
        %v960 = vunpack.c.l.b16 %v913
        %v961 = vunpack.c.l.b16 %v914
        %v962 = vunpack.c.l.b16 %v915
        %v963 = vunpack.c.l.b16 %v916
        %v964 = vunpack.c.l.b16 %v917
        %v965 = vunpack.c.l.b16 %v918
        %v966 = vunpack.c.l.b16 %v919
        %v967 = vunpack.c.l.b16 %v920
        %v968 = vunpack.c.l.b16 %v921
        %v969 = vunpack.c.l.b16 %v922
        %v970 = vunpack.c.l.b16 %v923
        %v971 = vunpack.c.l.b16 %v924
        %v972 = vunpack.c.l.b16 %v925
        %v973 = vpack.c.b16 %v958, %v957
        %v974 = vpack.c.b16 %v960, %v959
        %v975 = vpack.c.b16 %v962, %v961
        %v976 = vpack.c.b16 %v964, %v963
        %v977 = vpack.c.b16 %v966, %v965
        %v978 = vpack.c.b16 %v968, %v967
        %v979 = vpack.c.b16 %v970, %v969
        %v980 = vpack.c.b16 %v972, %v971
        %989 = vmatprep.subr.bf16.mxu0 0
        %990 = vmatpush1.bf16.msra.mxu0 %v973
        %991 = vmatprep.subr.bf16.mxu0 0
        %992 = vmatpush1.bf16.msra.mxu0 %v974
        %993 = vmatprep.subr.bf16.mxu0 0
        %994 = vmatpush1.bf16.msra.mxu0 %v975
        %995 = vmatprep.subr.bf16.mxu0 0
        %996 = vmatpush1.bf16.msra.mxu0 %v976
        %997 = vmatprep.subr.bf16.mxu0 0
        %998 = vmatpush1.bf16.msra.mxu0 %v977
        %999 = vmatprep.subr.bf16.mxu0 0
        %1000 = vmatpush1.bf16.msra.mxu0 %v978
        %1001 = vmatprep.subr.bf16.mxu0 0
        %1002 = vmatpush1.bf16.msra.mxu0 %v979
        %1003 = vmatprep.subr.bf16.mxu0 0
        %1004 = vmatpush1.bf16.msra.mxu0 %v980
        %1005 = vmatprep.subr.bf16.mxu0 0
        %1006 = vmatpush1.bf16.msra.mxu0 0
        %1007 = vmatprep.subr.bf16.mxu0 0
        %1008 = vmatpush1.bf16.msra.mxu0 0
        %1009 = vmatprep.subr.bf16.mxu0 0
        %1010 = vmatpush1.bf16.msra.mxu0 0
        %1011 = vmatprep.subr.bf16.mxu0 0
        %1012 = vmatpush1.bf16.msra.mxu0 0
        %1013 = vmatprep.subr.bf16.mxu0 0
        %1014 = vmatpush1.bf16.msra.mxu0 0
        %1015 = vmatprep.subr.bf16.mxu0 0
        %1016 = vmatpush1.bf16.msra.mxu0 0
        %1017 = vmatprep.subr.bf16.mxu0 0
        %1018 = vmatpush1.bf16.msra.mxu0 0
        %1019 = vmatprep.subr.bf16.mxu0 0
        %1020 = vmatpush1.bf16.msra.mxu0 0
        %1021 = vmatprep.mubr.bf16.mxu0 0
        %1022 = vmatmul.mubr.bf16.gmra.mrb[0].mxu0 %v927
        %v1023 = vpop.f32.mrb[0].mxu0
        %v1024 = vadd.f32 %v939, %v1023
        %v1025 = vpop.f32.mrb[0].mxu0
        %v1026 = vpop.f32.mrb[0].mxu0
        %v1027 = vadd.f32 %v939, %v1026
        %v1028 = vpop.f32.mrb[0].mxu0
        %1029 = vmatprep.mubr.bf16.mxu0 0
        %1030 = vmatmul.mubr.bf16.gmra.mrb[0].mxu0 %v928
        %v1031 = vpop.f32.mrb[0].mxu0
        %v1032 = vadd.f32 %v939, %v1031
        %v1033 = vpop.f32.mrb[0].mxu0
        %v1034 = vpop.f32.mrb[0].mxu0
        %v1035 = vadd.f32 %v939, %v1034
        %v1036 = vpop.f32.mrb[0].mxu0
        %1037 = vmatprep.mubr.bf16.mxu0 0
        %1038 = vmatmul.mubr.bf16.gmra.mrb[0].mxu0 %v929
        %v1039 = vpop.f32.mrb[0].mxu0
        %v1040 = vadd.f32 %v939, %v1039
        %v1041 = vpop.f32.mrb[0].mxu0
        %v1042 = vpop.f32.mrb[0].mxu0
        %v1043 = vadd.f32 %v939, %v1042
        %v1044 = vpop.f32.mrb[0].mxu0
        %1045 = vmatprep.mubr.bf16.mxu0 0
        %1046 = vmatmul.mubr.bf16.gmra.mrb[0].mxu0 %v930
        %v1047 = vpop.f32.mrb[0].mxu0
        %v1048 = vadd.f32 %v939, %v1047
        %v1049 = vpop.f32.mrb[0].mxu0
        %v1050 = vpop.f32.mrb[0].mxu0
        %v1051 = vadd.f32 %v939, %v1050
        %v1052 = vpop.f32.mrb[0].mxu0
        %1053 = vmatprep.mubr.bf16.mxu0 0
        %1054 = vmatmul.mubr.bf16.gmra.mrb[0].mxu0 %v931
        %v1055 = vpop.f32.mrb[0].mxu0
        %v1056 = vadd.f32 %v939, %v1055
        %v1057 = vpop.f32.mrb[0].mxu0
        %v1058 = vpop.f32.mrb[0].mxu0
        %v1059 = vadd.f32 %v939, %v1058
        %v1060 = vpop.f32.mrb[0].mxu0
        %1061 = vmatprep.mubr.bf16.mxu0 0
        %1062 = vmatmul.mubr.bf16.gmra.mrb[0].mxu0 %v932
        %v1063 = vpop.f32.mrb[0].mxu0
        %v1064 = vadd.f32 %v939, %v1063
        %v1065 = vpop.f32.mrb[0].mxu0
        %v1066 = vpop.f32.mrb[0].mxu0
        %v1067 = vadd.f32 %v939, %v1066
        %v1068 = vpop.f32.mrb[0].mxu0
        %1069 = vmatprep.mubr.bf16.mxu0 0
        %1070 = vmatmul.mubr.bf16.gmra.mrb[0].mxu0 %v933
        %v1071 = vpop.f32.mrb[0].mxu0
        %v1072 = vadd.f32 %v939, %v1071
        %v1073 = vpop.f32.mrb[0].mxu0
        %v1074 = vpop.f32.mrb[0].mxu0
        %v1075 = vadd.f32 %v939, %v1074
        %v1076 = vpop.f32.mrb[0].mxu0
        %1077 = vmatprep.mubr.bf16.mxu0 0
        %1078 = vmatmul.mubr.bf16.gmra.mrb[0].mxu0 %v934
        %v1079 = vpop.f32.mrb[0].mxu0
        %v1080 = vadd.f32 %v939, %v1079
        %v1081 = vpop.f32.mrb[0].mxu0
        %v1082 = vpop.f32.mrb[0].mxu0
        %v1083 = vadd.f32 %v939, %v1082
        %v1084 = vpop.f32.mrb[0].mxu0
        %1085 = vdwg.mxu0
        %v1086 = vxor.u32 %v1024, 2147483648
        %v1087 = vxor.u32 %v1027, 2147483648
        %v1088 = vxor.u32 %v1032, 2147483648
        %v1089 = vxor.u32 %v1035, 2147483648
        %v1090 = vxor.u32 %v1040, 2147483648
        %v1091 = vxor.u32 %v1043, 2147483648
        %v1092 = vxor.u32 %v1048, 2147483648
        %v1093 = vxor.u32 %v1051, 2147483648
        %v1094 = vxor.u32 %v1056, 2147483648
        %v1095 = vxor.u32 %v1059, 2147483648
        %v1096 = vxor.u32 %v1064, 2147483648
        %v1097 = vxor.u32 %v1067, 2147483648
        %v1098 = vxor.u32 %v1072, 2147483648
        %v1099 = vxor.u32 %v1075, 2147483648
        %v1100 = vxor.u32 %v1080, 2147483648
        %v1101 = vxor.u32 %v1083, 2147483648
        %v1102 = vmul.f32 %v1086, 1.442695
        %v1103 = vpow.pop %v1102
        %v1104 = vmul.f32 %v1087, 1.442695
        %v1105 = vpow.pop %v1104
        %v1106 = vmul.f32 %v1088, 1.442695
        %v1107 = vpow.pop %v1106
        %v1108 = vmul.f32 %v1089, 1.442695
        %v1109 = vpow.pop %v1108
        %v1110 = vmul.f32 %v1090, 1.442695
        %v1111 = vpow.pop %v1110
        %v1112 = vmul.f32 %v1091, 1.442695
        %v1113 = vpow.pop %v1112
        %v1114 = vmul.f32 %v1092, 1.442695
        %v1115 = vpow.pop %v1114
        %v1116 = vmul.f32 %v1093, 1.442695
        %v1117 = vpow.pop %v1116
        %v1118 = vmul.f32 %v1094, 1.442695
        %v1119 = vpow.pop %v1118
        %v1120 = vmul.f32 %v1095, 1.442695
        %v1121 = vpow.pop %v1120
        %v1122 = vmul.f32 %v1096, 1.442695
        %v1123 = vpow.pop %v1122
        %v1124 = vmul.f32 %v1097, 1.442695
        %v1125 = vpow.pop %v1124
        %v1126 = vmul.f32 %v1098, 1.442695
        %v1127 = vpow.pop %v1126
        %v1128 = vmul.f32 %v1099, 1.442695
        %v1129 = vpow.pop %v1128
        %v1130 = vmul.f32 %v1100, 1.442695
        %v1131 = vpow.pop %v1130
        %v1132 = vmul.f32 %v1101, 1.442695
        %v1133 = vpow.pop %v1132
        %v1134 = vadd.f32 %v1103, 1.0
        %v1135 = vadd.f32 %v1105, 1.0
        %v1136 = vadd.f32 %v1107, 1.0
        %v1137 = vadd.f32 %v1109, 1.0
        %v1138 = vadd.f32 %v1111, 1.0
        %v1139 = vadd.f32 %v1113, 1.0
        %v1140 = vadd.f32 %v1115, 1.0
        %v1141 = vadd.f32 %v1117, 1.0
        %v1142 = vadd.f32 %v1119, 1.0
        %v1143 = vadd.f32 %v1121, 1.0
        %v1144 = vadd.f32 %v1123, 1.0
        %v1145 = vadd.f32 %v1125, 1.0
        %v1146 = vadd.f32 %v1127, 1.0
        %v1147 = vadd.f32 %v1129, 1.0
        %v1148 = vadd.f32 %v1131, 1.0
        %v1149 = vadd.f32 %v1133, 1.0
        %v1150 = vrcp.pop %v1134
        %v1151 = vmul.f32 1.0, %v1150
        %v1152 = vrcp.pop %v1135
        %v1153 = vmul.f32 1.0, %v1152
        %v1154 = vrcp.pop %v1136
        %v1155 = vmul.f32 1.0, %v1154
        %v1156 = vrcp.pop %v1137
        %v1157 = vmul.f32 1.0, %v1156
        %v1158 = vrcp.pop %v1138
        %v1159 = vmul.f32 1.0, %v1158
        %v1160 = vrcp.pop %v1139
        %v1161 = vmul.f32 1.0, %v1160
        %v1162 = vrcp.pop %v1140
        %v1163 = vmul.f32 1.0, %v1162
        %v1164 = vrcp.pop %v1141
        %v1165 = vmul.f32 1.0, %v1164
        %v1166 = vrcp.pop %v1142
        %v1167 = vmul.f32 1.0, %v1166
        %v1168 = vrcp.pop %v1143
        %v1169 = vmul.f32 1.0, %v1168
        %v1170 = vrcp.pop %v1144
        %v1171 = vmul.f32 1.0, %v1170
        %v1172 = vrcp.pop %v1145
        %v1173 = vmul.f32 1.0, %v1172
        %v1174 = vrcp.pop %v1146
        %v1175 = vmul.f32 1.0, %v1174
        %v1176 = vrcp.pop %v1147
        %v1177 = vmul.f32 1.0, %v1176
        %v1178 = vrcp.pop %v1148
        %v1179 = vmul.f32 1.0, %v1178
        %v1180 = vrcp.pop %v1149
        %v1181 = vmul.f32 1.0, %v1180
        %v1182 = vmul.f32 %v1024, %v1151
        %v1183 = vmul.f32 %v1027, %v1153
        %v1184 = vmul.f32 %v1032, %v1155
        %v1185 = vmul.f32 %v1035, %v1157
        %v1186 = vmul.f32 %v1040, %v1159
        %v1187 = vmul.f32 %v1043, %v1161
        %v1188 = vmul.f32 %v1048, %v1163
        %v1189 = vmul.f32 %v1051, %v1165
        %v1190 = vmul.f32 %v1056, %v1167
        %v1191 = vmul.f32 %v1059, %v1169
        %v1192 = vmul.f32 %v1064, %v1171
        %v1193 = vmul.f32 %v1067, %v1173
        %v1194 = vmul.f32 %v1072, %v1175
        %v1195 = vmul.f32 %v1075, %v1177
        %v1196 = vmul.f32 %v1080, %v1179
        %v1197 = vmul.f32 %v1083, %v1181
        %v1198 = vld [vmem:[#allocation11] sm:$0xf]
        %v1199 = vld [vmem:[#allocation11 + $0x4] sm:$0xf]
        %v1200 = vld [vmem:[#allocation11 + $0x8] sm:$0xf]
        %v1201 = vld [vmem:[#allocation11 + $0xc] sm:$0xf]
        %v1202 = vld [vmem:[#allocation11 + $0x10] sm:$0xf]
        %v1203 = vld [vmem:[#allocation11 + $0x14] sm:$0xf]
        %v1204 = vld [vmem:[#allocation11 + $0x18] sm:$0xf]
        %v1205 = vld [vmem:[#allocation11 + $0x1c] sm:$0xf]
        %v1206 = vld [vmem:[#allocation11 + $0x20] sm:$0xf]
        %v1207 = vld [vmem:[#allocation11 + $0x24] sm:$0xf]
        %v1208 = vld [vmem:[#allocation11 + $0x28] sm:$0xf]
        %v1209 = vld [vmem:[#allocation11 + $0x2c] sm:$0xf]
        %v1210 = vld [vmem:[#allocation11 + $0x30] sm:$0xf]
        %v1211 = vld [vmem:[#allocation11 + $0x34] sm:$0xf]
        %v1212 = vld [vmem:[#allocation11 + $0x38] sm:$0xf]
        %v1213 = vld [vmem:[#allocation11 + $0x3c] sm:$0xf]
        %v1214 = vld [vmem:[#allocation13] sm:$0x1]
        %v1215 = vpack.c.bf16 %v1183, %v1182
        %v1216 = vpack.c.bf16 %v1185, %v1184
        %v1217 = vpack.c.bf16 %v1187, %v1186
        %v1218 = vpack.c.bf16 %v1189, %v1188
        %v1219 = vpack.c.bf16 %v1191, %v1190
        %v1220 = vpack.c.bf16 %v1193, %v1192
        %v1221 = vpack.c.bf16 %v1195, %v1194
        %v1222 = vpack.c.bf16 %v1197, %v1196
        %v1224 = vlaneseq
        %v1225 = vshrl.u32 %v1224, 7
        %v1226 = vsub.s32 0, %v1225
        %v1227 = vrot.slane %v1214, %v1226
        %v1245 = vunpack.c.l.b16 %v1198
        %v1246 = vunpack.c.l.b16 %v1199
        %v1247 = vunpack.c.l.b16 %v1200
        %v1248 = vunpack.c.l.b16 %v1201
        %v1249 = vunpack.c.l.b16 %v1202
        %v1250 = vunpack.c.l.b16 %v1203
        %v1251 = vunpack.c.l.b16 %v1204
        %v1252 = vunpack.c.l.b16 %v1205
        %v1253 = vunpack.c.l.b16 %v1206
        %v1254 = vunpack.c.l.b16 %v1207
        %v1255 = vunpack.c.l.b16 %v1208
        %v1256 = vunpack.c.l.b16 %v1209
        %v1257 = vunpack.c.l.b16 %v1210
        %v1258 = vunpack.c.l.b16 %v1211
        %v1259 = vunpack.c.l.b16 %v1212
        %v1260 = vunpack.c.l.b16 %v1213
        %v1261 = vpack.c.b16 %v1246, %v1245
        %v1262 = vpack.c.b16 %v1248, %v1247
        %v1263 = vpack.c.b16 %v1250, %v1249
        %v1264 = vpack.c.b16 %v1252, %v1251
        %v1265 = vpack.c.b16 %v1254, %v1253
        %v1266 = vpack.c.b16 %v1256, %v1255
        %v1267 = vpack.c.b16 %v1258, %v1257
        %v1268 = vpack.c.b16 %v1260, %v1259
        %1277 = vmatprep.subr.bf16.mxu0 0
        %1278 = vmatpush1.bf16.msra.mxu0 %v1261
        %1279 = vmatprep.subr.bf16.mxu0 0
        %1280 = vmatpush1.bf16.msra.mxu0 %v1262
        %1281 = vmatprep.subr.bf16.mxu0 0
        %1282 = vmatpush1.bf16.msra.mxu0 %v1263
        %1283 = vmatprep.subr.bf16.mxu0 0
        %1284 = vmatpush1.bf16.msra.mxu0 %v1264
        %1285 = vmatprep.subr.bf16.mxu0 0
        %1286 = vmatpush1.bf16.msra.mxu0 %v1265
        %1287 = vmatprep.subr.bf16.mxu0 0
        %1288 = vmatpush1.bf16.msra.mxu0 %v1266
        %1289 = vmatprep.subr.bf16.mxu0 0
        %1290 = vmatpush1.bf16.msra.mxu0 %v1267
        %1291 = vmatprep.subr.bf16.mxu0 0
        %1292 = vmatpush1.bf16.msra.mxu0 %v1268
        %1293 = vmatprep.subr.bf16.mxu0 0
        %1294 = vmatpush1.bf16.msra.mxu0 0
        %1295 = vmatprep.subr.bf16.mxu0 0
        %1296 = vmatpush1.bf16.msra.mxu0 0
        %1297 = vmatprep.subr.bf16.mxu0 0
        %1298 = vmatpush1.bf16.msra.mxu0 0
        %1299 = vmatprep.subr.bf16.mxu0 0
        %1300 = vmatpush1.bf16.msra.mxu0 0
        %1301 = vmatprep.subr.bf16.mxu0 0
        %1302 = vmatpush1.bf16.msra.mxu0 0
        %1303 = vmatprep.subr.bf16.mxu0 0
        %1304 = vmatpush1.bf16.msra.mxu0 0
        %1305 = vmatprep.subr.bf16.mxu0 0
        %1306 = vmatpush1.bf16.msra.mxu0 0
        %1307 = vmatprep.subr.bf16.mxu0 0
        %1308 = vmatpush1.bf16.msra.mxu0 0
        %1309 = vmatprep.mubr.bf16.mxu0 0
        %1310 = vmatmul.mubr.bf16.gmra.mrb[0].mxu0 %v1215
        %v1311 = vpop.f32.mrb[0].mxu0
        %v1312 = vadd.f32 %v1227, %v1311
        %v1313 = vpop.f32.mrb[0].mxu0
        %v1314 = vpop.f32.mrb[0].mxu0
        %v1315 = vadd.f32 %v1227, %v1314
        %v1316 = vpop.f32.mrb[0].mxu0
        %1317 = vmatprep.mubr.bf16.mxu0 0
        %1318 = vmatmul.mubr.bf16.gmra.mrb[0].mxu0 %v1216
        %v1319 = vpop.f32.mrb[0].mxu0
        %v1320 = vadd.f32 %v1227, %v1319
        %v1321 = vpop.f32.mrb[0].mxu0
        %v1322 = vpop.f32.mrb[0].mxu0
        %v1323 = vadd.f32 %v1227, %v1322
        %v1324 = vpop.f32.mrb[0].mxu0
        %1325 = vmatprep.mubr.bf16.mxu0 0
        %1326 = vmatmul.mubr.bf16.gmra.mrb[0].mxu0 %v1217
        %v1327 = vpop.f32.mrb[0].mxu0
        %v1328 = vadd.f32 %v1227, %v1327
        %v1329 = vpop.f32.mrb[0].mxu0
        %v1330 = vpop.f32.mrb[0].mxu0
        %v1331 = vadd.f32 %v1227, %v1330
        %v1332 = vpop.f32.mrb[0].mxu0
        %1333 = vmatprep.mubr.bf16.mxu0 0
        %1334 = vmatmul.mubr.bf16.gmra.mrb[0].mxu0 %v1218
        %v1335 = vpop.f32.mrb[0].mxu0
        %v1336 = vadd.f32 %v1227, %v1335
        %v1337 = vpop.f32.mrb[0].mxu0
        %v1338 = vpop.f32.mrb[0].mxu0
        %v1339 = vadd.f32 %v1227, %v1338
        %v1340 = vpop.f32.mrb[0].mxu0
        %1341 = vmatprep.mubr.bf16.mxu0 0
        %1342 = vmatmul.mubr.bf16.gmra.mrb[0].mxu0 %v1219
        %v1343 = vpop.f32.mrb[0].mxu0
        %v1344 = vadd.f32 %v1227, %v1343
        %v1345 = vpop.f32.mrb[0].mxu0
        %v1346 = vpop.f32.mrb[0].mxu0
        %v1347 = vadd.f32 %v1227, %v1346
        %v1348 = vpop.f32.mrb[0].mxu0
        %1349 = vmatprep.mubr.bf16.mxu0 0
        %1350 = vmatmul.mubr.bf16.gmra.mrb[0].mxu0 %v1220
        %v1351 = vpop.f32.mrb[0].mxu0
        %v1352 = vadd.f32 %v1227, %v1351
        %v1353 = vpop.f32.mrb[0].mxu0
        %v1354 = vpop.f32.mrb[0].mxu0
        %v1355 = vadd.f32 %v1227, %v1354
        %v1356 = vpop.f32.mrb[0].mxu0
        %1357 = vmatprep.mubr.bf16.mxu0 0
        %1358 = vmatmul.mubr.bf16.gmra.mrb[0].mxu0 %v1221
        %v1359 = vpop.f32.mrb[0].mxu0
        %v1360 = vadd.f32 %v1227, %v1359
        %v1361 = vpop.f32.mrb[0].mxu0
        %v1362 = vpop.f32.mrb[0].mxu0
        %v1363 = vadd.f32 %v1227, %v1362
        %v1364 = vpop.f32.mrb[0].mxu0
        %1365 = vmatprep.mubr.bf16.mxu0 0
        %1366 = vmatmul.mubr.bf16.gmra.mrb[0].mxu0 %v1222
        %v1367 = vpop.f32.mrb[0].mxu0
        %v1368 = vadd.f32 %v1227, %v1367
        %v1369 = vpop.f32.mrb[0].mxu0
        %v1370 = vpop.f32.mrb[0].mxu0
        %v1371 = vadd.f32 %v1227, %v1370
        %v1372 = vpop.f32.mrb[0].mxu0
        %1373 = vdwg.mxu0
        %v1374 = vld [vmem:[%s768] sm:$0xff]
        %v1375 = vld [vmem:[%s768 + $0x8] sm:$0xff]
        %v1376 = vld [vmem:[%s768 + $0x10] sm:$0xff]
        %v1377 = vld [vmem:[%s768 + $0x18] sm:$0xff]
        %v1378 = vld [vmem:[%s768 + $0x20] sm:$0xff]
        %v1379 = vld [vmem:[%s768 + $0x28] sm:$0xff]
        %v1380 = vld [vmem:[%s768 + $0x30] sm:$0xff]
        %v1381 = vld [vmem:[%s768 + $0x38] sm:$0xff]
        %v1382 = vld [vmem:[%s768 + $0x40] sm:$0xff]
        %v1383 = vld [vmem:[%s768 + $0x48] sm:$0xff]
        %v1384 = vld [vmem:[%s768 + $0x50] sm:$0xff]
        %v1385 = vld [vmem:[%s768 + $0x58] sm:$0xff]
        %v1386 = vld [vmem:[%s768 + $0x60] sm:$0xff]
        %v1387 = vld [vmem:[%s768 + $0x68] sm:$0xff]
        %v1388 = vld [vmem:[%s768 + $0x70] sm:$0xff]
        %v1389 = vld [vmem:[%s768 + $0x78] sm:$0xff]
        %v1390 = vld [vmem:[#allocation14] sm:$0xf]
        %v1391 = vld [vmem:[#allocation14 + $0x4] sm:$0xf]
        %v1392 = vld [vmem:[#allocation14 + $0x8] sm:$0xf]
        %v1393 = vld [vmem:[#allocation14 + $0xc] sm:$0xf]
        %v1394 = vld [vmem:[#allocation14 + $0x10] sm:$0xf]
        %v1395 = vld [vmem:[#allocation14 + $0x14] sm:$0xf]
        %v1396 = vld [vmem:[#allocation14 + $0x18] sm:$0xf]
        %v1397 = vld [vmem:[#allocation14 + $0x1c] sm:$0xf]
        %v1398 = vld [vmem:[#allocation14 + $0x20] sm:$0xf]
        %v1399 = vld [vmem:[#allocation14 + $0x24] sm:$0xf]
        %v1400 = vld [vmem:[#allocation14 + $0x28] sm:$0xf]
        %v1401 = vld [vmem:[#allocation14 + $0x2c] sm:$0xf]
        %v1402 = vld [vmem:[#allocation14 + $0x30] sm:$0xf]
        %v1403 = vld [vmem:[#allocation14 + $0x34] sm:$0xf]
        %v1404 = vld [vmem:[#allocation14 + $0x38] sm:$0xf]
        %v1405 = vld [vmem:[#allocation14 + $0x3c] sm:$0xf]
        %v1406 = vld [vmem:[#allocation16] sm:$0x1]
        %v1407 = vpack.c.bf16 %v1375, %v1374
        %v1408 = vpack.c.bf16 %v1377, %v1376
        %v1409 = vpack.c.bf16 %v1379, %v1378
        %v1410 = vpack.c.bf16 %v1381, %v1380
        %v1411 = vpack.c.bf16 %v1383, %v1382
        %v1412 = vpack.c.bf16 %v1385, %v1384
        %v1413 = vpack.c.bf16 %v1387, %v1386
        %v1414 = vpack.c.bf16 %v1389, %v1388
        %v1416 = vlaneseq
        %v1417 = vshrl.u32 %v1416, 7
        %v1418 = vsub.s32 0, %v1417
        %v1419 = vrot.slane %v1406, %v1418
        %v1437 = vunpack.c.l.b16 %v1390
        %v1438 = vunpack.c.l.b16 %v1391
        %v1439 = vunpack.c.l.b16 %v1392
        %v1440 = vunpack.c.l.b16 %v1393
        %v1441 = vunpack.c.l.b16 %v1394
        %v1442 = vunpack.c.l.b16 %v1395
        %v1443 = vunpack.c.l.b16 %v1396
        %v1444 = vunpack.c.l.b16 %v1397
        %v1445 = vunpack.c.l.b16 %v1398
        %v1446 = vunpack.c.l.b16 %v1399
        %v1447 = vunpack.c.l.b16 %v1400
        %v1448 = vunpack.c.l.b16 %v1401
        %v1449 = vunpack.c.l.b16 %v1402
        %v1450 = vunpack.c.l.b16 %v1403
        %v1451 = vunpack.c.l.b16 %v1404
        %v1452 = vunpack.c.l.b16 %v1405
        %v1453 = vpack.c.b16 %v1438, %v1437
        %v1454 = vpack.c.b16 %v1440, %v1439
        %v1455 = vpack.c.b16 %v1442, %v1441
        %v1456 = vpack.c.b16 %v1444, %v1443
        %v1457 = vpack.c.b16 %v1446, %v1445
        %v1458 = vpack.c.b16 %v1448, %v1447
        %v1459 = vpack.c.b16 %v1450, %v1449
        %v1460 = vpack.c.b16 %v1452, %v1451
        %1469 = vmatprep.subr.bf16.mxu0 0
        %1470 = vmatpush1.bf16.msra.mxu0 %v1453
        %1471 = vmatprep.subr.bf16.mxu0 0
        %1472 = vmatpush1.bf16.msra.mxu0 %v1454
        %1473 = vmatprep.subr.bf16.mxu0 0
        %1474 = vmatpush1.bf16.msra.mxu0 %v1455
        %1475 = vmatprep.subr.bf16.mxu0 0
        %1476 = vmatpush1.bf16.msra.mxu0 %v1456
        %1477 = vmatprep.subr.bf16.mxu0 0
        %1478 = vmatpush1.bf16.msra.mxu0 %v1457
        %1479 = vmatprep.subr.bf16.mxu0 0
        %1480 = vmatpush1.bf16.msra.mxu0 %v1458
        %1481 = vmatprep.subr.bf16.mxu0 0
        %1482 = vmatpush1.bf16.msra.mxu0 %v1459
        %1483 = vmatprep.subr.bf16.mxu0 0
        %1484 = vmatpush1.bf16.msra.mxu0 %v1460
        %1485 = vmatprep.subr.bf16.mxu0 0
        %1486 = vmatpush1.bf16.msra.mxu0 0
        %1487 = vmatprep.subr.bf16.mxu0 0
        %1488 = vmatpush1.bf16.msra.mxu0 0
        %1489 = vmatprep.subr.bf16.mxu0 0
        %1490 = vmatpush1.bf16.msra.mxu0 0
        %1491 = vmatprep.subr.bf16.mxu0 0
        %1492 = vmatpush1.bf16.msra.mxu0 0
        %1493 = vmatprep.subr.bf16.mxu0 0
        %1494 = vmatpush1.bf16.msra.mxu0 0
        %1495 = vmatprep.subr.bf16.mxu0 0
        %1496 = vmatpush1.bf16.msra.mxu0 0
        %1497 = vmatprep.subr.bf16.mxu0 0
        %1498 = vmatpush1.bf16.msra.mxu0 0
        %1499 = vmatprep.subr.bf16.mxu0 0
        %1500 = vmatpush1.bf16.msra.mxu0 0
        %1501 = vmatprep.mubr.bf16.mxu0 0
        %1502 = vmatmul.mubr.bf16.gmra.mrb[0].mxu0 %v1407
        %v1503 = vpop.f32.mrb[0].mxu0
        %v1504 = vadd.f32 %v1419, %v1503
        %v1505 = vpop.f32.mrb[0].mxu0
        %v1506 = vpop.f32.mrb[0].mxu0
        %v1507 = vadd.f32 %v1419, %v1506
        %v1508 = vpop.f32.mrb[0].mxu0
        %1509 = vmatprep.mubr.bf16.mxu0 0
        %1510 = vmatmul.mubr.bf16.gmra.mrb[0].mxu0 %v1408
        %v1511 = vpop.f32.mrb[0].mxu0
        %v1512 = vadd.f32 %v1419, %v1511
        %v1513 = vpop.f32.mrb[0].mxu0
        %v1514 = vpop.f32.mrb[0].mxu0
        %v1515 = vadd.f32 %v1419, %v1514
        %v1516 = vpop.f32.mrb[0].mxu0
        %1517 = vmatprep.mubr.bf16.mxu0 0
        %1518 = vmatmul.mubr.bf16.gmra.mrb[0].mxu0 %v1409
        %v1519 = vpop.f32.mrb[0].mxu0
        %v1520 = vadd.f32 %v1419, %v1519
        %v1521 = vpop.f32.mrb[0].mxu0
        %v1522 = vpop.f32.mrb[0].mxu0
        %v1523 = vadd.f32 %v1419, %v1522
        %v1524 = vpop.f32.mrb[0].mxu0
        %1525 = vmatprep.mubr.bf16.mxu0 0
        %1526 = vmatmul.mubr.bf16.gmra.mrb[0].mxu0 %v1410
        %v1527 = vpop.f32.mrb[0].mxu0
        %v1528 = vadd.f32 %v1419, %v1527
        %v1529 = vpop.f32.mrb[0].mxu0
        %v1530 = vpop.f32.mrb[0].mxu0
        %v1531 = vadd.f32 %v1419, %v1530
        %v1532 = vpop.f32.mrb[0].mxu0
        %1533 = vmatprep.mubr.bf16.mxu0 0
        %1534 = vmatmul.mubr.bf16.gmra.mrb[0].mxu0 %v1411
        %v1535 = vpop.f32.mrb[0].mxu0
        %v1536 = vadd.f32 %v1419, %v1535
        %v1537 = vpop.f32.mrb[0].mxu0
        %v1538 = vpop.f32.mrb[0].mxu0
        %v1539 = vadd.f32 %v1419, %v1538
        %v1540 = vpop.f32.mrb[0].mxu0
        %1541 = vmatprep.mubr.bf16.mxu0 0
        %1542 = vmatmul.mubr.bf16.gmra.mrb[0].mxu0 %v1412
        %v1543 = vpop.f32.mrb[0].mxu0
        %v1544 = vadd.f32 %v1419, %v1543
        %v1545 = vpop.f32.mrb[0].mxu0
        %v1546 = vpop.f32.mrb[0].mxu0
        %v1547 = vadd.f32 %v1419, %v1546
        %v1548 = vpop.f32.mrb[0].mxu0
        %1549 = vmatprep.mubr.bf16.mxu0 0
        %1550 = vmatmul.mubr.bf16.gmra.mrb[0].mxu0 %v1413
        %v1551 = vpop.f32.mrb[0].mxu0
        %v1552 = vadd.f32 %v1419, %v1551
        %v1553 = vpop.f32.mrb[0].mxu0
        %v1554 = vpop.f32.mrb[0].mxu0
        %v1555 = vadd.f32 %v1419, %v1554
        %v1556 = vpop.f32.mrb[0].mxu0
        %1557 = vmatprep.mubr.bf16.mxu0 0
        %1558 = vmatmul.mubr.bf16.gmra.mrb[0].mxu0 %v1414
        %v1559 = vpop.f32.mrb[0].mxu0
        %v1560 = vadd.f32 %v1419, %v1559
        %v1561 = vpop.f32.mrb[0].mxu0
        %v1562 = vpop.f32.mrb[0].mxu0
        %v1563 = vadd.f32 %v1419, %v1562
        %v1564 = vpop.f32.mrb[0].mxu0
        %1565 = vdwg.mxu0
        %v1566 = vadd.f32 %v1312, %v1504
        %v1567 = vadd.f32 %v1315, %v1507
        %v1568 = vadd.f32 %v1320, %v1512
        %v1569 = vadd.f32 %v1323, %v1515
        %v1570 = vadd.f32 %v1328, %v1520
        %v1571 = vadd.f32 %v1331, %v1523
        %v1572 = vadd.f32 %v1336, %v1528
        %v1573 = vadd.f32 %v1339, %v1531
        %v1574 = vadd.f32 %v1344, %v1536
        %v1575 = vadd.f32 %v1347, %v1539
        %v1576 = vadd.f32 %v1352, %v1544
        %v1577 = vadd.f32 %v1355, %v1547
        %v1578 = vadd.f32 %v1360, %v1552
        %v1579 = vadd.f32 %v1363, %v1555
        %v1580 = vadd.f32 %v1368, %v1560
        %v1581 = vadd.f32 %v1371, %v1563
        %v1582 = vld [vmem:[%s750] sm:$0xff]
        %v1583 = vld [vmem:[%s750 + $0x8] sm:$0xff]
        %v1584 = vld [vmem:[%s750 + $0x10] sm:$0xff]
        %v1585 = vld [vmem:[%s750 + $0x18] sm:$0xff]
        %v1586 = vld [vmem:[%s750 + $0x20] sm:$0xff]
        %v1587 = vld [vmem:[%s750 + $0x28] sm:$0xff]
        %v1588 = vld [vmem:[%s750 + $0x30] sm:$0xff]
        %v1589 = vld [vmem:[%s750 + $0x38] sm:$0xff]
        %v1590 = vld [vmem:[%s750 + $0x40] sm:$0xff]
        %v1591 = vld [vmem:[%s750 + $0x48] sm:$0xff]
        %v1592 = vld [vmem:[%s750 + $0x50] sm:$0xff]
        %v1593 = vld [vmem:[%s750 + $0x58] sm:$0xff]
        %v1594 = vld [vmem:[%s750 + $0x60] sm:$0xff]
        %v1595 = vld [vmem:[%s750 + $0x68] sm:$0xff]
        %v1596 = vld [vmem:[%s750 + $0x70] sm:$0xff]
        %v1597 = vld [vmem:[%s750 + $0x78] sm:$0xff]
        %v1598 = vld [vmem:[#allocation17] sm:$0xf]
        %v1599 = vld [vmem:[#allocation17 + $0x4] sm:$0xf]
        %v1600 = vld [vmem:[#allocation17 + $0x8] sm:$0xf]
        %v1601 = vld [vmem:[#allocation17 + $0xc] sm:$0xf]
        %v1602 = vld [vmem:[#allocation17 + $0x10] sm:$0xf]
        %v1603 = vld [vmem:[#allocation17 + $0x14] sm:$0xf]
        %v1604 = vld [vmem:[#allocation17 + $0x18] sm:$0xf]
        %v1605 = vld [vmem:[#allocation17 + $0x1c] sm:$0xf]
        %v1606 = vld [vmem:[#allocation17 + $0x20] sm:$0xf]
        %v1607 = vld [vmem:[#allocation17 + $0x24] sm:$0xf]
        %v1608 = vld [vmem:[#allocation17 + $0x28] sm:$0xf]
        %v1609 = vld [vmem:[#allocation17 + $0x2c] sm:$0xf]
        %v1610 = vld [vmem:[#allocation17 + $0x30] sm:$0xf]
        %v1611 = vld [vmem:[#allocation17 + $0x34] sm:$0xf]
        %v1612 = vld [vmem:[#allocation17 + $0x38] sm:$0xf]
        %v1613 = vld [vmem:[#allocation17 + $0x3c] sm:$0xf]
        %v1614 = vld [vmem:[#allocation19] sm:$0x1]
        %v1615 = vpack.c.bf16 %v1583, %v1582
        %v1616 = vpack.c.bf16 %v1585, %v1584
        %v1617 = vpack.c.bf16 %v1587, %v1586
        %v1618 = vpack.c.bf16 %v1589, %v1588
        %v1619 = vpack.c.bf16 %v1591, %v1590
        %v1620 = vpack.c.bf16 %v1593, %v1592
        %v1621 = vpack.c.bf16 %v1595, %v1594
        %v1622 = vpack.c.bf16 %v1597, %v1596
        %v1624 = vlaneseq
        %v1625 = vshrl.u32 %v1624, 7
        %v1626 = vsub.s32 0, %v1625
        %v1627 = vrot.slane %v1614, %v1626
        %v1645 = vunpack.c.l.b16 %v1598
        %v1646 = vunpack.c.l.b16 %v1599
        %v1647 = vunpack.c.l.b16 %v1600
        %v1648 = vunpack.c.l.b16 %v1601
        %v1649 = vunpack.c.l.b16 %v1602
        %v1650 = vunpack.c.l.b16 %v1603
        %v1651 = vunpack.c.l.b16 %v1604
        %v1652 = vunpack.c.l.b16 %v1605
        %v1653 = vunpack.c.l.b16 %v1606
        %v1654 = vunpack.c.l.b16 %v1607
        %v1655 = vunpack.c.l.b16 %v1608
        %v1656 = vunpack.c.l.b16 %v1609
        %v1657 = vunpack.c.l.b16 %v1610
        %v1658 = vunpack.c.l.b16 %v1611
        %v1659 = vunpack.c.l.b16 %v1612
        %v1660 = vunpack.c.l.b16 %v1613
        %v1661 = vpack.c.b16 %v1646, %v1645
        %v1662 = vpack.c.b16 %v1648, %v1647
        %v1663 = vpack.c.b16 %v1650, %v1649
        %v1664 = vpack.c.b16 %v1652, %v1651
        %v1665 = vpack.c.b16 %v1654, %v1653
        %v1666 = vpack.c.b16 %v1656, %v1655
        %v1667 = vpack.c.b16 %v1658, %v1657
        %v1668 = vpack.c.b16 %v1660, %v1659
        %1677 = vmatprep.subr.bf16.mxu0 0
        %1678 = vmatpush1.bf16.msra.mxu0 %v1661
        %1679 = vmatprep.subr.bf16.mxu0 0
        %1680 = vmatpush1.bf16.msra.mxu0 %v1662
        %1681 = vmatprep.subr.bf16.mxu0 0
        %1682 = vmatpush1.bf16.msra.mxu0 %v1663
        %1683 = vmatprep.subr.bf16.mxu0 0
        %1684 = vmatpush1.bf16.msra.mxu0 %v1664
        %1685 = vmatprep.subr.bf16.mxu0 0
        %1686 = vmatpush1.bf16.msra.mxu0 %v1665
        %1687 = vmatprep.subr.bf16.mxu0 0
        %1688 = vmatpush1.bf16.msra.mxu0 %v1666
        %1689 = vmatprep.subr.bf16.mxu0 0
        %1690 = vmatpush1.bf16.msra.mxu0 %v1667
        %1691 = vmatprep.subr.bf16.mxu0 0
        %1692 = vmatpush1.bf16.msra.mxu0 %v1668
        %1693 = vmatprep.subr.bf16.mxu0 0
        %1694 = vmatpush1.bf16.msra.mxu0 0
        %1695 = vmatprep.subr.bf16.mxu0 0
        %1696 = vmatpush1.bf16.msra.mxu0 0
        %1697 = vmatprep.subr.bf16.mxu0 0
        %1698 = vmatpush1.bf16.msra.mxu0 0
        %1699 = vmatprep.subr.bf16.mxu0 0
        %1700 = vmatpush1.bf16.msra.mxu0 0
        %1701 = vmatprep.subr.bf16.mxu0 0
        %1702 = vmatpush1.bf16.msra.mxu0 0
        %1703 = vmatprep.subr.bf16.mxu0 0
        %1704 = vmatpush1.bf16.msra.mxu0 0
        %1705 = vmatprep.subr.bf16.mxu0 0
        %1706 = vmatpush1.bf16.msra.mxu0 0
        %1707 = vmatprep.subr.bf16.mxu0 0
        %1708 = vmatpush1.bf16.msra.mxu0 0
        %1709 = vmatprep.mubr.bf16.mxu0 0
        %1710 = vmatmul.mubr.bf16.gmra.mrb[0].mxu0 %v1615
        %v1711 = vpop.f32.mrb[0].mxu0
        %v1712 = vadd.f32 %v1627, %v1711
        %v1713 = vpop.f32.mrb[0].mxu0
        %v1714 = vpop.f32.mrb[0].mxu0
        %v1715 = vadd.f32 %v1627, %v1714
        %v1716 = vpop.f32.mrb[0].mxu0
        %1717 = vmatprep.mubr.bf16.mxu0 0
        %1718 = vmatmul.mubr.bf16.gmra.mrb[0].mxu0 %v1616
        %v1719 = vpop.f32.mrb[0].mxu0
        %v1720 = vadd.f32 %v1627, %v1719
        %v1721 = vpop.f32.mrb[0].mxu0
        %v1722 = vpop.f32.mrb[0].mxu0
        %v1723 = vadd.f32 %v1627, %v1722
        %v1724 = vpop.f32.mrb[0].mxu0
        %1725 = vmatprep.mubr.bf16.mxu0 0
        %1726 = vmatmul.mubr.bf16.gmra.mrb[0].mxu0 %v1617
        %v1727 = vpop.f32.mrb[0].mxu0
        %v1728 = vadd.f32 %v1627, %v1727
        %v1729 = vpop.f32.mrb[0].mxu0
        %v1730 = vpop.f32.mrb[0].mxu0
        %v1731 = vadd.f32 %v1627, %v1730
        %v1732 = vpop.f32.mrb[0].mxu0
        %1733 = vmatprep.mubr.bf16.mxu0 0
        %1734 = vmatmul.mubr.bf16.gmra.mrb[0].mxu0 %v1618
        %v1735 = vpop.f32.mrb[0].mxu0
        %v1736 = vadd.f32 %v1627, %v1735
        %v1737 = vpop.f32.mrb[0].mxu0
        %v1738 = vpop.f32.mrb[0].mxu0
        %v1739 = vadd.f32 %v1627, %v1738
        %v1740 = vpop.f32.mrb[0].mxu0
        %1741 = vmatprep.mubr.bf16.mxu0 0
        %1742 = vmatmul.mubr.bf16.gmra.mrb[0].mxu0 %v1619
        %v1743 = vpop.f32.mrb[0].mxu0
        %v1744 = vadd.f32 %v1627, %v1743
        %v1745 = vpop.f32.mrb[0].mxu0
        %v1746 = vpop.f32.mrb[0].mxu0
        %v1747 = vadd.f32 %v1627, %v1746
        %v1748 = vpop.f32.mrb[0].mxu0
        %1749 = vmatprep.mubr.bf16.mxu0 0
        %1750 = vmatmul.mubr.bf16.gmra.mrb[0].mxu0 %v1620
        %v1751 = vpop.f32.mrb[0].mxu0
        %v1752 = vadd.f32 %v1627, %v1751
        %v1753 = vpop.f32.mrb[0].mxu0
        %v1754 = vpop.f32.mrb[0].mxu0
        %v1755 = vadd.f32 %v1627, %v1754
        %v1756 = vpop.f32.mrb[0].mxu0
        %1757 = vmatprep.mubr.bf16.mxu0 0
        %1758 = vmatmul.mubr.bf16.gmra.mrb[0].mxu0 %v1621
        %v1759 = vpop.f32.mrb[0].mxu0
        %v1760 = vadd.f32 %v1627, %v1759
        %v1761 = vpop.f32.mrb[0].mxu0
        %v1762 = vpop.f32.mrb[0].mxu0
        %v1763 = vadd.f32 %v1627, %v1762
        %v1764 = vpop.f32.mrb[0].mxu0
        %1765 = vmatprep.mubr.bf16.mxu0 0
        %1766 = vmatmul.mubr.bf16.gmra.mrb[0].mxu0 %v1622
        %v1767 = vpop.f32.mrb[0].mxu0
        %v1768 = vadd.f32 %v1627, %v1767
        %v1769 = vpop.f32.mrb[0].mxu0
        %v1770 = vpop.f32.mrb[0].mxu0
        %v1771 = vadd.f32 %v1627, %v1770
        %v1772 = vpop.f32.mrb[0].mxu0
        %1773 = vdwg.mxu0
        %v1774 = vld [vmem:[#allocation20] sm:$0x1]
        %v1775 = vld [vmem:[#allocation22] sm:$0x1]
        %1776 = vadd.xlane.f32.xlu0 %v1712
        %v1777 = vpop.xlane.xlu0 %1776
        %1778 = vadd.xlane.f32.xlu0 %v1715
        %v1779 = vpop.xlane.xlu0 %1778
        %1780 = vadd.xlane.f32.xlu0 %v1720
        %v1781 = vpop.xlane.xlu0 %1780
        %1782 = vadd.xlane.f32.xlu0 %v1723
        %v1783 = vpop.xlane.xlu0 %1782
        %1784 = vadd.xlane.f32.xlu0 %v1728
        %v1785 = vpop.xlane.xlu0 %1784
        %1786 = vadd.xlane.f32.xlu0 %v1731
        %v1787 = vpop.xlane.xlu0 %1786
        %1788 = vadd.xlane.f32.xlu0 %v1736
        %v1789 = vpop.xlane.xlu0 %1788
        %1790 = vadd.xlane.f32.xlu0 %v1739
        %v1791 = vpop.xlane.xlu0 %1790
        %1792 = vadd.xlane.f32.xlu0 %v1744
        %v1793 = vpop.xlane.xlu0 %1792
        %1794 = vadd.xlane.f32.xlu0 %v1747
        %v1795 = vpop.xlane.xlu0 %1794
        %1796 = vadd.xlane.f32.xlu0 %v1752
        %v1797 = vpop.xlane.xlu0 %1796
        %1798 = vadd.xlane.f32.xlu0 %v1755
        %v1799 = vpop.xlane.xlu0 %1798
        %1800 = vadd.xlane.f32.xlu0 %v1760
        %v1801 = vpop.xlane.xlu0 %1800
        %1802 = vadd.xlane.f32.xlu0 %v1763
        %v1803 = vpop.xlane.xlu0 %1802
        %1804 = vadd.xlane.f32.xlu0 %v1768
        %v1805 = vpop.xlane.xlu0 %1804
        %1806 = vadd.xlane.f32.xlu0 %v1771
        %v1807 = vpop.xlane.xlu0 %1806
        %v1808 = vrcp.pop 128.0
        %v1809 = vmul.f32 %v1777, %v1808
        %v1810 = vmul.f32 %v1779, %v1808
        %v1811 = vmul.f32 %v1781, %v1808
        %v1812 = vmul.f32 %v1783, %v1808
        %v1813 = vmul.f32 %v1785, %v1808
        %v1814 = vmul.f32 %v1787, %v1808
        %v1815 = vmul.f32 %v1789, %v1808
        %v1816 = vmul.f32 %v1791, %v1808
        %v1817 = vmul.f32 %v1793, %v1808
        %v1818 = vmul.f32 %v1795, %v1808
        %v1819 = vmul.f32 %v1797, %v1808
        %v1820 = vmul.f32 %v1799, %v1808
        %v1821 = vmul.f32 %v1801, %v1808
        %v1822 = vmul.f32 %v1803, %v1808
        %v1823 = vmul.f32 %v1805, %v1808
        %v1824 = vmul.f32 %v1807, %v1808
        %v1825 = vmul.f32 %v1712, %v1712
        %v1826 = vmul.f32 %v1715, %v1715
        %v1827 = vmul.f32 %v1720, %v1720
        %v1828 = vmul.f32 %v1723, %v1723
        %v1829 = vmul.f32 %v1728, %v1728
        %v1830 = vmul.f32 %v1731, %v1731
        %v1831 = vmul.f32 %v1736, %v1736
        %v1832 = vmul.f32 %v1739, %v1739
        %v1833 = vmul.f32 %v1744, %v1744
        %v1834 = vmul.f32 %v1747, %v1747
        %v1835 = vmul.f32 %v1752, %v1752
        %v1836 = vmul.f32 %v1755, %v1755
        %v1837 = vmul.f32 %v1760, %v1760
        %v1838 = vmul.f32 %v1763, %v1763
        %v1839 = vmul.f32 %v1768, %v1768
        %v1840 = vmul.f32 %v1771, %v1771
        %1841 = vadd.xlane.f32.xlu0 %v1825
        %v1842 = vpop.xlane.xlu0 %1841
        %1843 = vadd.xlane.f32.xlu0 %v1826
        %v1844 = vpop.xlane.xlu0 %1843
        %1845 = vadd.xlane.f32.xlu0 %v1827
        %v1846 = vpop.xlane.xlu0 %1845
        %1847 = vadd.xlane.f32.xlu0 %v1828
        %v1848 = vpop.xlane.xlu0 %1847
        %1849 = vadd.xlane.f32.xlu0 %v1829
        %v1850 = vpop.xlane.xlu0 %1849
        %1851 = vadd.xlane.f32.xlu0 %v1830
        %v1852 = vpop.xlane.xlu0 %1851
        %1853 = vadd.xlane.f32.xlu0 %v1831
        %v1854 = vpop.xlane.xlu0 %1853
        %1855 = vadd.xlane.f32.xlu0 %v1832
        %v1856 = vpop.xlane.xlu0 %1855
        %1857 = vadd.xlane.f32.xlu0 %v1833
        %v1858 = vpop.xlane.xlu0 %1857
        %1859 = vadd.xlane.f32.xlu0 %v1834
        %v1860 = vpop.xlane.xlu0 %1859
        %1861 = vadd.xlane.f32.xlu0 %v1835
        %v1862 = vpop.xlane.xlu0 %1861
        %1863 = vadd.xlane.f32.xlu0 %v1836
        %v1864 = vpop.xlane.xlu0 %1863
        %1865 = vadd.xlane.f32.xlu0 %v1837
        %v1866 = vpop.xlane.xlu0 %1865
        %1867 = vadd.xlane.f32.xlu0 %v1838
        %v1868 = vpop.xlane.xlu0 %1867
        %1869 = vadd.xlane.f32.xlu0 %v1839
        %v1870 = vpop.xlane.xlu0 %1869
        %1871 = vadd.xlane.f32.xlu0 %v1840
        %v1872 = vpop.xlane.xlu0 %1871
        %v1873 = vmul.f32 %v1842, %v1808
        %v1874 = vmul.f32 %v1844, %v1808
        %v1875 = vmul.f32 %v1846, %v1808
        %v1876 = vmul.f32 %v1848, %v1808
        %v1877 = vmul.f32 %v1850, %v1808
        %v1878 = vmul.f32 %v1852, %v1808
        %v1879 = vmul.f32 %v1854, %v1808
        %v1880 = vmul.f32 %v1856, %v1808
        %v1881 = vmul.f32 %v1858, %v1808
        %v1882 = vmul.f32 %v1860, %v1808
        %v1883 = vmul.f32 %v1862, %v1808
        %v1884 = vmul.f32 %v1864, %v1808
        %v1885 = vmul.f32 %v1866, %v1808
        %v1886 = vmul.f32 %v1868, %v1808
        %v1887 = vmul.f32 %v1870, %v1808
        %v1888 = vmul.f32 %v1872, %v1808
        %v1889 = vmul.f32 %v1809, %v1809
        %v1890 = vmul.f32 %v1810, %v1810
        %v1891 = vmul.f32 %v1811, %v1811
        %v1892 = vmul.f32 %v1812, %v1812
        %v1893 = vmul.f32 %v1813, %v1813
        %v1894 = vmul.f32 %v1814, %v1814
        %v1895 = vmul.f32 %v1815, %v1815
        %v1896 = vmul.f32 %v1816, %v1816
        %v1897 = vmul.f32 %v1817, %v1817
        %v1898 = vmul.f32 %v1818, %v1818
        %v1899 = vmul.f32 %v1819, %v1819
        %v1900 = vmul.f32 %v1820, %v1820
        %v1901 = vmul.f32 %v1821, %v1821
        %v1902 = vmul.f32 %v1822, %v1822
        %v1903 = vmul.f32 %v1823, %v1823
        %v1904 = vmul.f32 %v1824, %v1824
        %v1905 = vsub.f32 %v1873, %v1889
        %v1906 = vsub.f32 %v1874, %v1890
        %v1907 = vsub.f32 %v1875, %v1891
        %v1908 = vsub.f32 %v1876, %v1892
        %v1909 = vsub.f32 %v1877, %v1893
        %v1910 = vsub.f32 %v1878, %v1894
        %v1911 = vsub.f32 %v1879, %v1895
        %v1912 = vsub.f32 %v1880, %v1896
        %v1913 = vsub.f32 %v1881, %v1897
        %v1914 = vsub.f32 %v1882, %v1898
        %v1915 = vsub.f32 %v1883, %v1899
        %v1916 = vsub.f32 %v1884, %v1900
        %v1917 = vsub.f32 %v1885, %v1901
        %v1918 = vsub.f32 %v1886, %v1902
        %v1919 = vsub.f32 %v1887, %v1903
        %v1920 = vsub.f32 %v1888, %v1904
        %v1921 = vsub.f32 %v1712, %v1809
        %v1922 = vsub.f32 %v1715, %v1810
        %v1923 = vsub.f32 %v1720, %v1811
        %v1924 = vsub.f32 %v1723, %v1812
        %v1925 = vsub.f32 %v1728, %v1813
        %v1926 = vsub.f32 %v1731, %v1814
        %v1927 = vsub.f32 %v1736, %v1815
        %v1928 = vsub.f32 %v1739, %v1816
        %v1929 = vsub.f32 %v1744, %v1817
        %v1930 = vsub.f32 %v1747, %v1818
        %v1931 = vsub.f32 %v1752, %v1819
        %v1932 = vsub.f32 %v1755, %v1820
        %v1933 = vsub.f32 %v1760, %v1821
        %v1934 = vsub.f32 %v1763, %v1822
        %v1935 = vsub.f32 %v1768, %v1823
        %v1936 = vsub.f32 %v1771, %v1824
        %v1937 = vadd.f32 %v1905, 1e-05
        %v1938 = vadd.f32 %v1906, 1e-05
        %v1939 = vadd.f32 %v1907, 1e-05
        %v1940 = vadd.f32 %v1908, 1e-05
        %v1941 = vadd.f32 %v1909, 1e-05
        %v1942 = vadd.f32 %v1910, 1e-05
        %v1943 = vadd.f32 %v1911, 1e-05
        %v1944 = vadd.f32 %v1912, 1e-05
        %v1945 = vadd.f32 %v1913, 1e-05
        %v1946 = vadd.f32 %v1914, 1e-05
        %v1947 = vadd.f32 %v1915, 1e-05
        %v1948 = vadd.f32 %v1916, 1e-05
        %v1949 = vadd.f32 %v1917, 1e-05
        %v1950 = vadd.f32 %v1918, 1e-05
        %v1951 = vadd.f32 %v1919, 1e-05
        %v1952 = vadd.f32 %v1920, 1e-05
        %v1953 = vrsqrt.pop %v1937
        %v1954 = vrsqrt.pop %v1938
        %v1955 = vrsqrt.pop %v1939
        %v1956 = vrsqrt.pop %v1940
        %v1957 = vrsqrt.pop %v1941
        %v1958 = vrsqrt.pop %v1942
        %v1959 = vrsqrt.pop %v1943
        %v1960 = vrsqrt.pop %v1944
        %v1961 = vrsqrt.pop %v1945
        %v1962 = vrsqrt.pop %v1946
        %v1963 = vrsqrt.pop %v1947
        %v1964 = vrsqrt.pop %v1948
        %v1965 = vrsqrt.pop %v1949
        %v1966 = vrsqrt.pop %v1950
        %v1967 = vrsqrt.pop %v1951
        %v1968 = vrsqrt.pop %v1952
        %v1969 = vmul.f32 %v1921, %v1953
        %v1970 = vmul.f32 %v1922, %v1954
        %v1971 = vmul.f32 %v1923, %v1955
        %v1972 = vmul.f32 %v1924, %v1956
        %v1973 = vmul.f32 %v1925, %v1957
        %v1974 = vmul.f32 %v1926, %v1958
        %v1975 = vmul.f32 %v1927, %v1959
        %v1976 = vmul.f32 %v1928, %v1960
        %v1977 = vmul.f32 %v1929, %v1961
        %v1978 = vmul.f32 %v1930, %v1962
        %v1979 = vmul.f32 %v1931, %v1963
        %v1980 = vmul.f32 %v1932, %v1964
        %v1981 = vmul.f32 %v1933, %v1965
        %v1982 = vmul.f32 %v1934, %v1966
        %v1983 = vmul.f32 %v1935, %v1967
        %v1984 = vmul.f32 %v1936, %v1968
        %v1986 = vlaneseq
        %v1987 = vshrl.u32 %v1986, 7
        %v1988 = vsub.s32 0, %v1987
        %v1989 = vrot.slane %v1774, %v1988
        %v1991 = vmul.f32 %v1969, %v1989
        %v1992 = vmul.f32 %v1970, %v1989
        %v1993 = vmul.f32 %v1971, %v1989
        %v1994 = vmul.f32 %v1972, %v1989
        %v1995 = vmul.f32 %v1973, %v1989
        %v1996 = vmul.f32 %v1974, %v1989
        %v1997 = vmul.f32 %v1975, %v1989
        %v1998 = vmul.f32 %v1976, %v1989
        %v1999 = vmul.f32 %v1977, %v1989
        %v2000 = vmul.f32 %v1978, %v1989
        %v2001 = vmul.f32 %v1979, %v1989
        %v2002 = vmul.f32 %v1980, %v1989
        %v2003 = vmul.f32 %v1981, %v1989
        %v2004 = vmul.f32 %v1982, %v1989
        %v2005 = vmul.f32 %v1983, %v1989
        %v2006 = vmul.f32 %v1984, %v1989
        %v2008 = vlaneseq
        %v2009 = vshrl.u32 %v2008, 7
        %v2010 = vsub.s32 0, %v2009
        %v2011 = vrot.slane %v1775, %v2010
        %v2013 = vadd.f32 %v1991, %v2011
        %v2014 = vadd.f32 %v1992, %v2011
        %v2015 = vadd.f32 %v1993, %v2011
        %v2016 = vadd.f32 %v1994, %v2011
        %v2017 = vadd.f32 %v1995, %v2011
        %v2018 = vadd.f32 %v1996, %v2011
        %v2019 = vadd.f32 %v1997, %v2011
        %v2020 = vadd.f32 %v1998, %v2011
        %v2021 = vadd.f32 %v1999, %v2011
        %v2022 = vadd.f32 %v2000, %v2011
        %v2023 = vadd.f32 %v2001, %v2011
        %v2024 = vadd.f32 %v2002, %v2011
        %v2025 = vadd.f32 %v2003, %v2011
        %v2026 = vadd.f32 %v2004, %v2011
        %v2027 = vadd.f32 %v2005, %v2011
        %v2028 = vadd.f32 %v2006, %v2011
        %v2029 = vxor.u32 %v2013, 2147483648
        %v2030 = vxor.u32 %v2014, 2147483648
        %v2031 = vxor.u32 %v2015, 2147483648
        %v2032 = vxor.u32 %v2016, 2147483648
        %v2033 = vxor.u32 %v2017, 2147483648
        %v2034 = vxor.u32 %v2018, 2147483648
        %v2035 = vxor.u32 %v2019, 2147483648
        %v2036 = vxor.u32 %v2020, 2147483648
        %v2037 = vxor.u32 %v2021, 2147483648
        %v2038 = vxor.u32 %v2022, 2147483648
        %v2039 = vxor.u32 %v2023, 2147483648
        %v2040 = vxor.u32 %v2024, 2147483648
        %v2041 = vxor.u32 %v2025, 2147483648
        %v2042 = vxor.u32 %v2026, 2147483648
        %v2043 = vxor.u32 %v2027, 2147483648
        %v2044 = vxor.u32 %v2028, 2147483648
        %v2045 = vmul.f32 %v2029, 1.442695
        %v2046 = vpow.pop %v2045
        %v2047 = vmul.f32 %v2030, 1.442695
        %v2048 = vpow.pop %v2047
        %v2049 = vmul.f32 %v2031, 1.442695
        %v2050 = vpow.pop %v2049
        %v2051 = vmul.f32 %v2032, 1.442695
        %v2052 = vpow.pop %v2051
        %v2053 = vmul.f32 %v2033, 1.442695
        %v2054 = vpow.pop %v2053
        %v2055 = vmul.f32 %v2034, 1.442695
        %v2056 = vpow.pop %v2055
        %v2057 = vmul.f32 %v2035, 1.442695
        %v2058 = vpow.pop %v2057
        %v2059 = vmul.f32 %v2036, 1.442695
        %v2060 = vpow.pop %v2059
        %v2061 = vmul.f32 %v2037, 1.442695
        %v2062 = vpow.pop %v2061
        %v2063 = vmul.f32 %v2038, 1.442695
        %v2064 = vpow.pop %v2063
        %v2065 = vmul.f32 %v2039, 1.442695
        %v2066 = vpow.pop %v2065
        %v2067 = vmul.f32 %v2040, 1.442695
        %v2068 = vpow.pop %v2067
        %v2069 = vmul.f32 %v2041, 1.442695
        %v2070 = vpow.pop %v2069
        %v2071 = vmul.f32 %v2042, 1.442695
        %v2072 = vpow.pop %v2071
        %v2073 = vmul.f32 %v2043, 1.442695
        %v2074 = vpow.pop %v2073
        %v2075 = vmul.f32 %v2044, 1.442695
        %v2076 = vpow.pop %v2075
        %v2077 = vadd.f32 %v2046, 1.0
        %v2078 = vadd.f32 %v2048, 1.0
        %v2079 = vadd.f32 %v2050, 1.0
        %v2080 = vadd.f32 %v2052, 1.0
        %v2081 = vadd.f32 %v2054, 1.0
        %v2082 = vadd.f32 %v2056, 1.0
        %v2083 = vadd.f32 %v2058, 1.0
        %v2084 = vadd.f32 %v2060, 1.0
        %v2085 = vadd.f32 %v2062, 1.0
        %v2086 = vadd.f32 %v2064, 1.0
        %v2087 = vadd.f32 %v2066, 1.0
        %v2088 = vadd.f32 %v2068, 1.0
        %v2089 = vadd.f32 %v2070, 1.0
        %v2090 = vadd.f32 %v2072, 1.0
        %v2091 = vadd.f32 %v2074, 1.0
        %v2092 = vadd.f32 %v2076, 1.0
        %v2093 = vrcp.pop %v2077
        %v2094 = vmul.f32 1.0, %v2093
        %v2095 = vrcp.pop %v2078
        %v2096 = vmul.f32 1.0, %v2095
        %v2097 = vrcp.pop %v2079
        %v2098 = vmul.f32 1.0, %v2097
        %v2099 = vrcp.pop %v2080
        %v2100 = vmul.f32 1.0, %v2099
        %v2101 = vrcp.pop %v2081
        %v2102 = vmul.f32 1.0, %v2101
        %v2103 = vrcp.pop %v2082
        %v2104 = vmul.f32 1.0, %v2103
        %v2105 = vrcp.pop %v2083
        %v2106 = vmul.f32 1.0, %v2105
        %v2107 = vrcp.pop %v2084
        %v2108 = vmul.f32 1.0, %v2107
        %v2109 = vrcp.pop %v2085
        %v2110 = vmul.f32 1.0, %v2109
        %v2111 = vrcp.pop %v2086
        %v2112 = vmul.f32 1.0, %v2111
        %v2113 = vrcp.pop %v2087
        %v2114 = vmul.f32 1.0, %v2113
        %v2115 = vrcp.pop %v2088
        %v2116 = vmul.f32 1.0, %v2115
        %v2117 = vrcp.pop %v2089
        %v2118 = vmul.f32 1.0, %v2117
        %v2119 = vrcp.pop %v2090
        %v2120 = vmul.f32 1.0, %v2119
        %v2121 = vrcp.pop %v2091
        %v2122 = vmul.f32 1.0, %v2121
        %v2123 = vrcp.pop %v2092
        %v2124 = vmul.f32 1.0, %v2123
        %v2125 = vmul.f32 %v2013, %v2094
        %v2126 = vmul.f32 %v2014, %v2096
        %v2127 = vmul.f32 %v2015, %v2098
        %v2128 = vmul.f32 %v2016, %v2100
        %v2129 = vmul.f32 %v2017, %v2102
        %v2130 = vmul.f32 %v2018, %v2104
        %v2131 = vmul.f32 %v2019, %v2106
        %v2132 = vmul.f32 %v2020, %v2108
        %v2133 = vmul.f32 %v2021, %v2110
        %v2134 = vmul.f32 %v2022, %v2112
        %v2135 = vmul.f32 %v2023, %v2114
        %v2136 = vmul.f32 %v2024, %v2116
        %v2137 = vmul.f32 %v2025, %v2118
        %v2138 = vmul.f32 %v2026, %v2120
        %v2139 = vmul.f32 %v2027, %v2122
        %v2140 = vmul.f32 %v2028, %v2124
        %v2141 = vadd.f32 %v2125, %v1566
        %v2142 = vadd.f32 %v2126, %v1567
        %v2143 = vadd.f32 %v2127, %v1568
        %v2144 = vadd.f32 %v2128, %v1569
        %v2145 = vadd.f32 %v2129, %v1570
        %v2146 = vadd.f32 %v2130, %v1571
        %v2147 = vadd.f32 %v2131, %v1572
        %v2148 = vadd.f32 %v2132, %v1573
        %v2149 = vadd.f32 %v2133, %v1574
        %v2150 = vadd.f32 %v2134, %v1575
        %v2151 = vadd.f32 %v2135, %v1576
        %v2152 = vadd.f32 %v2136, %v1577
        %v2153 = vadd.f32 %v2137, %v1578
        %v2154 = vadd.f32 %v2138, %v1579
        %v2155 = vadd.f32 %v2139, %v1580
        %v2156 = vadd.f32 %v2140, %v1581
        %v2157 = vld [vmem:[#allocation23] sm:$0xf]
        %v2158 = vld [vmem:[#allocation23 + $0x4] sm:$0xf]
        %v2159 = vld [vmem:[#allocation23 + $0x8] sm:$0xf]
        %v2160 = vld [vmem:[#allocation23 + $0xc] sm:$0xf]
        %v2161 = vld [vmem:[#allocation23 + $0x10] sm:$0xf]
        %v2162 = vld [vmem:[#allocation23 + $0x14] sm:$0xf]
        %v2163 = vld [vmem:[#allocation23 + $0x18] sm:$0xf]
        %v2164 = vld [vmem:[#allocation23 + $0x1c] sm:$0xf]
        %v2165 = vld [vmem:[#allocation23 + $0x20] sm:$0xf]
        %v2166 = vld [vmem:[#allocation23 + $0x24] sm:$0xf]
        %v2167 = vld [vmem:[#allocation23 + $0x28] sm:$0xf]
        %v2168 = vld [vmem:[#allocation23 + $0x2c] sm:$0xf]
        %v2169 = vld [vmem:[#allocation23 + $0x30] sm:$0xf]
        %v2170 = vld [vmem:[#allocation23 + $0x34] sm:$0xf]
        %v2171 = vld [vmem:[#allocation23 + $0x38] sm:$0xf]
        %v2172 = vld [vmem:[#allocation23 + $0x3c] sm:$0xf]
        %v2173 = vld [vmem:[#allocation25] sm:$0x1]
        %v2174 = vpack.c.bf16 %v2142, %v2141
        %v2175 = vpack.c.bf16 %v2144, %v2143
        %v2176 = vpack.c.bf16 %v2146, %v2145
        %v2177 = vpack.c.bf16 %v2148, %v2147
        %v2178 = vpack.c.bf16 %v2150, %v2149
        %v2179 = vpack.c.bf16 %v2152, %v2151
        %v2180 = vpack.c.bf16 %v2154, %v2153
        %v2181 = vpack.c.bf16 %v2156, %v2155
        %v2183 = vlaneseq
        %v2184 = vshrl.u32 %v2183, 7
        %v2185 = vsub.s32 0, %v2184
        %v2186 = vrot.slane %v2173, %v2185
        %v2204 = vunpack.c.l.b16 %v2157
        %v2205 = vunpack.c.l.b16 %v2158
        %v2206 = vunpack.c.l.b16 %v2159
        %v2207 = vunpack.c.l.b16 %v2160
        %v2208 = vunpack.c.l.b16 %v2161
        %v2209 = vunpack.c.l.b16 %v2162
        %v2210 = vunpack.c.l.b16 %v2163
        %v2211 = vunpack.c.l.b16 %v2164
        %v2212 = vunpack.c.l.b16 %v2165
        %v2213 = vunpack.c.l.b16 %v2166
        %v2214 = vunpack.c.l.b16 %v2167
        %v2215 = vunpack.c.l.b16 %v2168
        %v2216 = vunpack.c.l.b16 %v2169
        %v2217 = vunpack.c.l.b16 %v2170
        %v2218 = vunpack.c.l.b16 %v2171
        %v2219 = vunpack.c.l.b16 %v2172
        %v2220 = vpack.c.b16 %v2205, %v2204
        %v2221 = vpack.c.b16 %v2207, %v2206
        %v2222 = vpack.c.b16 %v2209, %v2208
        %v2223 = vpack.c.b16 %v2211, %v2210
        %v2224 = vpack.c.b16 %v2213, %v2212
        %v2225 = vpack.c.b16 %v2215, %v2214
        %v2226 = vpack.c.b16 %v2217, %v2216
        %v2227 = vpack.c.b16 %v2219, %v2218
        %2236 = vmatprep.subr.bf16.mxu0 0
        %2237 = vmatpush1.bf16.msra.mxu0 %v2220
        %2238 = vmatprep.subr.bf16.mxu0 0
        %2239 = vmatpush1.bf16.msra.mxu0 %v2221
        %2240 = vmatprep.subr.bf16.mxu0 0
        %2241 = vmatpush1.bf16.msra.mxu0 %v2222
        %2242 = vmatprep.subr.bf16.mxu0 0
        %2243 = vmatpush1.bf16.msra.mxu0 %v2223
        %2244 = vmatprep.subr.bf16.mxu0 0
        %2245 = vmatpush1.bf16.msra.mxu0 %v2224
        %2246 = vmatprep.subr.bf16.mxu0 0
        %2247 = vmatpush1.bf16.msra.mxu0 %v2225
        %2248 = vmatprep.subr.bf16.mxu0 0
        %2249 = vmatpush1.bf16.msra.mxu0 %v2226
        %2250 = vmatprep.subr.bf16.mxu0 0
        %2251 = vmatpush1.bf16.msra.mxu0 %v2227
        %2252 = vmatprep.subr.bf16.mxu0 0
        %2253 = vmatpush1.bf16.msra.mxu0 0
        %2254 = vmatprep.subr.bf16.mxu0 0
        %2255 = vmatpush1.bf16.msra.mxu0 0
        %2256 = vmatprep.subr.bf16.mxu0 0
        %2257 = vmatpush1.bf16.msra.mxu0 0
        %2258 = vmatprep.subr.bf16.mxu0 0
        %2259 = vmatpush1.bf16.msra.mxu0 0
        %2260 = vmatprep.subr.bf16.mxu0 0
        %2261 = vmatpush1.bf16.msra.mxu0 0
        %2262 = vmatprep.subr.bf16.mxu0 0
        %2263 = vmatpush1.bf16.msra.mxu0 0
        %2264 = vmatprep.subr.bf16.mxu0 0
        %2265 = vmatpush1.bf16.msra.mxu0 0
        %2266 = vmatprep.subr.bf16.mxu0 0
        %2267 = vmatpush1.bf16.msra.mxu0 0
        %2268 = vmatprep.mubr.bf16.mxu0 0
        %2269 = vmatmul.mubr.bf16.gmra.mrb[0].mxu0 %v2174
        %v2270 = vpop.f32.mrb[0].mxu0
        %v2271 = vadd.f32 %v2186, %v2270
        %v2272 = vpop.f32.mrb[0].mxu0
        %v2273 = vpop.f32.mrb[0].mxu0
        %v2274 = vadd.f32 %v2186, %v2273
        %v2275 = vpop.f32.mrb[0].mxu0
        %2276 = vmatprep.mubr.bf16.mxu0 0
        %2277 = vmatmul.mubr.bf16.gmra.mrb[0].mxu0 %v2175
        %v2278 = vpop.f32.mrb[0].mxu0
        %v2279 = vadd.f32 %v2186, %v2278
        %v2280 = vpop.f32.mrb[0].mxu0
        %v2281 = vpop.f32.mrb[0].mxu0
        %v2282 = vadd.f32 %v2186, %v2281
        %v2283 = vpop.f32.mrb[0].mxu0
        %2284 = vmatprep.mubr.bf16.mxu0 0
        %2285 = vmatmul.mubr.bf16.gmra.mrb[0].mxu0 %v2176
        %v2286 = vpop.f32.mrb[0].mxu0
        %v2287 = vadd.f32 %v2186, %v2286
        %v2288 = vpop.f32.mrb[0].mxu0
        %v2289 = vpop.f32.mrb[0].mxu0
        %v2290 = vadd.f32 %v2186, %v2289
        %v2291 = vpop.f32.mrb[0].mxu0
        %2292 = vmatprep.mubr.bf16.mxu0 0
        %2293 = vmatmul.mubr.bf16.gmra.mrb[0].mxu0 %v2177
        %v2294 = vpop.f32.mrb[0].mxu0
        %v2295 = vadd.f32 %v2186, %v2294
        %v2296 = vpop.f32.mrb[0].mxu0
        %v2297 = vpop.f32.mrb[0].mxu0
        %v2298 = vadd.f32 %v2186, %v2297
        %v2299 = vpop.f32.mrb[0].mxu0
        %2300 = vmatprep.mubr.bf16.mxu0 0
        %2301 = vmatmul.mubr.bf16.gmra.mrb[0].mxu0 %v2178
        %v2302 = vpop.f32.mrb[0].mxu0
        %v2303 = vadd.f32 %v2186, %v2302
        %v2304 = vpop.f32.mrb[0].mxu0
        %v2305 = vpop.f32.mrb[0].mxu0
        %v2306 = vadd.f32 %v2186, %v2305
        %v2307 = vpop.f32.mrb[0].mxu0
        %2308 = vmatprep.mubr.bf16.mxu0 0
        %2309 = vmatmul.mubr.bf16.gmra.mrb[0].mxu0 %v2179
        %v2310 = vpop.f32.mrb[0].mxu0
        %v2311 = vadd.f32 %v2186, %v2310
        %v2312 = vpop.f32.mrb[0].mxu0
        %v2313 = vpop.f32.mrb[0].mxu0
        %v2314 = vadd.f32 %v2186, %v2313
        %v2315 = vpop.f32.mrb[0].mxu0
        %2316 = vmatprep.mubr.bf16.mxu0 0
        %2317 = vmatmul.mubr.bf16.gmra.mrb[0].mxu0 %v2180
        %v2318 = vpop.f32.mrb[0].mxu0
        %v2319 = vadd.f32 %v2186, %v2318
        %v2320 = vpop.f32.mrb[0].mxu0
        %v2321 = vpop.f32.mrb[0].mxu0
        %v2322 = vadd.f32 %v2186, %v2321
        %v2323 = vpop.f32.mrb[0].mxu0
        %2324 = vmatprep.mubr.bf16.mxu0 0
        %2325 = vmatmul.mubr.bf16.gmra.mrb[0].mxu0 %v2181
        %v2326 = vpop.f32.mrb[0].mxu0
        %v2327 = vadd.f32 %v2186, %v2326
        %v2328 = vpop.f32.mrb[0].mxu0
        %v2329 = vpop.f32.mrb[0].mxu0
        %v2330 = vadd.f32 %v2186, %v2329
        %v2331 = vpop.f32.mrb[0].mxu0
        %2332 = vdwg.mxu0
        %v2333 = vld [vmem:[#allocation26] sm:$0x1]
        %v2334 = vld [vmem:[#allocation28] sm:$0x1]
        %2335 = vadd.xlane.f32.xlu0 %v2271
        %v2336 = vpop.xlane.xlu0 %2335
        %2337 = vadd.xlane.f32.xlu0 %v2274
        %v2338 = vpop.xlane.xlu0 %2337
        %2339 = vadd.xlane.f32.xlu0 %v2279
        %v2340 = vpop.xlane.xlu0 %2339
        %2341 = vadd.xlane.f32.xlu0 %v2282
        %v2342 = vpop.xlane.xlu0 %2341
        %2343 = vadd.xlane.f32.xlu0 %v2287
        %v2344 = vpop.xlane.xlu0 %2343
        %2345 = vadd.xlane.f32.xlu0 %v2290
        %v2346 = vpop.xlane.xlu0 %2345
        %2347 = vadd.xlane.f32.xlu0 %v2295
        %v2348 = vpop.xlane.xlu0 %2347
        %2349 = vadd.xlane.f32.xlu0 %v2298
        %v2350 = vpop.xlane.xlu0 %2349
        %2351 = vadd.xlane.f32.xlu0 %v2303
        %v2352 = vpop.xlane.xlu0 %2351
        %2353 = vadd.xlane.f32.xlu0 %v2306
        %v2354 = vpop.xlane.xlu0 %2353
        %2355 = vadd.xlane.f32.xlu0 %v2311
        %v2356 = vpop.xlane.xlu0 %2355
        %2357 = vadd.xlane.f32.xlu0 %v2314
        %v2358 = vpop.xlane.xlu0 %2357
        %2359 = vadd.xlane.f32.xlu0 %v2319
        %v2360 = vpop.xlane.xlu0 %2359
        %2361 = vadd.xlane.f32.xlu0 %v2322
        %v2362 = vpop.xlane.xlu0 %2361
        %2363 = vadd.xlane.f32.xlu0 %v2327
        %v2364 = vpop.xlane.xlu0 %2363
        %2365 = vadd.xlane.f32.xlu0 %v2330
        %v2366 = vpop.xlane.xlu0 %2365
        %v2367 = vmul.f32 %v2336, %v1808
        %v2368 = vmul.f32 %v2338, %v1808
        %v2369 = vmul.f32 %v2340, %v1808
        %v2370 = vmul.f32 %v2342, %v1808
        %v2371 = vmul.f32 %v2344, %v1808
        %v2372 = vmul.f32 %v2346, %v1808
        %v2373 = vmul.f32 %v2348, %v1808
        %v2374 = vmul.f32 %v2350, %v1808
        %v2375 = vmul.f32 %v2352, %v1808
        %v2376 = vmul.f32 %v2354, %v1808
        %v2377 = vmul.f32 %v2356, %v1808
        %v2378 = vmul.f32 %v2358, %v1808
        %v2379 = vmul.f32 %v2360, %v1808
        %v2380 = vmul.f32 %v2362, %v1808
        %v2381 = vmul.f32 %v2364, %v1808
        %v2382 = vmul.f32 %v2366, %v1808
        %v2383 = vmul.f32 %v2271, %v2271
        %v2384 = vmul.f32 %v2274, %v2274
        %v2385 = vmul.f32 %v2279, %v2279
        %v2386 = vmul.f32 %v2282, %v2282
        %v2387 = vmul.f32 %v2287, %v2287
        %v2388 = vmul.f32 %v2290, %v2290
        %v2389 = vmul.f32 %v2295, %v2295
        %v2390 = vmul.f32 %v2298, %v2298
        %v2391 = vmul.f32 %v2303, %v2303
        %v2392 = vmul.f32 %v2306, %v2306
        %v2393 = vmul.f32 %v2311, %v2311
        %v2394 = vmul.f32 %v2314, %v2314
        %v2395 = vmul.f32 %v2319, %v2319
        %v2396 = vmul.f32 %v2322, %v2322
        %v2397 = vmul.f32 %v2327, %v2327
        %v2398 = vmul.f32 %v2330, %v2330
        %2399 = vadd.xlane.f32.xlu0 %v2383
        %v2400 = vpop.xlane.xlu0 %2399
        %2401 = vadd.xlane.f32.xlu0 %v2384
        %v2402 = vpop.xlane.xlu0 %2401
        %2403 = vadd.xlane.f32.xlu0 %v2385
        %v2404 = vpop.xlane.xlu0 %2403
        %2405 = vadd.xlane.f32.xlu0 %v2386
        %v2406 = vpop.xlane.xlu0 %2405
        %2407 = vadd.xlane.f32.xlu0 %v2387
        %v2408 = vpop.xlane.xlu0 %2407
        %2409 = vadd.xlane.f32.xlu0 %v2388
        %v2410 = vpop.xlane.xlu0 %2409
        %2411 = vadd.xlane.f32.xlu0 %v2389
        %v2412 = vpop.xlane.xlu0 %2411
        %2413 = vadd.xlane.f32.xlu0 %v2390
        %v2414 = vpop.xlane.xlu0 %2413
        %2415 = vadd.xlane.f32.xlu0 %v2391
        %v2416 = vpop.xlane.xlu0 %2415
        %2417 = vadd.xlane.f32.xlu0 %v2392
        %v2418 = vpop.xlane.xlu0 %2417
        %2419 = vadd.xlane.f32.xlu0 %v2393
        %v2420 = vpop.xlane.xlu0 %2419
        %2421 = vadd.xlane.f32.xlu0 %v2394
        %v2422 = vpop.xlane.xlu0 %2421
        %2423 = vadd.xlane.f32.xlu0 %v2395
        %v2424 = vpop.xlane.xlu0 %2423
        %2425 = vadd.xlane.f32.xlu0 %v2396
        %v2426 = vpop.xlane.xlu0 %2425
        %2427 = vadd.xlane.f32.xlu0 %v2397
        %v2428 = vpop.xlane.xlu0 %2427
        %2429 = vadd.xlane.f32.xlu0 %v2398
        %v2430 = vpop.xlane.xlu0 %2429
        %v2431 = vmul.f32 %v2400, %v1808
        %v2432 = vmul.f32 %v2402, %v1808
        %v2433 = vmul.f32 %v2404, %v1808
        %v2434 = vmul.f32 %v2406, %v1808
        %v2435 = vmul.f32 %v2408, %v1808
        %v2436 = vmul.f32 %v2410, %v1808
        %v2437 = vmul.f32 %v2412, %v1808
        %v2438 = vmul.f32 %v2414, %v1808
        %v2439 = vmul.f32 %v2416, %v1808
        %v2440 = vmul.f32 %v2418, %v1808
        %v2441 = vmul.f32 %v2420, %v1808
        %v2442 = vmul.f32 %v2422, %v1808
        %v2443 = vmul.f32 %v2424, %v1808
        %v2444 = vmul.f32 %v2426, %v1808
        %v2445 = vmul.f32 %v2428, %v1808
        %v2446 = vmul.f32 %v2430, %v1808
        %v2447 = vmul.f32 %v2367, %v2367
        %v2448 = vmul.f32 %v2368, %v2368
        %v2449 = vmul.f32 %v2369, %v2369
        %v2450 = vmul.f32 %v2370, %v2370
        %v2451 = vmul.f32 %v2371, %v2371
        %v2452 = vmul.f32 %v2372, %v2372
        %v2453 = vmul.f32 %v2373, %v2373
        %v2454 = vmul.f32 %v2374, %v2374
        %v2455 = vmul.f32 %v2375, %v2375
        %v2456 = vmul.f32 %v2376, %v2376
        %v2457 = vmul.f32 %v2377, %v2377
        %v2458 = vmul.f32 %v2378, %v2378
        %v2459 = vmul.f32 %v2379, %v2379
        %v2460 = vmul.f32 %v2380, %v2380
        %v2461 = vmul.f32 %v2381, %v2381
        %v2462 = vmul.f32 %v2382, %v2382
        %v2463 = vsub.f32 %v2431, %v2447
        %v2464 = vsub.f32 %v2432, %v2448
        %v2465 = vsub.f32 %v2433, %v2449
        %v2466 = vsub.f32 %v2434, %v2450
        %v2467 = vsub.f32 %v2435, %v2451
        %v2468 = vsub.f32 %v2436, %v2452
        %v2469 = vsub.f32 %v2437, %v2453
        %v2470 = vsub.f32 %v2438, %v2454
        %v2471 = vsub.f32 %v2439, %v2455
        %v2472 = vsub.f32 %v2440, %v2456
        %v2473 = vsub.f32 %v2441, %v2457
        %v2474 = vsub.f32 %v2442, %v2458
        %v2475 = vsub.f32 %v2443, %v2459
        %v2476 = vsub.f32 %v2444, %v2460
        %v2477 = vsub.f32 %v2445, %v2461
        %v2478 = vsub.f32 %v2446, %v2462
        %v2479 = vsub.f32 %v2271, %v2367
        %v2480 = vsub.f32 %v2274, %v2368
        %v2481 = vsub.f32 %v2279, %v2369
        %v2482 = vsub.f32 %v2282, %v2370
        %v2483 = vsub.f32 %v2287, %v2371
        %v2484 = vsub.f32 %v2290, %v2372
        %v2485 = vsub.f32 %v2295, %v2373
        %v2486 = vsub.f32 %v2298, %v2374
        %v2487 = vsub.f32 %v2303, %v2375
        %v2488 = vsub.f32 %v2306, %v2376
        %v2489 = vsub.f32 %v2311, %v2377
        %v2490 = vsub.f32 %v2314, %v2378
        %v2491 = vsub.f32 %v2319, %v2379
        %v2492 = vsub.f32 %v2322, %v2380
        %v2493 = vsub.f32 %v2327, %v2381
        %v2494 = vsub.f32 %v2330, %v2382
        %v2495 = vadd.f32 %v2463, 1e-05
        %v2496 = vadd.f32 %v2464, 1e-05
        %v2497 = vadd.f32 %v2465, 1e-05
        %v2498 = vadd.f32 %v2466, 1e-05
        %v2499 = vadd.f32 %v2467, 1e-05
        %v2500 = vadd.f32 %v2468, 1e-05
        %v2501 = vadd.f32 %v2469, 1e-05
        %v2502 = vadd.f32 %v2470, 1e-05
        %v2503 = vadd.f32 %v2471, 1e-05
        %v2504 = vadd.f32 %v2472, 1e-05
        %v2505 = vadd.f32 %v2473, 1e-05
        %v2506 = vadd.f32 %v2474, 1e-05
        %v2507 = vadd.f32 %v2475, 1e-05
        %v2508 = vadd.f32 %v2476, 1e-05
        %v2509 = vadd.f32 %v2477, 1e-05
        %v2510 = vadd.f32 %v2478, 1e-05
        %v2511 = vrsqrt.pop %v2495
        %v2512 = vrsqrt.pop %v2496
        %v2513 = vrsqrt.pop %v2497
        %v2514 = vrsqrt.pop %v2498
        %v2515 = vrsqrt.pop %v2499
        %v2516 = vrsqrt.pop %v2500
        %v2517 = vrsqrt.pop %v2501
        %v2518 = vrsqrt.pop %v2502
        %v2519 = vrsqrt.pop %v2503
        %v2520 = vrsqrt.pop %v2504
        %v2521 = vrsqrt.pop %v2505
        %v2522 = vrsqrt.pop %v2506
        %v2523 = vrsqrt.pop %v2507
        %v2524 = vrsqrt.pop %v2508
        %v2525 = vrsqrt.pop %v2509
        %v2526 = vrsqrt.pop %v2510
        %v2527 = vmul.f32 %v2479, %v2511
        %v2528 = vmul.f32 %v2480, %v2512
        %v2529 = vmul.f32 %v2481, %v2513
        %v2530 = vmul.f32 %v2482, %v2514
        %v2531 = vmul.f32 %v2483, %v2515
        %v2532 = vmul.f32 %v2484, %v2516
        %v2533 = vmul.f32 %v2485, %v2517
        %v2534 = vmul.f32 %v2486, %v2518
        %v2535 = vmul.f32 %v2487, %v2519
        %v2536 = vmul.f32 %v2488, %v2520
        %v2537 = vmul.f32 %v2489, %v2521
        %v2538 = vmul.f32 %v2490, %v2522
        %v2539 = vmul.f32 %v2491, %v2523
        %v2540 = vmul.f32 %v2492, %v2524
        %v2541 = vmul.f32 %v2493, %v2525
        %v2542 = vmul.f32 %v2494, %v2526
        %v2544 = vlaneseq
        %v2545 = vshrl.u32 %v2544, 7
        %v2546 = vsub.s32 0, %v2545
        %v2547 = vrot.slane %v2333, %v2546
        %v2549 = vmul.f32 %v2527, %v2547
        %v2550 = vmul.f32 %v2528, %v2547
        %v2551 = vmul.f32 %v2529, %v2547
        %v2552 = vmul.f32 %v2530, %v2547
        %v2553 = vmul.f32 %v2531, %v2547
        %v2554 = vmul.f32 %v2532, %v2547
        %v2555 = vmul.f32 %v2533, %v2547
        %v2556 = vmul.f32 %v2534, %v2547
        %v2557 = vmul.f32 %v2535, %v2547
        %v2558 = vmul.f32 %v2536, %v2547
        %v2559 = vmul.f32 %v2537, %v2547
        %v2560 = vmul.f32 %v2538, %v2547
        %v2561 = vmul.f32 %v2539, %v2547
        %v2562 = vmul.f32 %v2540, %v2547
        %v2563 = vmul.f32 %v2541, %v2547
        %v2564 = vmul.f32 %v2542, %v2547
        %v2566 = vlaneseq
        %v2567 = vshrl.u32 %v2566, 7
        %v2568 = vsub.s32 0, %v2567
        %v2569 = vrot.slane %v2334, %v2568
        %v2571 = vadd.f32 %v2549, %v2569
        %v2572 = vadd.f32 %v2550, %v2569
        %v2573 = vadd.f32 %v2551, %v2569
        %v2574 = vadd.f32 %v2552, %v2569
        %v2575 = vadd.f32 %v2553, %v2569
        %v2576 = vadd.f32 %v2554, %v2569
        %v2577 = vadd.f32 %v2555, %v2569
        %v2578 = vadd.f32 %v2556, %v2569
        %v2579 = vadd.f32 %v2557, %v2569
        %v2580 = vadd.f32 %v2558, %v2569
        %v2581 = vadd.f32 %v2559, %v2569
        %v2582 = vadd.f32 %v2560, %v2569
        %v2583 = vadd.f32 %v2561, %v2569
        %v2584 = vadd.f32 %v2562, %v2569
        %v2585 = vadd.f32 %v2563, %v2569
        %v2586 = vadd.f32 %v2564, %v2569
        %v2587 = vxor.u32 %v2571, 2147483648
        %v2588 = vxor.u32 %v2572, 2147483648
        %v2589 = vxor.u32 %v2573, 2147483648
        %v2590 = vxor.u32 %v2574, 2147483648
        %v2591 = vxor.u32 %v2575, 2147483648
        %v2592 = vxor.u32 %v2576, 2147483648
        %v2593 = vxor.u32 %v2577, 2147483648
        %v2594 = vxor.u32 %v2578, 2147483648
        %v2595 = vxor.u32 %v2579, 2147483648
        %v2596 = vxor.u32 %v2580, 2147483648
        %v2597 = vxor.u32 %v2581, 2147483648
        %v2598 = vxor.u32 %v2582, 2147483648
        %v2599 = vxor.u32 %v2583, 2147483648
        %v2600 = vxor.u32 %v2584, 2147483648
        %v2601 = vxor.u32 %v2585, 2147483648
        %v2602 = vxor.u32 %v2586, 2147483648
        %v2603 = vmul.f32 %v2587, 1.442695
        %v2604 = vpow.pop %v2603
        %v2605 = vmul.f32 %v2588, 1.442695
        %v2606 = vpow.pop %v2605
        %v2607 = vmul.f32 %v2589, 1.442695
        %v2608 = vpow.pop %v2607
        %v2609 = vmul.f32 %v2590, 1.442695
        %v2610 = vpow.pop %v2609
        %v2611 = vmul.f32 %v2591, 1.442695
        %v2612 = vpow.pop %v2611
        %v2613 = vmul.f32 %v2592, 1.442695
        %v2614 = vpow.pop %v2613
        %v2615 = vmul.f32 %v2593, 1.442695
        %v2616 = vpow.pop %v2615
        %v2617 = vmul.f32 %v2594, 1.442695
        %v2618 = vpow.pop %v2617
        %v2619 = vmul.f32 %v2595, 1.442695
        %v2620 = vpow.pop %v2619
        %v2621 = vmul.f32 %v2596, 1.442695
        %v2622 = vpow.pop %v2621
        %v2623 = vmul.f32 %v2597, 1.442695
        %v2624 = vpow.pop %v2623
        %v2625 = vmul.f32 %v2598, 1.442695
        %v2626 = vpow.pop %v2625
        %v2627 = vmul.f32 %v2599, 1.442695
        %v2628 = vpow.pop %v2627
        %v2629 = vmul.f32 %v2600, 1.442695
        %v2630 = vpow.pop %v2629
        %v2631 = vmul.f32 %v2601, 1.442695
        %v2632 = vpow.pop %v2631
        %v2633 = vmul.f32 %v2602, 1.442695
        %v2634 = vpow.pop %v2633
        %v2635 = vadd.f32 %v2604, 1.0
        %v2636 = vadd.f32 %v2606, 1.0
        %v2637 = vadd.f32 %v2608, 1.0
        %v2638 = vadd.f32 %v2610, 1.0
        %v2639 = vadd.f32 %v2612, 1.0
        %v2640 = vadd.f32 %v2614, 1.0
        %v2641 = vadd.f32 %v2616, 1.0
        %v2642 = vadd.f32 %v2618, 1.0
        %v2643 = vadd.f32 %v2620, 1.0
        %v2644 = vadd.f32 %v2622, 1.0
        %v2645 = vadd.f32 %v2624, 1.0
        %v2646 = vadd.f32 %v2626, 1.0
        %v2647 = vadd.f32 %v2628, 1.0
        %v2648 = vadd.f32 %v2630, 1.0
        %v2649 = vadd.f32 %v2632, 1.0
        %v2650 = vadd.f32 %v2634, 1.0
        %v2651 = vrcp.pop %v2635
        %v2652 = vmul.f32 1.0, %v2651
        %v2653 = vrcp.pop %v2636
        %v2654 = vmul.f32 1.0, %v2653
        %v2655 = vrcp.pop %v2637
        %v2656 = vmul.f32 1.0, %v2655
        %v2657 = vrcp.pop %v2638
        %v2658 = vmul.f32 1.0, %v2657
        %v2659 = vrcp.pop %v2639
        %v2660 = vmul.f32 1.0, %v2659
        %v2661 = vrcp.pop %v2640
        %v2662 = vmul.f32 1.0, %v2661
        %v2663 = vrcp.pop %v2641
        %v2664 = vmul.f32 1.0, %v2663
        %v2665 = vrcp.pop %v2642
        %v2666 = vmul.f32 1.0, %v2665
        %v2667 = vrcp.pop %v2643
        %v2668 = vmul.f32 1.0, %v2667
        %v2669 = vrcp.pop %v2644
        %v2670 = vmul.f32 1.0, %v2669
        %v2671 = vrcp.pop %v2645
        %v2672 = vmul.f32 1.0, %v2671
        %v2673 = vrcp.pop %v2646
        %v2674 = vmul.f32 1.0, %v2673
        %v2675 = vrcp.pop %v2647
        %v2676 = vmul.f32 1.0, %v2675
        %v2677 = vrcp.pop %v2648
        %v2678 = vmul.f32 1.0, %v2677
        %v2679 = vrcp.pop %v2649
        %v2680 = vmul.f32 1.0, %v2679
        %v2681 = vrcp.pop %v2650
        %v2682 = vmul.f32 1.0, %v2681
        %v2683 = vmul.f32 %v2571, %v2652
        %v2684 = vmul.f32 %v2572, %v2654
        %v2685 = vmul.f32 %v2573, %v2656
        %v2686 = vmul.f32 %v2574, %v2658
        %v2687 = vmul.f32 %v2575, %v2660
        %v2688 = vmul.f32 %v2576, %v2662
        %v2689 = vmul.f32 %v2577, %v2664
        %v2690 = vmul.f32 %v2578, %v2666
        %v2691 = vmul.f32 %v2579, %v2668
        %v2692 = vmul.f32 %v2580, %v2670
        %v2693 = vmul.f32 %v2581, %v2672
        %v2694 = vmul.f32 %v2582, %v2674
        %v2695 = vmul.f32 %v2583, %v2676
        %v2696 = vmul.f32 %v2584, %v2678
        %v2697 = vmul.f32 %v2585, %v2680
        %v2698 = vmul.f32 %v2586, %v2682
        %v2699 = vadd.f32 %v2141, %v2683
        %v2700 = vadd.f32 %v2142, %v2684
        %v2701 = vadd.f32 %v2143, %v2685
        %v2702 = vadd.f32 %v2144, %v2686
        %v2703 = vadd.f32 %v2145, %v2687
        %v2704 = vadd.f32 %v2146, %v2688
        %v2705 = vadd.f32 %v2147, %v2689
        %v2706 = vadd.f32 %v2148, %v2690
        %v2707 = vadd.f32 %v2149, %v2691
        %v2708 = vadd.f32 %v2150, %v2692
        %v2709 = vadd.f32 %v2151, %v2693
        %v2710 = vadd.f32 %v2152, %v2694
        %v2711 = vadd.f32 %v2153, %v2695
        %v2712 = vadd.f32 %v2154, %v2696
        %v2713 = vadd.f32 %v2155, %v2697
        %v2714 = vadd.f32 %v2156, %v2698
        %v2715 = vadd.f32 %v2699, %v1566
        %v2716 = vadd.f32 %v2700, %v1567
        %v2717 = vadd.f32 %v2701, %v1568
        %v2718 = vadd.f32 %v2702, %v1569
        %v2719 = vadd.f32 %v2703, %v1570
        %v2720 = vadd.f32 %v2704, %v1571
        %v2721 = vadd.f32 %v2705, %v1572
        %v2722 = vadd.f32 %v2706, %v1573
        %v2723 = vadd.f32 %v2707, %v1574
        %v2724 = vadd.f32 %v2708, %v1575
        %v2725 = vadd.f32 %v2709, %v1576
        %v2726 = vadd.f32 %v2710, %v1577
        %v2727 = vadd.f32 %v2711, %v1578
        %v2728 = vadd.f32 %v2712, %v1579
        %v2729 = vadd.f32 %v2713, %v1580
        %v2730 = vadd.f32 %v2714, %v1581
        %s2731 = scalar_lea.vmem [#allocation23], 64
        %v2732 = vld [vmem:[%s2731] sm:$0xf]
        %v2733 = vld [vmem:[%s2731 + $0x4] sm:$0xf]
        %v2734 = vld [vmem:[%s2731 + $0x8] sm:$0xf]
        %v2735 = vld [vmem:[%s2731 + $0xc] sm:$0xf]
        %v2736 = vld [vmem:[%s2731 + $0x10] sm:$0xf]
        %v2737 = vld [vmem:[%s2731 + $0x14] sm:$0xf]
        %v2738 = vld [vmem:[%s2731 + $0x18] sm:$0xf]
        %v2739 = vld [vmem:[%s2731 + $0x1c] sm:$0xf]
        %v2740 = vld [vmem:[%s2731 + $0x20] sm:$0xf]
        %v2741 = vld [vmem:[%s2731 + $0x24] sm:$0xf]
        %v2742 = vld [vmem:[%s2731 + $0x28] sm:$0xf]
        %v2743 = vld [vmem:[%s2731 + $0x2c] sm:$0xf]
        %v2744 = vld [vmem:[%s2731 + $0x30] sm:$0xf]
        %v2745 = vld [vmem:[%s2731 + $0x34] sm:$0xf]
        %v2746 = vld [vmem:[%s2731 + $0x38] sm:$0xf]
        %v2747 = vld [vmem:[%s2731 + $0x3c] sm:$0xf]
        %s2748 = scalar_lea.vmem [#allocation25], 1
        %v2749 = vld [vmem:[%s2748] sm:$0x1]
        %v2750 = vpack.c.bf16 %v2716, %v2715
        %v2751 = vpack.c.bf16 %v2718, %v2717
        %v2752 = vpack.c.bf16 %v2720, %v2719
        %v2753 = vpack.c.bf16 %v2722, %v2721
        %v2754 = vpack.c.bf16 %v2724, %v2723
        %v2755 = vpack.c.bf16 %v2726, %v2725
        %v2756 = vpack.c.bf16 %v2728, %v2727
        %v2757 = vpack.c.bf16 %v2730, %v2729
        %v2759 = vlaneseq
        %v2760 = vshrl.u32 %v2759, 7
        %v2761 = vsub.s32 0, %v2760
        %v2762 = vrot.slane %v2749, %v2761
        %v2780 = vunpack.c.l.b16 %v2732
        %v2781 = vunpack.c.l.b16 %v2733
        %v2782 = vunpack.c.l.b16 %v2734
        %v2783 = vunpack.c.l.b16 %v2735
        %v2784 = vunpack.c.l.b16 %v2736
        %v2785 = vunpack.c.l.b16 %v2737
        %v2786 = vunpack.c.l.b16 %v2738
        %v2787 = vunpack.c.l.b16 %v2739
        %v2788 = vunpack.c.l.b16 %v2740
        %v2789 = vunpack.c.l.b16 %v2741
        %v2790 = vunpack.c.l.b16 %v2742
        %v2791 = vunpack.c.l.b16 %v2743
        %v2792 = vunpack.c.l.b16 %v2744
        %v2793 = vunpack.c.l.b16 %v2745
        %v2794 = vunpack.c.l.b16 %v2746
        %v2795 = vunpack.c.l.b16 %v2747
        %v2796 = vpack.c.b16 %v2781, %v2780
        %v2797 = vpack.c.b16 %v2783, %v2782
        %v2798 = vpack.c.b16 %v2785, %v2784
        %v2799 = vpack.c.b16 %v2787, %v2786
        %v2800 = vpack.c.b16 %v2789, %v2788
        %v2801 = vpack.c.b16 %v2791, %v2790
        %v2802 = vpack.c.b16 %v2793, %v2792
        %v2803 = vpack.c.b16 %v2795, %v2794
        %2812 = vmatprep.subr.bf16.mxu0 0
        %2813 = vmatpush1.bf16.msra.mxu0 %v2796
        %2814 = vmatprep.subr.bf16.mxu0 0
        %2815 = vmatpush1.bf16.msra.mxu0 %v2797
        %2816 = vmatprep.subr.bf16.mxu0 0
        %2817 = vmatpush1.bf16.msra.mxu0 %v2798
        %2818 = vmatprep.subr.bf16.mxu0 0
        %2819 = vmatpush1.bf16.msra.mxu0 %v2799
        %2820 = vmatprep.subr.bf16.mxu0 0
        %2821 = vmatpush1.bf16.msra.mxu0 %v2800
        %2822 = vmatprep.subr.bf16.mxu0 0
        %2823 = vmatpush1.bf16.msra.mxu0 %v2801
        %2824 = vmatprep.subr.bf16.mxu0 0
        %2825 = vmatpush1.bf16.msra.mxu0 %v2802
        %2826 = vmatprep.subr.bf16.mxu0 0
        %2827 = vmatpush1.bf16.msra.mxu0 %v2803
        %2828 = vmatprep.subr.bf16.mxu0 0
        %2829 = vmatpush1.bf16.msra.mxu0 0
        %2830 = vmatprep.subr.bf16.mxu0 0
        %2831 = vmatpush1.bf16.msra.mxu0 0
        %2832 = vmatprep.subr.bf16.mxu0 0
        %2833 = vmatpush1.bf16.msra.mxu0 0
        %2834 = vmatprep.subr.bf16.mxu0 0
        %2835 = vmatpush1.bf16.msra.mxu0 0
        %2836 = vmatprep.subr.bf16.mxu0 0
        %2837 = vmatpush1.bf16.msra.mxu0 0
        %2838 = vmatprep.subr.bf16.mxu0 0
        %2839 = vmatpush1.bf16.msra.mxu0 0
        %2840 = vmatprep.subr.bf16.mxu0 0
        %2841 = vmatpush1.bf16.msra.mxu0 0
        %2842 = vmatprep.subr.bf16.mxu0 0
        %2843 = vmatpush1.bf16.msra.mxu0 0
        %2844 = vmatprep.mubr.bf16.mxu0 0
        %2845 = vmatmul.mubr.bf16.gmra.mrb[0].mxu0 %v2750
        %v2846 = vpop.f32.mrb[0].mxu0
        %v2847 = vadd.f32 %v2762, %v2846
        %v2848 = vpop.f32.mrb[0].mxu0
        %v2849 = vpop.f32.mrb[0].mxu0
        %v2850 = vadd.f32 %v2762, %v2849
        %v2851 = vpop.f32.mrb[0].mxu0
        %2852 = vmatprep.mubr.bf16.mxu0 0
        %2853 = vmatmul.mubr.bf16.gmra.mrb[0].mxu0 %v2751
        %v2854 = vpop.f32.mrb[0].mxu0
        %v2855 = vadd.f32 %v2762, %v2854
        %v2856 = vpop.f32.mrb[0].mxu0
        %v2857 = vpop.f32.mrb[0].mxu0
        %v2858 = vadd.f32 %v2762, %v2857
        %v2859 = vpop.f32.mrb[0].mxu0
        %2860 = vmatprep.mubr.bf16.mxu0 0
        %2861 = vmatmul.mubr.bf16.gmra.mrb[0].mxu0 %v2752
        %v2862 = vpop.f32.mrb[0].mxu0
        %v2863 = vadd.f32 %v2762, %v2862
        %v2864 = vpop.f32.mrb[0].mxu0
        %v2865 = vpop.f32.mrb[0].mxu0
        %v2866 = vadd.f32 %v2762, %v2865
        %v2867 = vpop.f32.mrb[0].mxu0
        %2868 = vmatprep.mubr.bf16.mxu0 0
        %2869 = vmatmul.mubr.bf16.gmra.mrb[0].mxu0 %v2753
        %v2870 = vpop.f32.mrb[0].mxu0
        %v2871 = vadd.f32 %v2762, %v2870
        %v2872 = vpop.f32.mrb[0].mxu0
        %v2873 = vpop.f32.mrb[0].mxu0
        %v2874 = vadd.f32 %v2762, %v2873
        %v2875 = vpop.f32.mrb[0].mxu0
        %2876 = vmatprep.mubr.bf16.mxu0 0
        %2877 = vmatmul.mubr.bf16.gmra.mrb[0].mxu0 %v2754
        %v2878 = vpop.f32.mrb[0].mxu0
        %v2879 = vadd.f32 %v2762, %v2878
        %v2880 = vpop.f32.mrb[0].mxu0
        %v2881 = vpop.f32.mrb[0].mxu0
        %v2882 = vadd.f32 %v2762, %v2881
        %v2883 = vpop.f32.mrb[0].mxu0
        %2884 = vmatprep.mubr.bf16.mxu0 0
        %2885 = vmatmul.mubr.bf16.gmra.mrb[0].mxu0 %v2755
        %v2886 = vpop.f32.mrb[0].mxu0
        %v2887 = vadd.f32 %v2762, %v2886
        %v2888 = vpop.f32.mrb[0].mxu0
        %v2889 = vpop.f32.mrb[0].mxu0
        %v2890 = vadd.f32 %v2762, %v2889
        %v2891 = vpop.f32.mrb[0].mxu0
        %2892 = vmatprep.mubr.bf16.mxu0 0
        %2893 = vmatmul.mubr.bf16.gmra.mrb[0].mxu0 %v2756
        %v2894 = vpop.f32.mrb[0].mxu0
        %v2895 = vadd.f32 %v2762, %v2894
        %v2896 = vpop.f32.mrb[0].mxu0
        %v2897 = vpop.f32.mrb[0].mxu0
        %v2898 = vadd.f32 %v2762, %v2897
        %v2899 = vpop.f32.mrb[0].mxu0
        %2900 = vmatprep.mubr.bf16.mxu0 0
        %2901 = vmatmul.mubr.bf16.gmra.mrb[0].mxu0 %v2757
        %v2902 = vpop.f32.mrb[0].mxu0
        %v2903 = vadd.f32 %v2762, %v2902
        %v2904 = vpop.f32.mrb[0].mxu0
        %v2905 = vpop.f32.mrb[0].mxu0
        %v2906 = vadd.f32 %v2762, %v2905
        %v2907 = vpop.f32.mrb[0].mxu0
        %2908 = vdwg.mxu0
        %s2909 = scalar_lea.vmem [#allocation26], 1
        %v2910 = vld [vmem:[%s2909] sm:$0x1]
        %s2911 = scalar_lea.vmem [#allocation28], 1
        %v2912 = vld [vmem:[%s2911] sm:$0x1]
        %2913 = vadd.xlane.f32.xlu0 %v2847
        %v2914 = vpop.xlane.xlu0 %2913
        %2915 = vadd.xlane.f32.xlu0 %v2850
        %v2916 = vpop.xlane.xlu0 %2915
        %2917 = vadd.xlane.f32.xlu0 %v2855
        %v2918 = vpop.xlane.xlu0 %2917
        %2919 = vadd.xlane.f32.xlu0 %v2858
        %v2920 = vpop.xlane.xlu0 %2919
        %2921 = vadd.xlane.f32.xlu0 %v2863
        %v2922 = vpop.xlane.xlu0 %2921
        %2923 = vadd.xlane.f32.xlu0 %v2866
        %v2924 = vpop.xlane.xlu0 %2923
        %2925 = vadd.xlane.f32.xlu0 %v2871
        %v2926 = vpop.xlane.xlu0 %2925
        %2927 = vadd.xlane.f32.xlu0 %v2874
        %v2928 = vpop.xlane.xlu0 %2927
        %2929 = vadd.xlane.f32.xlu0 %v2879
        %v2930 = vpop.xlane.xlu0 %2929
        %2931 = vadd.xlane.f32.xlu0 %v2882
        %v2932 = vpop.xlane.xlu0 %2931
        %2933 = vadd.xlane.f32.xlu0 %v2887
        %v2934 = vpop.xlane.xlu0 %2933
        %2935 = vadd.xlane.f32.xlu0 %v2890
        %v2936 = vpop.xlane.xlu0 %2935
        %2937 = vadd.xlane.f32.xlu0 %v2895
        %v2938 = vpop.xlane.xlu0 %2937
        %2939 = vadd.xlane.f32.xlu0 %v2898
        %v2940 = vpop.xlane.xlu0 %2939
        %2941 = vadd.xlane.f32.xlu0 %v2903
        %v2942 = vpop.xlane.xlu0 %2941
        %2943 = vadd.xlane.f32.xlu0 %v2906
        %v2944 = vpop.xlane.xlu0 %2943
        %v2945 = vmul.f32 %v2914, %v1808
        %v2946 = vmul.f32 %v2916, %v1808
        %v2947 = vmul.f32 %v2918, %v1808
        %v2948 = vmul.f32 %v2920, %v1808
        %v2949 = vmul.f32 %v2922, %v1808
        %v2950 = vmul.f32 %v2924, %v1808
        %v2951 = vmul.f32 %v2926, %v1808
        %v2952 = vmul.f32 %v2928, %v1808
        %v2953 = vmul.f32 %v2930, %v1808
        %v2954 = vmul.f32 %v2932, %v1808
        %v2955 = vmul.f32 %v2934, %v1808
        %v2956 = vmul.f32 %v2936, %v1808
        %v2957 = vmul.f32 %v2938, %v1808
        %v2958 = vmul.f32 %v2940, %v1808
        %v2959 = vmul.f32 %v2942, %v1808
        %v2960 = vmul.f32 %v2944, %v1808
        %v2961 = vmul.f32 %v2847, %v2847
        %v2962 = vmul.f32 %v2850, %v2850
        %v2963 = vmul.f32 %v2855, %v2855
        %v2964 = vmul.f32 %v2858, %v2858
        %v2965 = vmul.f32 %v2863, %v2863
        %v2966 = vmul.f32 %v2866, %v2866
        %v2967 = vmul.f32 %v2871, %v2871
        %v2968 = vmul.f32 %v2874, %v2874
        %v2969 = vmul.f32 %v2879, %v2879
        %v2970 = vmul.f32 %v2882, %v2882
        %v2971 = vmul.f32 %v2887, %v2887
        %v2972 = vmul.f32 %v2890, %v2890
        %v2973 = vmul.f32 %v2895, %v2895
        %v2974 = vmul.f32 %v2898, %v2898
        %v2975 = vmul.f32 %v2903, %v2903
        %v2976 = vmul.f32 %v2906, %v2906
        %2977 = vadd.xlane.f32.xlu0 %v2961
        %v2978 = vpop.xlane.xlu0 %2977
        %2979 = vadd.xlane.f32.xlu0 %v2962
        %v2980 = vpop.xlane.xlu0 %2979
        %2981 = vadd.xlane.f32.xlu0 %v2963
        %v2982 = vpop.xlane.xlu0 %2981
        %2983 = vadd.xlane.f32.xlu0 %v2964
        %v2984 = vpop.xlane.xlu0 %2983
        %2985 = vadd.xlane.f32.xlu0 %v2965
        %v2986 = vpop.xlane.xlu0 %2985
        %2987 = vadd.xlane.f32.xlu0 %v2966
        %v2988 = vpop.xlane.xlu0 %2987
        %2989 = vadd.xlane.f32.xlu0 %v2967
        %v2990 = vpop.xlane.xlu0 %2989
        %2991 = vadd.xlane.f32.xlu0 %v2968
        %v2992 = vpop.xlane.xlu0 %2991
        %2993 = vadd.xlane.f32.xlu0 %v2969
        %v2994 = vpop.xlane.xlu0 %2993
        %2995 = vadd.xlane.f32.xlu0 %v2970
        %v2996 = vpop.xlane.xlu0 %2995
        %2997 = vadd.xlane.f32.xlu0 %v2971
        %v2998 = vpop.xlane.xlu0 %2997
        %2999 = vadd.xlane.f32.xlu0 %v2972
        %v3000 = vpop.xlane.xlu0 %2999
        %3001 = vadd.xlane.f32.xlu0 %v2973
        %v3002 = vpop.xlane.xlu0 %3001
        %3003 = vadd.xlane.f32.xlu0 %v2974
        %v3004 = vpop.xlane.xlu0 %3003
        %3005 = vadd.xlane.f32.xlu0 %v2975
        %v3006 = vpop.xlane.xlu0 %3005
        %3007 = vadd.xlane.f32.xlu0 %v2976
        %v3008 = vpop.xlane.xlu0 %3007
        %v3009 = vmul.f32 %v2978, %v1808
        %v3010 = vmul.f32 %v2980, %v1808
        %v3011 = vmul.f32 %v2982, %v1808
        %v3012 = vmul.f32 %v2984, %v1808
        %v3013 = vmul.f32 %v2986, %v1808
        %v3014 = vmul.f32 %v2988, %v1808
        %v3015 = vmul.f32 %v2990, %v1808
        %v3016 = vmul.f32 %v2992, %v1808
        %v3017 = vmul.f32 %v2994, %v1808
        %v3018 = vmul.f32 %v2996, %v1808
        %v3019 = vmul.f32 %v2998, %v1808
        %v3020 = vmul.f32 %v3000, %v1808
        %v3021 = vmul.f32 %v3002, %v1808
        %v3022 = vmul.f32 %v3004, %v1808
        %v3023 = vmul.f32 %v3006, %v1808
        %v3024 = vmul.f32 %v3008, %v1808
        %v3025 = vmul.f32 %v2945, %v2945
        %v3026 = vmul.f32 %v2946, %v2946
        %v3027 = vmul.f32 %v2947, %v2947
        %v3028 = vmul.f32 %v2948, %v2948
        %v3029 = vmul.f32 %v2949, %v2949
        %v3030 = vmul.f32 %v2950, %v2950
        %v3031 = vmul.f32 %v2951, %v2951
        %v3032 = vmul.f32 %v2952, %v2952
        %v3033 = vmul.f32 %v2953, %v2953
        %v3034 = vmul.f32 %v2954, %v2954
        %v3035 = vmul.f32 %v2955, %v2955
        %v3036 = vmul.f32 %v2956, %v2956
        %v3037 = vmul.f32 %v2957, %v2957
        %v3038 = vmul.f32 %v2958, %v2958
        %v3039 = vmul.f32 %v2959, %v2959
        %v3040 = vmul.f32 %v2960, %v2960
        %v3041 = vsub.f32 %v3009, %v3025
        %v3042 = vsub.f32 %v3010, %v3026
        %v3043 = vsub.f32 %v3011, %v3027
        %v3044 = vsub.f32 %v3012, %v3028
        %v3045 = vsub.f32 %v3013, %v3029
        %v3046 = vsub.f32 %v3014, %v3030
        %v3047 = vsub.f32 %v3015, %v3031
        %v3048 = vsub.f32 %v3016, %v3032
        %v3049 = vsub.f32 %v3017, %v3033
        %v3050 = vsub.f32 %v3018, %v3034
        %v3051 = vsub.f32 %v3019, %v3035
        %v3052 = vsub.f32 %v3020, %v3036
        %v3053 = vsub.f32 %v3021, %v3037
        %v3054 = vsub.f32 %v3022, %v3038
        %v3055 = vsub.f32 %v3023, %v3039
        %v3056 = vsub.f32 %v3024, %v3040
        %v3057 = vsub.f32 %v2847, %v2945
        %v3058 = vsub.f32 %v2850, %v2946
        %v3059 = vsub.f32 %v2855, %v2947
        %v3060 = vsub.f32 %v2858, %v2948
        %v3061 = vsub.f32 %v2863, %v2949
        %v3062 = vsub.f32 %v2866, %v2950
        %v3063 = vsub.f32 %v2871, %v2951
        %v3064 = vsub.f32 %v2874, %v2952
        %v3065 = vsub.f32 %v2879, %v2953
        %v3066 = vsub.f32 %v2882, %v2954
        %v3067 = vsub.f32 %v2887, %v2955
        %v3068 = vsub.f32 %v2890, %v2956
        %v3069 = vsub.f32 %v2895, %v2957
        %v3070 = vsub.f32 %v2898, %v2958
        %v3071 = vsub.f32 %v2903, %v2959
        %v3072 = vsub.f32 %v2906, %v2960
        %v3073 = vadd.f32 %v3041, 1e-05
        %v3074 = vadd.f32 %v3042, 1e-05
        %v3075 = vadd.f32 %v3043, 1e-05
        %v3076 = vadd.f32 %v3044, 1e-05
        %v3077 = vadd.f32 %v3045, 1e-05
        %v3078 = vadd.f32 %v3046, 1e-05
        %v3079 = vadd.f32 %v3047, 1e-05
        %v3080 = vadd.f32 %v3048, 1e-05
        %v3081 = vadd.f32 %v3049, 1e-05
        %v3082 = vadd.f32 %v3050, 1e-05
        %v3083 = vadd.f32 %v3051, 1e-05
        %v3084 = vadd.f32 %v3052, 1e-05
        %v3085 = vadd.f32 %v3053, 1e-05
        %v3086 = vadd.f32 %v3054, 1e-05
        %v3087 = vadd.f32 %v3055, 1e-05
        %v3088 = vadd.f32 %v3056, 1e-05
        %v3089 = vrsqrt.pop %v3073
        %v3090 = vrsqrt.pop %v3074
        %v3091 = vrsqrt.pop %v3075
        %v3092 = vrsqrt.pop %v3076
        %v3093 = vrsqrt.pop %v3077
        %v3094 = vrsqrt.pop %v3078
        %v3095 = vrsqrt.pop %v3079
        %v3096 = vrsqrt.pop %v3080
        %v3097 = vrsqrt.pop %v3081
        %v3098 = vrsqrt.pop %v3082
        %v3099 = vrsqrt.pop %v3083
        %v3100 = vrsqrt.pop %v3084
        %v3101 = vrsqrt.pop %v3085
        %v3102 = vrsqrt.pop %v3086
        %v3103 = vrsqrt.pop %v3087
        %v3104 = vrsqrt.pop %v3088
        %v3105 = vmul.f32 %v3057, %v3089
        %v3106 = vmul.f32 %v3058, %v3090
        %v3107 = vmul.f32 %v3059, %v3091
        %v3108 = vmul.f32 %v3060, %v3092
        %v3109 = vmul.f32 %v3061, %v3093
        %v3110 = vmul.f32 %v3062, %v3094
        %v3111 = vmul.f32 %v3063, %v3095
        %v3112 = vmul.f32 %v3064, %v3096
        %v3113 = vmul.f32 %v3065, %v3097
        %v3114 = vmul.f32 %v3066, %v3098
        %v3115 = vmul.f32 %v3067, %v3099
        %v3116 = vmul.f32 %v3068, %v3100
        %v3117 = vmul.f32 %v3069, %v3101
        %v3118 = vmul.f32 %v3070, %v3102
        %v3119 = vmul.f32 %v3071, %v3103
        %v3120 = vmul.f32 %v3072, %v3104
        %v3122 = vlaneseq
        %v3123 = vshrl.u32 %v3122, 7
        %v3124 = vsub.s32 0, %v3123
        %v3125 = vrot.slane %v2910, %v3124
        %v3127 = vmul.f32 %v3105, %v3125
        %v3128 = vmul.f32 %v3106, %v3125
        %v3129 = vmul.f32 %v3107, %v3125
        %v3130 = vmul.f32 %v3108, %v3125
        %v3131 = vmul.f32 %v3109, %v3125
        %v3132 = vmul.f32 %v3110, %v3125
        %v3133 = vmul.f32 %v3111, %v3125
        %v3134 = vmul.f32 %v3112, %v3125
        %v3135 = vmul.f32 %v3113, %v3125
        %v3136 = vmul.f32 %v3114, %v3125
        %v3137 = vmul.f32 %v3115, %v3125
        %v3138 = vmul.f32 %v3116, %v3125
        %v3139 = vmul.f32 %v3117, %v3125
        %v3140 = vmul.f32 %v3118, %v3125
        %v3141 = vmul.f32 %v3119, %v3125
        %v3142 = vmul.f32 %v3120, %v3125
        %v3144 = vlaneseq
        %v3145 = vshrl.u32 %v3144, 7
        %v3146 = vsub.s32 0, %v3145
        %v3147 = vrot.slane %v2912, %v3146
        %v3149 = vadd.f32 %v3127, %v3147
        %v3150 = vadd.f32 %v3128, %v3147
        %v3151 = vadd.f32 %v3129, %v3147
        %v3152 = vadd.f32 %v3130, %v3147
        %v3153 = vadd.f32 %v3131, %v3147
        %v3154 = vadd.f32 %v3132, %v3147
        %v3155 = vadd.f32 %v3133, %v3147
        %v3156 = vadd.f32 %v3134, %v3147
        %v3157 = vadd.f32 %v3135, %v3147
        %v3158 = vadd.f32 %v3136, %v3147
        %v3159 = vadd.f32 %v3137, %v3147
        %v3160 = vadd.f32 %v3138, %v3147
        %v3161 = vadd.f32 %v3139, %v3147
        %v3162 = vadd.f32 %v3140, %v3147
        %v3163 = vadd.f32 %v3141, %v3147
        %v3164 = vadd.f32 %v3142, %v3147
        %v3165 = vxor.u32 %v3149, 2147483648
        %v3166 = vxor.u32 %v3150, 2147483648
        %v3167 = vxor.u32 %v3151, 2147483648
        %v3168 = vxor.u32 %v3152, 2147483648
        %v3169 = vxor.u32 %v3153, 2147483648
        %v3170 = vxor.u32 %v3154, 2147483648
        %v3171 = vxor.u32 %v3155, 2147483648
        %v3172 = vxor.u32 %v3156, 2147483648
        %v3173 = vxor.u32 %v3157, 2147483648
        %v3174 = vxor.u32 %v3158, 2147483648
        %v3175 = vxor.u32 %v3159, 2147483648
        %v3176 = vxor.u32 %v3160, 2147483648
        %v3177 = vxor.u32 %v3161, 2147483648
        %v3178 = vxor.u32 %v3162, 2147483648
        %v3179 = vxor.u32 %v3163, 2147483648
        %v3180 = vxor.u32 %v3164, 2147483648
        %v3181 = vmul.f32 %v3165, 1.442695
        %v3182 = vpow.pop %v3181
        %v3183 = vmul.f32 %v3166, 1.442695
        %v3184 = vpow.pop %v3183
        %v3185 = vmul.f32 %v3167, 1.442695
        %v3186 = vpow.pop %v3185
        %v3187 = vmul.f32 %v3168, 1.442695
        %v3188 = vpow.pop %v3187
        %v3189 = vmul.f32 %v3169, 1.442695
        %v3190 = vpow.pop %v3189
        %v3191 = vmul.f32 %v3170, 1.442695
        %v3192 = vpow.pop %v3191
        %v3193 = vmul.f32 %v3171, 1.442695
        %v3194 = vpow.pop %v3193
        %v3195 = vmul.f32 %v3172, 1.442695
        %v3196 = vpow.pop %v3195
        %v3197 = vmul.f32 %v3173, 1.442695
        %v3198 = vpow.pop %v3197
        %v3199 = vmul.f32 %v3174, 1.442695
        %v3200 = vpow.pop %v3199
        %v3201 = vmul.f32 %v3175, 1.442695
        %v3202 = vpow.pop %v3201
        %v3203 = vmul.f32 %v3176, 1.442695
        %v3204 = vpow.pop %v3203
        %v3205 = vmul.f32 %v3177, 1.442695
        %v3206 = vpow.pop %v3205
        %v3207 = vmul.f32 %v3178, 1.442695
        %v3208 = vpow.pop %v3207
        %v3209 = vmul.f32 %v3179, 1.442695
        %v3210 = vpow.pop %v3209
        %v3211 = vmul.f32 %v3180, 1.442695
        %v3212 = vpow.pop %v3211
        %v3213 = vadd.f32 %v3182, 1.0
        %v3214 = vadd.f32 %v3184, 1.0
        %v3215 = vadd.f32 %v3186, 1.0
        %v3216 = vadd.f32 %v3188, 1.0
        %v3217 = vadd.f32 %v3190, 1.0
        %v3218 = vadd.f32 %v3192, 1.0
        %v3219 = vadd.f32 %v3194, 1.0
        %v3220 = vadd.f32 %v3196, 1.0
        %v3221 = vadd.f32 %v3198, 1.0
        %v3222 = vadd.f32 %v3200, 1.0
        %v3223 = vadd.f32 %v3202, 1.0
        %v3224 = vadd.f32 %v3204, 1.0
        %v3225 = vadd.f32 %v3206, 1.0
        %v3226 = vadd.f32 %v3208, 1.0
        %v3227 = vadd.f32 %v3210, 1.0
        %v3228 = vadd.f32 %v3212, 1.0
        %v3229 = vrcp.pop %v3213
        %v3230 = vmul.f32 1.0, %v3229
        %v3231 = vrcp.pop %v3214
        %v3232 = vmul.f32 1.0, %v3231
        %v3233 = vrcp.pop %v3215
        %v3234 = vmul.f32 1.0, %v3233
        %v3235 = vrcp.pop %v3216
        %v3236 = vmul.f32 1.0, %v3235
        %v3237 = vrcp.pop %v3217
        %v3238 = vmul.f32 1.0, %v3237
        %v3239 = vrcp.pop %v3218
        %v3240 = vmul.f32 1.0, %v3239
        %v3241 = vrcp.pop %v3219
        %v3242 = vmul.f32 1.0, %v3241
        %v3243 = vrcp.pop %v3220
        %v3244 = vmul.f32 1.0, %v3243
        %v3245 = vrcp.pop %v3221
        %v3246 = vmul.f32 1.0, %v3245
        %v3247 = vrcp.pop %v3222
        %v3248 = vmul.f32 1.0, %v3247
        %v3249 = vrcp.pop %v3223
        %v3250 = vmul.f32 1.0, %v3249
        %v3251 = vrcp.pop %v3224
        %v3252 = vmul.f32 1.0, %v3251
        %v3253 = vrcp.pop %v3225
        %v3254 = vmul.f32 1.0, %v3253
        %v3255 = vrcp.pop %v3226
        %v3256 = vmul.f32 1.0, %v3255
        %v3257 = vrcp.pop %v3227
        %v3258 = vmul.f32 1.0, %v3257
        %v3259 = vrcp.pop %v3228
        %v3260 = vmul.f32 1.0, %v3259
        %v3261 = vmul.f32 %v3149, %v3230
        %v3262 = vmul.f32 %v3150, %v3232
        %v3263 = vmul.f32 %v3151, %v3234
        %v3264 = vmul.f32 %v3152, %v3236
        %v3265 = vmul.f32 %v3153, %v3238
        %v3266 = vmul.f32 %v3154, %v3240
        %v3267 = vmul.f32 %v3155, %v3242
        %v3268 = vmul.f32 %v3156, %v3244
        %v3269 = vmul.f32 %v3157, %v3246
        %v3270 = vmul.f32 %v3158, %v3248
        %v3271 = vmul.f32 %v3159, %v3250
        %v3272 = vmul.f32 %v3160, %v3252
        %v3273 = vmul.f32 %v3161, %v3254
        %v3274 = vmul.f32 %v3162, %v3256
        %v3275 = vmul.f32 %v3163, %v3258
        %v3276 = vmul.f32 %v3164, %v3260
        %v3277 = vadd.f32 %v2715, %v3261
        %v3278 = vadd.f32 %v2716, %v3262
        %v3279 = vadd.f32 %v2717, %v3263
        %v3280 = vadd.f32 %v2718, %v3264
        %v3281 = vadd.f32 %v2719, %v3265
        %v3282 = vadd.f32 %v2720, %v3266
        %v3283 = vadd.f32 %v2721, %v3267
        %v3284 = vadd.f32 %v2722, %v3268
        %v3285 = vadd.f32 %v2723, %v3269
        %v3286 = vadd.f32 %v2724, %v3270
        %v3287 = vadd.f32 %v2725, %v3271
        %v3288 = vadd.f32 %v2726, %v3272
        %v3289 = vadd.f32 %v2727, %v3273
        %v3290 = vadd.f32 %v2728, %v3274
        %v3291 = vadd.f32 %v2729, %v3275
        %v3292 = vadd.f32 %v2730, %v3276
        %v3293 = vadd.f32 %v3277, %v1566
        %v3294 = vadd.f32 %v3278, %v1567
        %v3295 = vadd.f32 %v3279, %v1568
        %v3296 = vadd.f32 %v3280, %v1569
        %v3297 = vadd.f32 %v3281, %v1570
        %v3298 = vadd.f32 %v3282, %v1571
        %v3299 = vadd.f32 %v3283, %v1572
        %v3300 = vadd.f32 %v3284, %v1573
        %v3301 = vadd.f32 %v3285, %v1574
        %v3302 = vadd.f32 %v3286, %v1575
        %v3303 = vadd.f32 %v3287, %v1576
        %v3304 = vadd.f32 %v3288, %v1577
        %v3305 = vadd.f32 %v3289, %v1578
        %v3306 = vadd.f32 %v3290, %v1579
        %v3307 = vadd.f32 %v3291, %v1580
        %v3308 = vadd.f32 %v3292, %v1581
        %s3309 = scalar_lea.vmem [#allocation23], 128
        %v3310 = vld [vmem:[%s3309] sm:$0xf]
        %v3311 = vld [vmem:[%s3309 + $0x4] sm:$0xf]
        %v3312 = vld [vmem:[%s3309 + $0x8] sm:$0xf]
        %v3313 = vld [vmem:[%s3309 + $0xc] sm:$0xf]
        %v3314 = vld [vmem:[%s3309 + $0x10] sm:$0xf]
        %v3315 = vld [vmem:[%s3309 + $0x14] sm:$0xf]
        %v3316 = vld [vmem:[%s3309 + $0x18] sm:$0xf]
        %v3317 = vld [vmem:[%s3309 + $0x1c] sm:$0xf]
        %v3318 = vld [vmem:[%s3309 + $0x20] sm:$0xf]
        %v3319 = vld [vmem:[%s3309 + $0x24] sm:$0xf]
        %v3320 = vld [vmem:[%s3309 + $0x28] sm:$0xf]
        %v3321 = vld [vmem:[%s3309 + $0x2c] sm:$0xf]
        %v3322 = vld [vmem:[%s3309 + $0x30] sm:$0xf]
        %v3323 = vld [vmem:[%s3309 + $0x34] sm:$0xf]
        %v3324 = vld [vmem:[%s3309 + $0x38] sm:$0xf]
        %v3325 = vld [vmem:[%s3309 + $0x3c] sm:$0xf]
        %s3326 = scalar_lea.vmem [#allocation25], 2
        %v3327 = vld [vmem:[%s3326] sm:$0x1]
        %v3328 = vpack.c.bf16 %v3294, %v3293
        %v3329 = vpack.c.bf16 %v3296, %v3295
        %v3330 = vpack.c.bf16 %v3298, %v3297
        %v3331 = vpack.c.bf16 %v3300, %v3299
        %v3332 = vpack.c.bf16 %v3302, %v3301
        %v3333 = vpack.c.bf16 %v3304, %v3303
        %v3334 = vpack.c.bf16 %v3306, %v3305
        %v3335 = vpack.c.bf16 %v3308, %v3307
        %v3337 = vlaneseq
        %v3338 = vshrl.u32 %v3337, 7
        %v3339 = vsub.s32 0, %v3338
        %v3340 = vrot.slane %v3327, %v3339
        %v3358 = vunpack.c.l.b16 %v3310
        %v3359 = vunpack.c.l.b16 %v3311
        %v3360 = vunpack.c.l.b16 %v3312
        %v3361 = vunpack.c.l.b16 %v3313
        %v3362 = vunpack.c.l.b16 %v3314
        %v3363 = vunpack.c.l.b16 %v3315
        %v3364 = vunpack.c.l.b16 %v3316
        %v3365 = vunpack.c.l.b16 %v3317
        %v3366 = vunpack.c.l.b16 %v3318
        %v3367 = vunpack.c.l.b16 %v3319
        %v3368 = vunpack.c.l.b16 %v3320
        %v3369 = vunpack.c.l.b16 %v3321
        %v3370 = vunpack.c.l.b16 %v3322
        %v3371 = vunpack.c.l.b16 %v3323
        %v3372 = vunpack.c.l.b16 %v3324
        %v3373 = vunpack.c.l.b16 %v3325
        %v3374 = vpack.c.b16 %v3359, %v3358
        %v3375 = vpack.c.b16 %v3361, %v3360
        %v3376 = vpack.c.b16 %v3363, %v3362
        %v3377 = vpack.c.b16 %v3365, %v3364
        %v3378 = vpack.c.b16 %v3367, %v3366
        %v3379 = vpack.c.b16 %v3369, %v3368
        %v3380 = vpack.c.b16 %v3371, %v3370
        %v3381 = vpack.c.b16 %v3373, %v3372
        %3390 = vmatprep.subr.bf16.mxu0 0
        %3391 = vmatpush1.bf16.msra.mxu0 %v3374
        %3392 = vmatprep.subr.bf16.mxu0 0
        %3393 = vmatpush1.bf16.msra.mxu0 %v3375
        %3394 = vmatprep.subr.bf16.mxu0 0
        %3395 = vmatpush1.bf16.msra.mxu0 %v3376
        %3396 = vmatprep.subr.bf16.mxu0 0
        %3397 = vmatpush1.bf16.msra.mxu0 %v3377
        %3398 = vmatprep.subr.bf16.mxu0 0
        %3399 = vmatpush1.bf16.msra.mxu0 %v3378
        %3400 = vmatprep.subr.bf16.mxu0 0
        %3401 = vmatpush1.bf16.msra.mxu0 %v3379
        %3402 = vmatprep.subr.bf16.mxu0 0
        %3403 = vmatpush1.bf16.msra.mxu0 %v3380
        %3404 = vmatprep.subr.bf16.mxu0 0
        %3405 = vmatpush1.bf16.msra.mxu0 %v3381
        %3406 = vmatprep.subr.bf16.mxu0 0
        %3407 = vmatpush1.bf16.msra.mxu0 0
        %3408 = vmatprep.subr.bf16.mxu0 0
        %3409 = vmatpush1.bf16.msra.mxu0 0
        %3410 = vmatprep.subr.bf16.mxu0 0
        %3411 = vmatpush1.bf16.msra.mxu0 0
        %3412 = vmatprep.subr.bf16.mxu0 0
        %3413 = vmatpush1.bf16.msra.mxu0 0
        %3414 = vmatprep.subr.bf16.mxu0 0
        %3415 = vmatpush1.bf16.msra.mxu0 0
        %3416 = vmatprep.subr.bf16.mxu0 0
        %3417 = vmatpush1.bf16.msra.mxu0 0
        %3418 = vmatprep.subr.bf16.mxu0 0
        %3419 = vmatpush1.bf16.msra.mxu0 0
        %3420 = vmatprep.subr.bf16.mxu0 0
        %3421 = vmatpush1.bf16.msra.mxu0 0
        %3422 = vmatprep.mubr.bf16.mxu0 0
        %3423 = vmatmul.mubr.bf16.gmra.mrb[0].mxu0 %v3328
        %v3424 = vpop.f32.mrb[0].mxu0
        %v3425 = vadd.f32 %v3340, %v3424
        %v3426 = vpop.f32.mrb[0].mxu0
        %v3427 = vpop.f32.mrb[0].mxu0
        %v3428 = vadd.f32 %v3340, %v3427
        %v3429 = vpop.f32.mrb[0].mxu0
        %3430 = vmatprep.mubr.bf16.mxu0 0
        %3431 = vmatmul.mubr.bf16.gmra.mrb[0].mxu0 %v3329
        %v3432 = vpop.f32.mrb[0].mxu0
        %v3433 = vadd.f32 %v3340, %v3432
        %v3434 = vpop.f32.mrb[0].mxu0
        %v3435 = vpop.f32.mrb[0].mxu0
        %v3436 = vadd.f32 %v3340, %v3435
        %v3437 = vpop.f32.mrb[0].mxu0
        %3438 = vmatprep.mubr.bf16.mxu0 0
        %3439 = vmatmul.mubr.bf16.gmra.mrb[0].mxu0 %v3330
        %v3440 = vpop.f32.mrb[0].mxu0
        %v3441 = vadd.f32 %v3340, %v3440
        %v3442 = vpop.f32.mrb[0].mxu0
        %v3443 = vpop.f32.mrb[0].mxu0
        %v3444 = vadd.f32 %v3340, %v3443
        %v3445 = vpop.f32.mrb[0].mxu0
        %3446 = vmatprep.mubr.bf16.mxu0 0
        %3447 = vmatmul.mubr.bf16.gmra.mrb[0].mxu0 %v3331
        %v3448 = vpop.f32.mrb[0].mxu0
        %v3449 = vadd.f32 %v3340, %v3448
        %v3450 = vpop.f32.mrb[0].mxu0
        %v3451 = vpop.f32.mrb[0].mxu0
        %v3452 = vadd.f32 %v3340, %v3451
        %v3453 = vpop.f32.mrb[0].mxu0
        %3454 = vmatprep.mubr.bf16.mxu0 0
        %3455 = vmatmul.mubr.bf16.gmra.mrb[0].mxu0 %v3332
        %v3456 = vpop.f32.mrb[0].mxu0
        %v3457 = vadd.f32 %v3340, %v3456
        %v3458 = vpop.f32.mrb[0].mxu0
        %v3459 = vpop.f32.mrb[0].mxu0
        %v3460 = vadd.f32 %v3340, %v3459
        %v3461 = vpop.f32.mrb[0].mxu0
        %3462 = vmatprep.mubr.bf16.mxu0 0
        %3463 = vmatmul.mubr.bf16.gmra.mrb[0].mxu0 %v3333
        %v3464 = vpop.f32.mrb[0].mxu0
        %v3465 = vadd.f32 %v3340, %v3464
        %v3466 = vpop.f32.mrb[0].mxu0
        %v3467 = vpop.f32.mrb[0].mxu0
        %v3468 = vadd.f32 %v3340, %v3467
        %v3469 = vpop.f32.mrb[0].mxu0
        %3470 = vmatprep.mubr.bf16.mxu0 0
        %3471 = vmatmul.mubr.bf16.gmra.mrb[0].mxu0 %v3334
        %v3472 = vpop.f32.mrb[0].mxu0
        %v3473 = vadd.f32 %v3340, %v3472
        %v3474 = vpop.f32.mrb[0].mxu0
        %v3475 = vpop.f32.mrb[0].mxu0
        %v3476 = vadd.f32 %v3340, %v3475
        %v3477 = vpop.f32.mrb[0].mxu0
        %3478 = vmatprep.mubr.bf16.mxu0 0
        %3479 = vmatmul.mubr.bf16.gmra.mrb[0].mxu0 %v3335
        %v3480 = vpop.f32.mrb[0].mxu0
        %v3481 = vadd.f32 %v3340, %v3480
        %v3482 = vpop.f32.mrb[0].mxu0
        %v3483 = vpop.f32.mrb[0].mxu0
        %v3484 = vadd.f32 %v3340, %v3483
        %v3485 = vpop.f32.mrb[0].mxu0
        %3486 = vdwg.mxu0
        %s3487 = scalar_lea.vmem [#allocation26], 2
        %v3488 = vld [vmem:[%s3487] sm:$0x1]
        %s3489 = scalar_lea.vmem [#allocation28], 2
        %v3490 = vld [vmem:[%s3489] sm:$0x1]
        %3491 = vadd.xlane.f32.xlu0 %v3425
        %v3492 = vpop.xlane.xlu0 %3491
        %3493 = vadd.xlane.f32.xlu0 %v3428
        %v3494 = vpop.xlane.xlu0 %3493
        %3495 = vadd.xlane.f32.xlu0 %v3433
        %v3496 = vpop.xlane.xlu0 %3495
        %3497 = vadd.xlane.f32.xlu0 %v3436
        %v3498 = vpop.xlane.xlu0 %3497
        %3499 = vadd.xlane.f32.xlu0 %v3441
        %v3500 = vpop.xlane.xlu0 %3499
        %3501 = vadd.xlane.f32.xlu0 %v3444
        %v3502 = vpop.xlane.xlu0 %3501
        %3503 = vadd.xlane.f32.xlu0 %v3449
        %v3504 = vpop.xlane.xlu0 %3503
        %3505 = vadd.xlane.f32.xlu0 %v3452
        %v3506 = vpop.xlane.xlu0 %3505
        %3507 = vadd.xlane.f32.xlu0 %v3457
        %v3508 = vpop.xlane.xlu0 %3507
        %3509 = vadd.xlane.f32.xlu0 %v3460
        %v3510 = vpop.xlane.xlu0 %3509
        %3511 = vadd.xlane.f32.xlu0 %v3465
        %v3512 = vpop.xlane.xlu0 %3511
        %3513 = vadd.xlane.f32.xlu0 %v3468
        %v3514 = vpop.xlane.xlu0 %3513
        %3515 = vadd.xlane.f32.xlu0 %v3473
        %v3516 = vpop.xlane.xlu0 %3515
        %3517 = vadd.xlane.f32.xlu0 %v3476
        %v3518 = vpop.xlane.xlu0 %3517
        %3519 = vadd.xlane.f32.xlu0 %v3481
        %v3520 = vpop.xlane.xlu0 %3519
        %3521 = vadd.xlane.f32.xlu0 %v3484
        %v3522 = vpop.xlane.xlu0 %3521
        %v3523 = vmul.f32 %v3492, %v1808
        %v3524 = vmul.f32 %v3494, %v1808
        %v3525 = vmul.f32 %v3496, %v1808
        %v3526 = vmul.f32 %v3498, %v1808
        %v3527 = vmul.f32 %v3500, %v1808
        %v3528 = vmul.f32 %v3502, %v1808
        %v3529 = vmul.f32 %v3504, %v1808
        %v3530 = vmul.f32 %v3506, %v1808
        %v3531 = vmul.f32 %v3508, %v1808
        %v3532 = vmul.f32 %v3510, %v1808
        %v3533 = vmul.f32 %v3512, %v1808
        %v3534 = vmul.f32 %v3514, %v1808
        %v3535 = vmul.f32 %v3516, %v1808
        %v3536 = vmul.f32 %v3518, %v1808
        %v3537 = vmul.f32 %v3520, %v1808
        %v3538 = vmul.f32 %v3522, %v1808
        %v3539 = vmul.f32 %v3425, %v3425
        %v3540 = vmul.f32 %v3428, %v3428
        %v3541 = vmul.f32 %v3433, %v3433
        %v3542 = vmul.f32 %v3436, %v3436
        %v3543 = vmul.f32 %v3441, %v3441
        %v3544 = vmul.f32 %v3444, %v3444
        %v3545 = vmul.f32 %v3449, %v3449
        %v3546 = vmul.f32 %v3452, %v3452
        %v3547 = vmul.f32 %v3457, %v3457
        %v3548 = vmul.f32 %v3460, %v3460
        %v3549 = vmul.f32 %v3465, %v3465
        %v3550 = vmul.f32 %v3468, %v3468
        %v3551 = vmul.f32 %v3473, %v3473
        %v3552 = vmul.f32 %v3476, %v3476
        %v3553 = vmul.f32 %v3481, %v3481
        %v3554 = vmul.f32 %v3484, %v3484
        %3555 = vadd.xlane.f32.xlu0 %v3539
        %v3556 = vpop.xlane.xlu0 %3555
        %3557 = vadd.xlane.f32.xlu0 %v3540
        %v3558 = vpop.xlane.xlu0 %3557
        %3559 = vadd.xlane.f32.xlu0 %v3541
        %v3560 = vpop.xlane.xlu0 %3559
        %3561 = vadd.xlane.f32.xlu0 %v3542
        %v3562 = vpop.xlane.xlu0 %3561
        %3563 = vadd.xlane.f32.xlu0 %v3543
        %v3564 = vpop.xlane.xlu0 %3563
        %3565 = vadd.xlane.f32.xlu0 %v3544
        %v3566 = vpop.xlane.xlu0 %3565
        %3567 = vadd.xlane.f32.xlu0 %v3545
        %v3568 = vpop.xlane.xlu0 %3567
        %3569 = vadd.xlane.f32.xlu0 %v3546
        %v3570 = vpop.xlane.xlu0 %3569
        %3571 = vadd.xlane.f32.xlu0 %v3547
        %v3572 = vpop.xlane.xlu0 %3571
        %3573 = vadd.xlane.f32.xlu0 %v3548
        %v3574 = vpop.xlane.xlu0 %3573
        %3575 = vadd.xlane.f32.xlu0 %v3549
        %v3576 = vpop.xlane.xlu0 %3575
        %3577 = vadd.xlane.f32.xlu0 %v3550
        %v3578 = vpop.xlane.xlu0 %3577
        %3579 = vadd.xlane.f32.xlu0 %v3551
        %v3580 = vpop.xlane.xlu0 %3579
        %3581 = vadd.xlane.f32.xlu0 %v3552
        %v3582 = vpop.xlane.xlu0 %3581
        %3583 = vadd.xlane.f32.xlu0 %v3553
        %v3584 = vpop.xlane.xlu0 %3583
        %3585 = vadd.xlane.f32.xlu0 %v3554
        %v3586 = vpop.xlane.xlu0 %3585
        %v3587 = vmul.f32 %v3556, %v1808
        %v3588 = vmul.f32 %v3558, %v1808
        %v3589 = vmul.f32 %v3560, %v1808
        %v3590 = vmul.f32 %v3562, %v1808
        %v3591 = vmul.f32 %v3564, %v1808
        %v3592 = vmul.f32 %v3566, %v1808
        %v3593 = vmul.f32 %v3568, %v1808
        %v3594 = vmul.f32 %v3570, %v1808
        %v3595 = vmul.f32 %v3572, %v1808
        %v3596 = vmul.f32 %v3574, %v1808
        %v3597 = vmul.f32 %v3576, %v1808
        %v3598 = vmul.f32 %v3578, %v1808
        %v3599 = vmul.f32 %v3580, %v1808
        %v3600 = vmul.f32 %v3582, %v1808
        %v3601 = vmul.f32 %v3584, %v1808
        %v3602 = vmul.f32 %v3586, %v1808
        %v3603 = vmul.f32 %v3523, %v3523
        %v3604 = vmul.f32 %v3524, %v3524
        %v3605 = vmul.f32 %v3525, %v3525
        %v3606 = vmul.f32 %v3526, %v3526
        %v3607 = vmul.f32 %v3527, %v3527
        %v3608 = vmul.f32 %v3528, %v3528
        %v3609 = vmul.f32 %v3529, %v3529
        %v3610 = vmul.f32 %v3530, %v3530
        %v3611 = vmul.f32 %v3531, %v3531
        %v3612 = vmul.f32 %v3532, %v3532
        %v3613 = vmul.f32 %v3533, %v3533
        %v3614 = vmul.f32 %v3534, %v3534
        %v3615 = vmul.f32 %v3535, %v3535
        %v3616 = vmul.f32 %v3536, %v3536
        %v3617 = vmul.f32 %v3537, %v3537
        %v3618 = vmul.f32 %v3538, %v3538
        %v3619 = vsub.f32 %v3587, %v3603
        %v3620 = vsub.f32 %v3588, %v3604
        %v3621 = vsub.f32 %v3589, %v3605
        %v3622 = vsub.f32 %v3590, %v3606
        %v3623 = vsub.f32 %v3591, %v3607
        %v3624 = vsub.f32 %v3592, %v3608
        %v3625 = vsub.f32 %v3593, %v3609
        %v3626 = vsub.f32 %v3594, %v3610
        %v3627 = vsub.f32 %v3595, %v3611
        %v3628 = vsub.f32 %v3596, %v3612
        %v3629 = vsub.f32 %v3597, %v3613
        %v3630 = vsub.f32 %v3598, %v3614
        %v3631 = vsub.f32 %v3599, %v3615
        %v3632 = vsub.f32 %v3600, %v3616
        %v3633 = vsub.f32 %v3601, %v3617
        %v3634 = vsub.f32 %v3602, %v3618
        %v3635 = vsub.f32 %v3425, %v3523
        %v3636 = vsub.f32 %v3428, %v3524
        %v3637 = vsub.f32 %v3433, %v3525
        %v3638 = vsub.f32 %v3436, %v3526
        %v3639 = vsub.f32 %v3441, %v3527
        %v3640 = vsub.f32 %v3444, %v3528
        %v3641 = vsub.f32 %v3449, %v3529
        %v3642 = vsub.f32 %v3452, %v3530
        %v3643 = vsub.f32 %v3457, %v3531
        %v3644 = vsub.f32 %v3460, %v3532
        %v3645 = vsub.f32 %v3465, %v3533
        %v3646 = vsub.f32 %v3468, %v3534
        %v3647 = vsub.f32 %v3473, %v3535
        %v3648 = vsub.f32 %v3476, %v3536
        %v3649 = vsub.f32 %v3481, %v3537
        %v3650 = vsub.f32 %v3484, %v3538
        %v3651 = vadd.f32 %v3619, 1e-05
        %v3652 = vadd.f32 %v3620, 1e-05
        %v3653 = vadd.f32 %v3621, 1e-05
        %v3654 = vadd.f32 %v3622, 1e-05
        %v3655 = vadd.f32 %v3623, 1e-05
        %v3656 = vadd.f32 %v3624, 1e-05
        %v3657 = vadd.f32 %v3625, 1e-05
        %v3658 = vadd.f32 %v3626, 1e-05
        %v3659 = vadd.f32 %v3627, 1e-05
        %v3660 = vadd.f32 %v3628, 1e-05
        %v3661 = vadd.f32 %v3629, 1e-05
        %v3662 = vadd.f32 %v3630, 1e-05
        %v3663 = vadd.f32 %v3631, 1e-05
        %v3664 = vadd.f32 %v3632, 1e-05
        %v3665 = vadd.f32 %v3633, 1e-05
        %v3666 = vadd.f32 %v3634, 1e-05
        %v3667 = vrsqrt.pop %v3651
        %v3668 = vrsqrt.pop %v3652
        %v3669 = vrsqrt.pop %v3653
        %v3670 = vrsqrt.pop %v3654
        %v3671 = vrsqrt.pop %v3655
        %v3672 = vrsqrt.pop %v3656
        %v3673 = vrsqrt.pop %v3657
        %v3674 = vrsqrt.pop %v3658
        %v3675 = vrsqrt.pop %v3659
        %v3676 = vrsqrt.pop %v3660
        %v3677 = vrsqrt.pop %v3661
        %v3678 = vrsqrt.pop %v3662
        %v3679 = vrsqrt.pop %v3663
        %v3680 = vrsqrt.pop %v3664
        %v3681 = vrsqrt.pop %v3665
        %v3682 = vrsqrt.pop %v3666
        %v3683 = vmul.f32 %v3635, %v3667
        %v3684 = vmul.f32 %v3636, %v3668
        %v3685 = vmul.f32 %v3637, %v3669
        %v3686 = vmul.f32 %v3638, %v3670
        %v3687 = vmul.f32 %v3639, %v3671
        %v3688 = vmul.f32 %v3640, %v3672
        %v3689 = vmul.f32 %v3641, %v3673
        %v3690 = vmul.f32 %v3642, %v3674
        %v3691 = vmul.f32 %v3643, %v3675
        %v3692 = vmul.f32 %v3644, %v3676
        %v3693 = vmul.f32 %v3645, %v3677
        %v3694 = vmul.f32 %v3646, %v3678
        %v3695 = vmul.f32 %v3647, %v3679
        %v3696 = vmul.f32 %v3648, %v3680
        %v3697 = vmul.f32 %v3649, %v3681
        %v3698 = vmul.f32 %v3650, %v3682
        %v3700 = vlaneseq
        %v3701 = vshrl.u32 %v3700, 7
        %v3702 = vsub.s32 0, %v3701
        %v3703 = vrot.slane %v3488, %v3702
        %v3705 = vmul.f32 %v3683, %v3703
        %v3706 = vmul.f32 %v3684, %v3703
        %v3707 = vmul.f32 %v3685, %v3703
        %v3708 = vmul.f32 %v3686, %v3703
        %v3709 = vmul.f32 %v3687, %v3703
        %v3710 = vmul.f32 %v3688, %v3703
        %v3711 = vmul.f32 %v3689, %v3703
        %v3712 = vmul.f32 %v3690, %v3703
        %v3713 = vmul.f32 %v3691, %v3703
        %v3714 = vmul.f32 %v3692, %v3703
        %v3715 = vmul.f32 %v3693, %v3703
        %v3716 = vmul.f32 %v3694, %v3703
        %v3717 = vmul.f32 %v3695, %v3703
        %v3718 = vmul.f32 %v3696, %v3703
        %v3719 = vmul.f32 %v3697, %v3703
        %v3720 = vmul.f32 %v3698, %v3703
        %v3722 = vlaneseq
        %v3723 = vshrl.u32 %v3722, 7
        %v3724 = vsub.s32 0, %v3723
        %v3725 = vrot.slane %v3490, %v3724
        %v3727 = vadd.f32 %v3705, %v3725
        %v3728 = vadd.f32 %v3706, %v3725
        %v3729 = vadd.f32 %v3707, %v3725
        %v3730 = vadd.f32 %v3708, %v3725
        %v3731 = vadd.f32 %v3709, %v3725
        %v3732 = vadd.f32 %v3710, %v3725
        %v3733 = vadd.f32 %v3711, %v3725
        %v3734 = vadd.f32 %v3712, %v3725
        %v3735 = vadd.f32 %v3713, %v3725
        %v3736 = vadd.f32 %v3714, %v3725
        %v3737 = vadd.f32 %v3715, %v3725
        %v3738 = vadd.f32 %v3716, %v3725
        %v3739 = vadd.f32 %v3717, %v3725
        %v3740 = vadd.f32 %v3718, %v3725
        %v3741 = vadd.f32 %v3719, %v3725
        %v3742 = vadd.f32 %v3720, %v3725
        %v3743 = vxor.u32 %v3727, 2147483648
        %v3744 = vxor.u32 %v3728, 2147483648
        %v3745 = vxor.u32 %v3729, 2147483648
        %v3746 = vxor.u32 %v3730, 2147483648
        %v3747 = vxor.u32 %v3731, 2147483648
        %v3748 = vxor.u32 %v3732, 2147483648
        %v3749 = vxor.u32 %v3733, 2147483648
        %v3750 = vxor.u32 %v3734, 2147483648
        %v3751 = vxor.u32 %v3735, 2147483648
        %v3752 = vxor.u32 %v3736, 2147483648
        %v3753 = vxor.u32 %v3737, 2147483648
        %v3754 = vxor.u32 %v3738, 2147483648
        %v3755 = vxor.u32 %v3739, 2147483648
        %v3756 = vxor.u32 %v3740, 2147483648
        %v3757 = vxor.u32 %v3741, 2147483648
        %v3758 = vxor.u32 %v3742, 2147483648
        %v3759 = vmul.f32 %v3743, 1.442695
        %v3760 = vpow.pop %v3759
        %v3761 = vmul.f32 %v3744, 1.442695
        %v3762 = vpow.pop %v3761
        %v3763 = vmul.f32 %v3745, 1.442695
        %v3764 = vpow.pop %v3763
        %v3765 = vmul.f32 %v3746, 1.442695
        %v3766 = vpow.pop %v3765
        %v3767 = vmul.f32 %v3747, 1.442695
        %v3768 = vpow.pop %v3767
        %v3769 = vmul.f32 %v3748, 1.442695
        %v3770 = vpow.pop %v3769
        %v3771 = vmul.f32 %v3749, 1.442695
        %v3772 = vpow.pop %v3771
        %v3773 = vmul.f32 %v3750, 1.442695
        %v3774 = vpow.pop %v3773
        %v3775 = vmul.f32 %v3751, 1.442695
        %v3776 = vpow.pop %v3775
        %v3777 = vmul.f32 %v3752, 1.442695
        %v3778 = vpow.pop %v3777
        %v3779 = vmul.f32 %v3753, 1.442695
        %v3780 = vpow.pop %v3779
        %v3781 = vmul.f32 %v3754, 1.442695
        %v3782 = vpow.pop %v3781
        %v3783 = vmul.f32 %v3755, 1.442695
        %v3784 = vpow.pop %v3783
        %v3785 = vmul.f32 %v3756, 1.442695
        %v3786 = vpow.pop %v3785
        %v3787 = vmul.f32 %v3757, 1.442695
        %v3788 = vpow.pop %v3787
        %v3789 = vmul.f32 %v3758, 1.442695
        %v3790 = vpow.pop %v3789
        %v3791 = vadd.f32 %v3760, 1.0
        %v3792 = vadd.f32 %v3762, 1.0
        %v3793 = vadd.f32 %v3764, 1.0
        %v3794 = vadd.f32 %v3766, 1.0
        %v3795 = vadd.f32 %v3768, 1.0
        %v3796 = vadd.f32 %v3770, 1.0
        %v3797 = vadd.f32 %v3772, 1.0
        %v3798 = vadd.f32 %v3774, 1.0
        %v3799 = vadd.f32 %v3776, 1.0
        %v3800 = vadd.f32 %v3778, 1.0
        %v3801 = vadd.f32 %v3780, 1.0
        %v3802 = vadd.f32 %v3782, 1.0
        %v3803 = vadd.f32 %v3784, 1.0
        %v3804 = vadd.f32 %v3786, 1.0
        %v3805 = vadd.f32 %v3788, 1.0
        %v3806 = vadd.f32 %v3790, 1.0
        %v3807 = vrcp.pop %v3791
        %v3808 = vmul.f32 1.0, %v3807
        %v3809 = vrcp.pop %v3792
        %v3810 = vmul.f32 1.0, %v3809
        %v3811 = vrcp.pop %v3793
        %v3812 = vmul.f32 1.0, %v3811
        %v3813 = vrcp.pop %v3794
        %v3814 = vmul.f32 1.0, %v3813
        %v3815 = vrcp.pop %v3795
        %v3816 = vmul.f32 1.0, %v3815
        %v3817 = vrcp.pop %v3796
        %v3818 = vmul.f32 1.0, %v3817
        %v3819 = vrcp.pop %v3797
        %v3820 = vmul.f32 1.0, %v3819
        %v3821 = vrcp.pop %v3798
        %v3822 = vmul.f32 1.0, %v3821
        %v3823 = vrcp.pop %v3799
        %v3824 = vmul.f32 1.0, %v3823
        %v3825 = vrcp.pop %v3800
        %v3826 = vmul.f32 1.0, %v3825
        %v3827 = vrcp.pop %v3801
        %v3828 = vmul.f32 1.0, %v3827
        %v3829 = vrcp.pop %v3802
        %v3830 = vmul.f32 1.0, %v3829
        %v3831 = vrcp.pop %v3803
        %v3832 = vmul.f32 1.0, %v3831
        %v3833 = vrcp.pop %v3804
        %v3834 = vmul.f32 1.0, %v3833
        %v3835 = vrcp.pop %v3805
        %v3836 = vmul.f32 1.0, %v3835
        %v3837 = vrcp.pop %v3806
        %v3838 = vmul.f32 1.0, %v3837
        %v3839 = vmul.f32 %v3727, %v3808
        %v3840 = vmul.f32 %v3728, %v3810
        %v3841 = vmul.f32 %v3729, %v3812
        %v3842 = vmul.f32 %v3730, %v3814
        %v3843 = vmul.f32 %v3731, %v3816
        %v3844 = vmul.f32 %v3732, %v3818
        %v3845 = vmul.f32 %v3733, %v3820
        %v3846 = vmul.f32 %v3734, %v3822
        %v3847 = vmul.f32 %v3735, %v3824
        %v3848 = vmul.f32 %v3736, %v3826
        %v3849 = vmul.f32 %v3737, %v3828
        %v3850 = vmul.f32 %v3738, %v3830
        %v3851 = vmul.f32 %v3739, %v3832
        %v3852 = vmul.f32 %v3740, %v3834
        %v3853 = vmul.f32 %v3741, %v3836
        %v3854 = vmul.f32 %v3742, %v3838
        %v3855 = vadd.f32 %v3293, %v3839
        %v3856 = vadd.f32 %v3294, %v3840
        %v3857 = vadd.f32 %v3295, %v3841
        %v3858 = vadd.f32 %v3296, %v3842
        %v3859 = vadd.f32 %v3297, %v3843
        %v3860 = vadd.f32 %v3298, %v3844
        %v3861 = vadd.f32 %v3299, %v3845
        %v3862 = vadd.f32 %v3300, %v3846
        %v3863 = vadd.f32 %v3301, %v3847
        %v3864 = vadd.f32 %v3302, %v3848
        %v3865 = vadd.f32 %v3303, %v3849
        %v3866 = vadd.f32 %v3304, %v3850
        %v3867 = vadd.f32 %v3305, %v3851
        %v3868 = vadd.f32 %v3306, %v3852
        %v3869 = vadd.f32 %v3307, %v3853
        %v3870 = vadd.f32 %v3308, %v3854
        %v3871 = vadd.f32 %v3855, %v1566
        %v3872 = vadd.f32 %v3856, %v1567
        %v3873 = vadd.f32 %v3857, %v1568
        %v3874 = vadd.f32 %v3858, %v1569
        %v3875 = vadd.f32 %v3859, %v1570
        %v3876 = vadd.f32 %v3860, %v1571
        %v3877 = vadd.f32 %v3861, %v1572
        %v3878 = vadd.f32 %v3862, %v1573
        %v3879 = vadd.f32 %v3863, %v1574
        %v3880 = vadd.f32 %v3864, %v1575
        %v3881 = vadd.f32 %v3865, %v1576
        %v3882 = vadd.f32 %v3866, %v1577
        %v3883 = vadd.f32 %v3867, %v1578
        %v3884 = vadd.f32 %v3868, %v1579
        %v3885 = vadd.f32 %v3869, %v1580
        %v3886 = vadd.f32 %v3870, %v1581
        %s3887 = scalar_lea.vmem [#allocation23], 192
        %v3888 = vld [vmem:[%s3887] sm:$0xf]
        %v3889 = vld [vmem:[%s3887 + $0x4] sm:$0xf]
        %v3890 = vld [vmem:[%s3887 + $0x8] sm:$0xf]
        %v3891 = vld [vmem:[%s3887 + $0xc] sm:$0xf]
        %v3892 = vld [vmem:[%s3887 + $0x10] sm:$0xf]
        %v3893 = vld [vmem:[%s3887 + $0x14] sm:$0xf]
        %v3894 = vld [vmem:[%s3887 + $0x18] sm:$0xf]
        %v3895 = vld [vmem:[%s3887 + $0x1c] sm:$0xf]
        %v3896 = vld [vmem:[%s3887 + $0x20] sm:$0xf]
        %v3897 = vld [vmem:[%s3887 + $0x24] sm:$0xf]
        %v3898 = vld [vmem:[%s3887 + $0x28] sm:$0xf]
        %v3899 = vld [vmem:[%s3887 + $0x2c] sm:$0xf]
        %v3900 = vld [vmem:[%s3887 + $0x30] sm:$0xf]
        %v3901 = vld [vmem:[%s3887 + $0x34] sm:$0xf]
        %v3902 = vld [vmem:[%s3887 + $0x38] sm:$0xf]
        %v3903 = vld [vmem:[%s3887 + $0x3c] sm:$0xf]
        %s3904 = scalar_lea.vmem [#allocation25], 3
        %v3905 = vld [vmem:[%s3904] sm:$0x1]
        %v3906 = vpack.c.bf16 %v3872, %v3871
        %v3907 = vpack.c.bf16 %v3874, %v3873
        %v3908 = vpack.c.bf16 %v3876, %v3875
        %v3909 = vpack.c.bf16 %v3878, %v3877
        %v3910 = vpack.c.bf16 %v3880, %v3879
        %v3911 = vpack.c.bf16 %v3882, %v3881
        %v3912 = vpack.c.bf16 %v3884, %v3883
        %v3913 = vpack.c.bf16 %v3886, %v3885
        %v3915 = vlaneseq
        %v3916 = vshrl.u32 %v3915, 7
        %v3917 = vsub.s32 0, %v3916
        %v3918 = vrot.slane %v3905, %v3917
        %v3936 = vunpack.c.l.b16 %v3888
        %v3937 = vunpack.c.l.b16 %v3889
        %v3938 = vunpack.c.l.b16 %v3890
        %v3939 = vunpack.c.l.b16 %v3891
        %v3940 = vunpack.c.l.b16 %v3892
        %v3941 = vunpack.c.l.b16 %v3893
        %v3942 = vunpack.c.l.b16 %v3894
        %v3943 = vunpack.c.l.b16 %v3895
        %v3944 = vunpack.c.l.b16 %v3896
        %v3945 = vunpack.c.l.b16 %v3897
        %v3946 = vunpack.c.l.b16 %v3898
        %v3947 = vunpack.c.l.b16 %v3899
        %v3948 = vunpack.c.l.b16 %v3900
        %v3949 = vunpack.c.l.b16 %v3901
        %v3950 = vunpack.c.l.b16 %v3902
        %v3951 = vunpack.c.l.b16 %v3903
        %v3952 = vpack.c.b16 %v3937, %v3936
        %v3953 = vpack.c.b16 %v3939, %v3938
        %v3954 = vpack.c.b16 %v3941, %v3940
        %v3955 = vpack.c.b16 %v3943, %v3942
        %v3956 = vpack.c.b16 %v3945, %v3944
        %v3957 = vpack.c.b16 %v3947, %v3946
        %v3958 = vpack.c.b16 %v3949, %v3948
        %v3959 = vpack.c.b16 %v3951, %v3950
        %3968 = vmatprep.subr.bf16.mxu0 0
        %3969 = vmatpush1.bf16.msra.mxu0 %v3952
        %3970 = vmatprep.subr.bf16.mxu0 0
        %3971 = vmatpush1.bf16.msra.mxu0 %v3953
        %3972 = vmatprep.subr.bf16.mxu0 0
        %3973 = vmatpush1.bf16.msra.mxu0 %v3954
        %3974 = vmatprep.subr.bf16.mxu0 0
        %3975 = vmatpush1.bf16.msra.mxu0 %v3955
        %3976 = vmatprep.subr.bf16.mxu0 0
        %3977 = vmatpush1.bf16.msra.mxu0 %v3956
        %3978 = vmatprep.subr.bf16.mxu0 0
        %3979 = vmatpush1.bf16.msra.mxu0 %v3957
        %3980 = vmatprep.subr.bf16.mxu0 0
        %3981 = vmatpush1.bf16.msra.mxu0 %v3958
        %3982 = vmatprep.subr.bf16.mxu0 0
        %3983 = vmatpush1.bf16.msra.mxu0 %v3959
        %3984 = vmatprep.subr.bf16.mxu0 0
        %3985 = vmatpush1.bf16.msra.mxu0 0
        %3986 = vmatprep.subr.bf16.mxu0 0
        %3987 = vmatpush1.bf16.msra.mxu0 0
        %3988 = vmatprep.subr.bf16.mxu0 0
        %3989 = vmatpush1.bf16.msra.mxu0 0
        %3990 = vmatprep.subr.bf16.mxu0 0
        %3991 = vmatpush1.bf16.msra.mxu0 0
        %3992 = vmatprep.subr.bf16.mxu0 0
        %3993 = vmatpush1.bf16.msra.mxu0 0
        %3994 = vmatprep.subr.bf16.mxu0 0
        %3995 = vmatpush1.bf16.msra.mxu0 0
        %3996 = vmatprep.subr.bf16.mxu0 0
        %3997 = vmatpush1.bf16.msra.mxu0 0
        %3998 = vmatprep.subr.bf16.mxu0 0
        %3999 = vmatpush1.bf16.msra.mxu0 0
        %4000 = vmatprep.mubr.bf16.mxu0 0
        %4001 = vmatmul.mubr.bf16.gmra.mrb[0].mxu0 %v3906
        %v4002 = vpop.f32.mrb[0].mxu0
        %v4003 = vadd.f32 %v3918, %v4002
        %v4004 = vpop.f32.mrb[0].mxu0
        %v4005 = vpop.f32.mrb[0].mxu0
        %v4006 = vadd.f32 %v3918, %v4005
        %v4007 = vpop.f32.mrb[0].mxu0
        %4008 = vmatprep.mubr.bf16.mxu0 0
        %4009 = vmatmul.mubr.bf16.gmra.mrb[0].mxu0 %v3907
        %v4010 = vpop.f32.mrb[0].mxu0
        %v4011 = vadd.f32 %v3918, %v4010
        %v4012 = vpop.f32.mrb[0].mxu0
        %v4013 = vpop.f32.mrb[0].mxu0
        %v4014 = vadd.f32 %v3918, %v4013
        %v4015 = vpop.f32.mrb[0].mxu0
        %4016 = vmatprep.mubr.bf16.mxu0 0
        %4017 = vmatmul.mubr.bf16.gmra.mrb[0].mxu0 %v3908
        %v4018 = vpop.f32.mrb[0].mxu0
        %v4019 = vadd.f32 %v3918, %v4018
        %v4020 = vpop.f32.mrb[0].mxu0
        %v4021 = vpop.f32.mrb[0].mxu0
        %v4022 = vadd.f32 %v3918, %v4021
        %v4023 = vpop.f32.mrb[0].mxu0
        %4024 = vmatprep.mubr.bf16.mxu0 0
        %4025 = vmatmul.mubr.bf16.gmra.mrb[0].mxu0 %v3909
        %v4026 = vpop.f32.mrb[0].mxu0
        %v4027 = vadd.f32 %v3918, %v4026
        %v4028 = vpop.f32.mrb[0].mxu0
        %v4029 = vpop.f32.mrb[0].mxu0
        %v4030 = vadd.f32 %v3918, %v4029
        %v4031 = vpop.f32.mrb[0].mxu0
        %4032 = vmatprep.mubr.bf16.mxu0 0
        %4033 = vmatmul.mubr.bf16.gmra.mrb[0].mxu0 %v3910
        %v4034 = vpop.f32.mrb[0].mxu0
        %v4035 = vadd.f32 %v3918, %v4034
        %v4036 = vpop.f32.mrb[0].mxu0
        %v4037 = vpop.f32.mrb[0].mxu0
        %v4038 = vadd.f32 %v3918, %v4037
        %v4039 = vpop.f32.mrb[0].mxu0
        %4040 = vmatprep.mubr.bf16.mxu0 0
        %4041 = vmatmul.mubr.bf16.gmra.mrb[0].mxu0 %v3911
        %v4042 = vpop.f32.mrb[0].mxu0
        %v4043 = vadd.f32 %v3918, %v4042
        %v4044 = vpop.f32.mrb[0].mxu0
        %v4045 = vpop.f32.mrb[0].mxu0
        %v4046 = vadd.f32 %v3918, %v4045
        %v4047 = vpop.f32.mrb[0].mxu0
        %4048 = vmatprep.mubr.bf16.mxu0 0
        %4049 = vmatmul.mubr.bf16.gmra.mrb[0].mxu0 %v3912
        %v4050 = vpop.f32.mrb[0].mxu0
        %v4051 = vadd.f32 %v3918, %v4050
        %v4052 = vpop.f32.mrb[0].mxu0
        %v4053 = vpop.f32.mrb[0].mxu0
        %v4054 = vadd.f32 %v3918, %v4053
        %v4055 = vpop.f32.mrb[0].mxu0
        %4056 = vmatprep.mubr.bf16.mxu0 0
        %4057 = vmatmul.mubr.bf16.gmra.mrb[0].mxu0 %v3913
        %v4058 = vpop.f32.mrb[0].mxu0
        %v4059 = vadd.f32 %v3918, %v4058
        %v4060 = vpop.f32.mrb[0].mxu0
        %v4061 = vpop.f32.mrb[0].mxu0
        %v4062 = vadd.f32 %v3918, %v4061
        %v4063 = vpop.f32.mrb[0].mxu0
        %4064 = vdwg.mxu0
        %s4065 = scalar_lea.vmem [#allocation26], 3
        %v4066 = vld [vmem:[%s4065] sm:$0x1]
        %s4067 = scalar_lea.vmem [#allocation28], 3
        %v4068 = vld [vmem:[%s4067] sm:$0x1]
        %4069 = vadd.xlane.f32.xlu0 %v4003
        %v4070 = vpop.xlane.xlu0 %4069
        %4071 = vadd.xlane.f32.xlu0 %v4006
        %v4072 = vpop.xlane.xlu0 %4071
        %4073 = vadd.xlane.f32.xlu0 %v4011
        %v4074 = vpop.xlane.xlu0 %4073
        %4075 = vadd.xlane.f32.xlu0 %v4014
        %v4076 = vpop.xlane.xlu0 %4075
        %4077 = vadd.xlane.f32.xlu0 %v4019
        %v4078 = vpop.xlane.xlu0 %4077
        %4079 = vadd.xlane.f32.xlu0 %v4022
        %v4080 = vpop.xlane.xlu0 %4079
        %4081 = vadd.xlane.f32.xlu0 %v4027
        %v4082 = vpop.xlane.xlu0 %4081
        %4083 = vadd.xlane.f32.xlu0 %v4030
        %v4084 = vpop.xlane.xlu0 %4083
        %4085 = vadd.xlane.f32.xlu0 %v4035
        %v4086 = vpop.xlane.xlu0 %4085
        %4087 = vadd.xlane.f32.xlu0 %v4038
        %v4088 = vpop.xlane.xlu0 %4087
        %4089 = vadd.xlane.f32.xlu0 %v4043
        %v4090 = vpop.xlane.xlu0 %4089
        %4091 = vadd.xlane.f32.xlu0 %v4046
        %v4092 = vpop.xlane.xlu0 %4091
        %4093 = vadd.xlane.f32.xlu0 %v4051
        %v4094 = vpop.xlane.xlu0 %4093
        %4095 = vadd.xlane.f32.xlu0 %v4054
        %v4096 = vpop.xlane.xlu0 %4095
        %4097 = vadd.xlane.f32.xlu0 %v4059
        %v4098 = vpop.xlane.xlu0 %4097
        %4099 = vadd.xlane.f32.xlu0 %v4062
        %v4100 = vpop.xlane.xlu0 %4099
        %v4101 = vmul.f32 %v4070, %v1808
        %v4102 = vmul.f32 %v4072, %v1808
        %v4103 = vmul.f32 %v4074, %v1808
        %v4104 = vmul.f32 %v4076, %v1808
        %v4105 = vmul.f32 %v4078, %v1808
        %v4106 = vmul.f32 %v4080, %v1808
        %v4107 = vmul.f32 %v4082, %v1808
        %v4108 = vmul.f32 %v4084, %v1808
        %v4109 = vmul.f32 %v4086, %v1808
        %v4110 = vmul.f32 %v4088, %v1808
        %v4111 = vmul.f32 %v4090, %v1808
        %v4112 = vmul.f32 %v4092, %v1808
        %v4113 = vmul.f32 %v4094, %v1808
        %v4114 = vmul.f32 %v4096, %v1808
        %v4115 = vmul.f32 %v4098, %v1808
        %v4116 = vmul.f32 %v4100, %v1808
        %v4117 = vmul.f32 %v4003, %v4003
        %v4118 = vmul.f32 %v4006, %v4006
        %v4119 = vmul.f32 %v4011, %v4011
        %v4120 = vmul.f32 %v4014, %v4014
        %v4121 = vmul.f32 %v4019, %v4019
        %v4122 = vmul.f32 %v4022, %v4022
        %v4123 = vmul.f32 %v4027, %v4027
        %v4124 = vmul.f32 %v4030, %v4030
        %v4125 = vmul.f32 %v4035, %v4035
        %v4126 = vmul.f32 %v4038, %v4038
        %v4127 = vmul.f32 %v4043, %v4043
        %v4128 = vmul.f32 %v4046, %v4046
        %v4129 = vmul.f32 %v4051, %v4051
        %v4130 = vmul.f32 %v4054, %v4054
        %v4131 = vmul.f32 %v4059, %v4059
        %v4132 = vmul.f32 %v4062, %v4062
        %4133 = vadd.xlane.f32.xlu0 %v4117
        %v4134 = vpop.xlane.xlu0 %4133
        %4135 = vadd.xlane.f32.xlu0 %v4118
        %v4136 = vpop.xlane.xlu0 %4135
        %4137 = vadd.xlane.f32.xlu0 %v4119
        %v4138 = vpop.xlane.xlu0 %4137
        %4139 = vadd.xlane.f32.xlu0 %v4120
        %v4140 = vpop.xlane.xlu0 %4139
        %4141 = vadd.xlane.f32.xlu0 %v4121
        %v4142 = vpop.xlane.xlu0 %4141
        %4143 = vadd.xlane.f32.xlu0 %v4122
        %v4144 = vpop.xlane.xlu0 %4143
        %4145 = vadd.xlane.f32.xlu0 %v4123
        %v4146 = vpop.xlane.xlu0 %4145
        %4147 = vadd.xlane.f32.xlu0 %v4124
        %v4148 = vpop.xlane.xlu0 %4147
        %4149 = vadd.xlane.f32.xlu0 %v4125
        %v4150 = vpop.xlane.xlu0 %4149
        %4151 = vadd.xlane.f32.xlu0 %v4126
        %v4152 = vpop.xlane.xlu0 %4151
        %4153 = vadd.xlane.f32.xlu0 %v4127
        %v4154 = vpop.xlane.xlu0 %4153
        %4155 = vadd.xlane.f32.xlu0 %v4128
        %v4156 = vpop.xlane.xlu0 %4155
        %4157 = vadd.xlane.f32.xlu0 %v4129
        %v4158 = vpop.xlane.xlu0 %4157
        %4159 = vadd.xlane.f32.xlu0 %v4130
        %v4160 = vpop.xlane.xlu0 %4159
        %4161 = vadd.xlane.f32.xlu0 %v4131
        %v4162 = vpop.xlane.xlu0 %4161
        %4163 = vadd.xlane.f32.xlu0 %v4132
        %v4164 = vpop.xlane.xlu0 %4163
        %v4165 = vmul.f32 %v4134, %v1808
        %v4166 = vmul.f32 %v4136, %v1808
        %v4167 = vmul.f32 %v4138, %v1808
        %v4168 = vmul.f32 %v4140, %v1808
        %v4169 = vmul.f32 %v4142, %v1808
        %v4170 = vmul.f32 %v4144, %v1808
        %v4171 = vmul.f32 %v4146, %v1808
        %v4172 = vmul.f32 %v4148, %v1808
        %v4173 = vmul.f32 %v4150, %v1808
        %v4174 = vmul.f32 %v4152, %v1808
        %v4175 = vmul.f32 %v4154, %v1808
        %v4176 = vmul.f32 %v4156, %v1808
        %v4177 = vmul.f32 %v4158, %v1808
        %v4178 = vmul.f32 %v4160, %v1808
        %v4179 = vmul.f32 %v4162, %v1808
        %v4180 = vmul.f32 %v4164, %v1808
        %v4181 = vmul.f32 %v4101, %v4101
        %v4182 = vmul.f32 %v4102, %v4102
        %v4183 = vmul.f32 %v4103, %v4103
        %v4184 = vmul.f32 %v4104, %v4104
        %v4185 = vmul.f32 %v4105, %v4105
        %v4186 = vmul.f32 %v4106, %v4106
        %v4187 = vmul.f32 %v4107, %v4107
        %v4188 = vmul.f32 %v4108, %v4108
        %v4189 = vmul.f32 %v4109, %v4109
        %v4190 = vmul.f32 %v4110, %v4110
        %v4191 = vmul.f32 %v4111, %v4111
        %v4192 = vmul.f32 %v4112, %v4112
        %v4193 = vmul.f32 %v4113, %v4113
        %v4194 = vmul.f32 %v4114, %v4114
        %v4195 = vmul.f32 %v4115, %v4115
        %v4196 = vmul.f32 %v4116, %v4116
        %v4197 = vsub.f32 %v4165, %v4181
        %v4198 = vsub.f32 %v4166, %v4182
        %v4199 = vsub.f32 %v4167, %v4183
        %v4200 = vsub.f32 %v4168, %v4184
        %v4201 = vsub.f32 %v4169, %v4185
        %v4202 = vsub.f32 %v4170, %v4186
        %v4203 = vsub.f32 %v4171, %v4187
        %v4204 = vsub.f32 %v4172, %v4188
        %v4205 = vsub.f32 %v4173, %v4189
        %v4206 = vsub.f32 %v4174, %v4190
        %v4207 = vsub.f32 %v4175, %v4191
        %v4208 = vsub.f32 %v4176, %v4192
        %v4209 = vsub.f32 %v4177, %v4193
        %v4210 = vsub.f32 %v4178, %v4194
        %v4211 = vsub.f32 %v4179, %v4195
        %v4212 = vsub.f32 %v4180, %v4196
        %v4213 = vsub.f32 %v4003, %v4101
        %v4214 = vsub.f32 %v4006, %v4102
        %v4215 = vsub.f32 %v4011, %v4103
        %v4216 = vsub.f32 %v4014, %v4104
        %v4217 = vsub.f32 %v4019, %v4105
        %v4218 = vsub.f32 %v4022, %v4106
        %v4219 = vsub.f32 %v4027, %v4107
        %v4220 = vsub.f32 %v4030, %v4108
        %v4221 = vsub.f32 %v4035, %v4109
        %v4222 = vsub.f32 %v4038, %v4110
        %v4223 = vsub.f32 %v4043, %v4111
        %v4224 = vsub.f32 %v4046, %v4112
        %v4225 = vsub.f32 %v4051, %v4113
        %v4226 = vsub.f32 %v4054, %v4114
        %v4227 = vsub.f32 %v4059, %v4115
        %v4228 = vsub.f32 %v4062, %v4116
        %v4229 = vadd.f32 %v4197, 1e-05
        %v4230 = vadd.f32 %v4198, 1e-05
        %v4231 = vadd.f32 %v4199, 1e-05
        %v4232 = vadd.f32 %v4200, 1e-05
        %v4233 = vadd.f32 %v4201, 1e-05
        %v4234 = vadd.f32 %v4202, 1e-05
        %v4235 = vadd.f32 %v4203, 1e-05
        %v4236 = vadd.f32 %v4204, 1e-05
        %v4237 = vadd.f32 %v4205, 1e-05
        %v4238 = vadd.f32 %v4206, 1e-05
        %v4239 = vadd.f32 %v4207, 1e-05
        %v4240 = vadd.f32 %v4208, 1e-05
        %v4241 = vadd.f32 %v4209, 1e-05
        %v4242 = vadd.f32 %v4210, 1e-05
        %v4243 = vadd.f32 %v4211, 1e-05
        %v4244 = vadd.f32 %v4212, 1e-05
        %v4245 = vrsqrt.pop %v4229
        %v4246 = vrsqrt.pop %v4230
        %v4247 = vrsqrt.pop %v4231
        %v4248 = vrsqrt.pop %v4232
        %v4249 = vrsqrt.pop %v4233
        %v4250 = vrsqrt.pop %v4234
        %v4251 = vrsqrt.pop %v4235
        %v4252 = vrsqrt.pop %v4236
        %v4253 = vrsqrt.pop %v4237
        %v4254 = vrsqrt.pop %v4238
        %v4255 = vrsqrt.pop %v4239
        %v4256 = vrsqrt.pop %v4240
        %v4257 = vrsqrt.pop %v4241
        %v4258 = vrsqrt.pop %v4242
        %v4259 = vrsqrt.pop %v4243
        %v4260 = vrsqrt.pop %v4244
        %v4261 = vmul.f32 %v4213, %v4245
        %v4262 = vmul.f32 %v4214, %v4246
        %v4263 = vmul.f32 %v4215, %v4247
        %v4264 = vmul.f32 %v4216, %v4248
        %v4265 = vmul.f32 %v4217, %v4249
        %v4266 = vmul.f32 %v4218, %v4250
        %v4267 = vmul.f32 %v4219, %v4251
        %v4268 = vmul.f32 %v4220, %v4252
        %v4269 = vmul.f32 %v4221, %v4253
        %v4270 = vmul.f32 %v4222, %v4254
        %v4271 = vmul.f32 %v4223, %v4255
        %v4272 = vmul.f32 %v4224, %v4256
        %v4273 = vmul.f32 %v4225, %v4257
        %v4274 = vmul.f32 %v4226, %v4258
        %v4275 = vmul.f32 %v4227, %v4259
        %v4276 = vmul.f32 %v4228, %v4260
        %v4278 = vlaneseq
        %v4279 = vshrl.u32 %v4278, 7
        %v4280 = vsub.s32 0, %v4279
        %v4281 = vrot.slane %v4066, %v4280
        %v4283 = vmul.f32 %v4261, %v4281
        %v4284 = vmul.f32 %v4262, %v4281
        %v4285 = vmul.f32 %v4263, %v4281
        %v4286 = vmul.f32 %v4264, %v4281
        %v4287 = vmul.f32 %v4265, %v4281
        %v4288 = vmul.f32 %v4266, %v4281
        %v4289 = vmul.f32 %v4267, %v4281
        %v4290 = vmul.f32 %v4268, %v4281
        %v4291 = vmul.f32 %v4269, %v4281
        %v4292 = vmul.f32 %v4270, %v4281
        %v4293 = vmul.f32 %v4271, %v4281
        %v4294 = vmul.f32 %v4272, %v4281
        %v4295 = vmul.f32 %v4273, %v4281
        %v4296 = vmul.f32 %v4274, %v4281
        %v4297 = vmul.f32 %v4275, %v4281
        %v4298 = vmul.f32 %v4276, %v4281
        %v4300 = vlaneseq
        %v4301 = vshrl.u32 %v4300, 7
        %v4302 = vsub.s32 0, %v4301
        %v4303 = vrot.slane %v4068, %v4302
        %v4305 = vadd.f32 %v4283, %v4303
        %v4306 = vadd.f32 %v4284, %v4303
        %v4307 = vadd.f32 %v4285, %v4303
        %v4308 = vadd.f32 %v4286, %v4303
        %v4309 = vadd.f32 %v4287, %v4303
        %v4310 = vadd.f32 %v4288, %v4303
        %v4311 = vadd.f32 %v4289, %v4303
        %v4312 = vadd.f32 %v4290, %v4303
        %v4313 = vadd.f32 %v4291, %v4303
        %v4314 = vadd.f32 %v4292, %v4303
        %v4315 = vadd.f32 %v4293, %v4303
        %v4316 = vadd.f32 %v4294, %v4303
        %v4317 = vadd.f32 %v4295, %v4303
        %v4318 = vadd.f32 %v4296, %v4303
        %v4319 = vadd.f32 %v4297, %v4303
        %v4320 = vadd.f32 %v4298, %v4303
        %v4321 = vxor.u32 %v4305, 2147483648
        %v4322 = vxor.u32 %v4306, 2147483648
        %v4323 = vxor.u32 %v4307, 2147483648
        %v4324 = vxor.u32 %v4308, 2147483648
        %v4325 = vxor.u32 %v4309, 2147483648
        %v4326 = vxor.u32 %v4310, 2147483648
        %v4327 = vxor.u32 %v4311, 2147483648
        %v4328 = vxor.u32 %v4312, 2147483648
        %v4329 = vxor.u32 %v4313, 2147483648
        %v4330 = vxor.u32 %v4314, 2147483648
        %v4331 = vxor.u32 %v4315, 2147483648
        %v4332 = vxor.u32 %v4316, 2147483648
        %v4333 = vxor.u32 %v4317, 2147483648
        %v4334 = vxor.u32 %v4318, 2147483648
        %v4335 = vxor.u32 %v4319, 2147483648
        %v4336 = vxor.u32 %v4320, 2147483648
        %v4337 = vmul.f32 %v4321, 1.442695
        %v4338 = vpow.pop %v4337
        %v4339 = vmul.f32 %v4322, 1.442695
        %v4340 = vpow.pop %v4339
        %v4341 = vmul.f32 %v4323, 1.442695
        %v4342 = vpow.pop %v4341
        %v4343 = vmul.f32 %v4324, 1.442695
        %v4344 = vpow.pop %v4343
        %v4345 = vmul.f32 %v4325, 1.442695
        %v4346 = vpow.pop %v4345
        %v4347 = vmul.f32 %v4326, 1.442695
        %v4348 = vpow.pop %v4347
        %v4349 = vmul.f32 %v4327, 1.442695
        %v4350 = vpow.pop %v4349
        %v4351 = vmul.f32 %v4328, 1.442695
        %v4352 = vpow.pop %v4351
        %v4353 = vmul.f32 %v4329, 1.442695
        %v4354 = vpow.pop %v4353
        %v4355 = vmul.f32 %v4330, 1.442695
        %v4356 = vpow.pop %v4355
        %v4357 = vmul.f32 %v4331, 1.442695
        %v4358 = vpow.pop %v4357
        %v4359 = vmul.f32 %v4332, 1.442695
        %v4360 = vpow.pop %v4359
        %v4361 = vmul.f32 %v4333, 1.442695
        %v4362 = vpow.pop %v4361
        %v4363 = vmul.f32 %v4334, 1.442695
        %v4364 = vpow.pop %v4363
        %v4365 = vmul.f32 %v4335, 1.442695
        %v4366 = vpow.pop %v4365
        %v4367 = vmul.f32 %v4336, 1.442695
        %v4368 = vpow.pop %v4367
        %v4369 = vadd.f32 %v4338, 1.0
        %v4370 = vadd.f32 %v4340, 1.0
        %v4371 = vadd.f32 %v4342, 1.0
        %v4372 = vadd.f32 %v4344, 1.0
        %v4373 = vadd.f32 %v4346, 1.0
        %v4374 = vadd.f32 %v4348, 1.0
        %v4375 = vadd.f32 %v4350, 1.0
        %v4376 = vadd.f32 %v4352, 1.0
        %v4377 = vadd.f32 %v4354, 1.0
        %v4378 = vadd.f32 %v4356, 1.0
        %v4379 = vadd.f32 %v4358, 1.0
        %v4380 = vadd.f32 %v4360, 1.0
        %v4381 = vadd.f32 %v4362, 1.0
        %v4382 = vadd.f32 %v4364, 1.0
        %v4383 = vadd.f32 %v4366, 1.0
        %v4384 = vadd.f32 %v4368, 1.0
        %v4385 = vrcp.pop %v4369
        %v4386 = vmul.f32 1.0, %v4385
        %v4387 = vrcp.pop %v4370
        %v4388 = vmul.f32 1.0, %v4387
        %v4389 = vrcp.pop %v4371
        %v4390 = vmul.f32 1.0, %v4389
        %v4391 = vrcp.pop %v4372
        %v4392 = vmul.f32 1.0, %v4391
        %v4393 = vrcp.pop %v4373
        %v4394 = vmul.f32 1.0, %v4393
        %v4395 = vrcp.pop %v4374
        %v4396 = vmul.f32 1.0, %v4395
        %v4397 = vrcp.pop %v4375
        %v4398 = vmul.f32 1.0, %v4397
        %v4399 = vrcp.pop %v4376
        %v4400 = vmul.f32 1.0, %v4399
        %v4401 = vrcp.pop %v4377
        %v4402 = vmul.f32 1.0, %v4401
        %v4403 = vrcp.pop %v4378
        %v4404 = vmul.f32 1.0, %v4403
        %v4405 = vrcp.pop %v4379
        %v4406 = vmul.f32 1.0, %v4405
        %v4407 = vrcp.pop %v4380
        %v4408 = vmul.f32 1.0, %v4407
        %v4409 = vrcp.pop %v4381
        %v4410 = vmul.f32 1.0, %v4409
        %v4411 = vrcp.pop %v4382
        %v4412 = vmul.f32 1.0, %v4411
        %v4413 = vrcp.pop %v4383
        %v4414 = vmul.f32 1.0, %v4413
        %v4415 = vrcp.pop %v4384
        %v4416 = vmul.f32 1.0, %v4415
        %v4417 = vmul.f32 %v4305, %v4386
        %v4418 = vmul.f32 %v4306, %v4388
        %v4419 = vmul.f32 %v4307, %v4390
        %v4420 = vmul.f32 %v4308, %v4392
        %v4421 = vmul.f32 %v4309, %v4394
        %v4422 = vmul.f32 %v4310, %v4396
        %v4423 = vmul.f32 %v4311, %v4398
        %v4424 = vmul.f32 %v4312, %v4400
        %v4425 = vmul.f32 %v4313, %v4402
        %v4426 = vmul.f32 %v4314, %v4404
        %v4427 = vmul.f32 %v4315, %v4406
        %v4428 = vmul.f32 %v4316, %v4408
        %v4429 = vmul.f32 %v4317, %v4410
        %v4430 = vmul.f32 %v4318, %v4412
        %v4431 = vmul.f32 %v4319, %v4414
        %v4432 = vmul.f32 %v4320, %v4416
        %v4433 = vadd.f32 %v3871, %v4417
        %v4434 = vadd.f32 %v3872, %v4418
        %v4435 = vadd.f32 %v3873, %v4419
        %v4436 = vadd.f32 %v3874, %v4420
        %v4437 = vadd.f32 %v3875, %v4421
        %v4438 = vadd.f32 %v3876, %v4422
        %v4439 = vadd.f32 %v3877, %v4423
        %v4440 = vadd.f32 %v3878, %v4424
        %v4441 = vadd.f32 %v3879, %v4425
        %v4442 = vadd.f32 %v3880, %v4426
        %v4443 = vadd.f32 %v3881, %v4427
        %v4444 = vadd.f32 %v3882, %v4428
        %v4445 = vadd.f32 %v3883, %v4429
        %v4446 = vadd.f32 %v3884, %v4430
        %v4447 = vadd.f32 %v3885, %v4431
        %v4448 = vadd.f32 %v3886, %v4432
        %v4449 = vld [vmem:[%s17] sm:$0xf]
        %v4450 = vld [vmem:[%s17 + $0x4] sm:$0xf]
        %v4451 = vld [vmem:[%s17 + $0x8] sm:$0xf]
        %v4452 = vld [vmem:[%s17 + $0xc] sm:$0xf]
        %v4453 = vld [vmem:[%s17 + $0x10] sm:$0xf]
        %v4454 = vld [vmem:[%s17 + $0x14] sm:$0xf]
        %v4455 = vld [vmem:[%s17 + $0x18] sm:$0xf]
        %v4456 = vld [vmem:[%s17 + $0x1c] sm:$0xf]
        %v4457 = vld [vmem:[%s17 + $0x20] sm:$0xf]
        %v4458 = vld [vmem:[%s17 + $0x24] sm:$0xf]
        %v4459 = vld [vmem:[%s17 + $0x28] sm:$0xf]
        %v4460 = vld [vmem:[%s17 + $0x2c] sm:$0xf]
        %v4461 = vld [vmem:[%s17 + $0x30] sm:$0xf]
        %v4462 = vld [vmem:[%s17 + $0x34] sm:$0xf]
        %v4463 = vld [vmem:[%s17 + $0x38] sm:$0xf]
        %v4464 = vld [vmem:[%s17 + $0x3c] sm:$0xf]
        %v4465 = vld [vmem:[%s18] sm:$0x1]
        %v4466 = vpack.c.bf16 %v4434, %v4433
        %v4467 = vpack.c.bf16 %v4436, %v4435
        %v4468 = vpack.c.bf16 %v4438, %v4437
        %v4469 = vpack.c.bf16 %v4440, %v4439
        %v4470 = vpack.c.bf16 %v4442, %v4441
        %v4471 = vpack.c.bf16 %v4444, %v4443
        %v4472 = vpack.c.bf16 %v4446, %v4445
        %v4473 = vpack.c.bf16 %v4448, %v4447
        %v4475 = vlaneseq
        %v4476 = vshrl.u32 %v4475, 7
        %v4477 = vsub.s32 0, %v4476
        %v4478 = vrot.slane %v4465, %v4477
        %v4496 = vunpack.c.l.b16 %v4449
        %v4497 = vunpack.c.l.b16 %v4450
        %v4498 = vunpack.c.l.b16 %v4451
        %v4499 = vunpack.c.l.b16 %v4452
        %v4500 = vunpack.c.l.b16 %v4453
        %v4501 = vunpack.c.l.b16 %v4454
        %v4502 = vunpack.c.l.b16 %v4455
        %v4503 = vunpack.c.l.b16 %v4456
        %v4504 = vunpack.c.l.b16 %v4457
        %v4505 = vunpack.c.l.b16 %v4458
        %v4506 = vunpack.c.l.b16 %v4459
        %v4507 = vunpack.c.l.b16 %v4460
        %v4508 = vunpack.c.l.b16 %v4461
        %v4509 = vunpack.c.l.b16 %v4462
        %v4510 = vunpack.c.l.b16 %v4463
        %v4511 = vunpack.c.l.b16 %v4464
        %v4512 = vpack.c.b16 %v4497, %v4496
        %v4513 = vpack.c.b16 %v4499, %v4498
        %v4514 = vpack.c.b16 %v4501, %v4500
        %v4515 = vpack.c.b16 %v4503, %v4502
        %v4516 = vpack.c.b16 %v4505, %v4504
        %v4517 = vpack.c.b16 %v4507, %v4506
        %v4518 = vpack.c.b16 %v4509, %v4508
        %v4519 = vpack.c.b16 %v4511, %v4510
        %4528 = vmatprep.subr.bf16.mxu0 0
        %4529 = vmatpush1.bf16.msra.mxu0 %v4512
        %4530 = vmatprep.subr.bf16.mxu0 0
        %4531 = vmatpush1.bf16.msra.mxu0 %v4513
        %4532 = vmatprep.subr.bf16.mxu0 0
        %4533 = vmatpush1.bf16.msra.mxu0 %v4514
        %4534 = vmatprep.subr.bf16.mxu0 0
        %4535 = vmatpush1.bf16.msra.mxu0 %v4515
        %4536 = vmatprep.subr.bf16.mxu0 0
        %4537 = vmatpush1.bf16.msra.mxu0 %v4516
        %4538 = vmatprep.subr.bf16.mxu0 0
        %4539 = vmatpush1.bf16.msra.mxu0 %v4517
        %4540 = vmatprep.subr.bf16.mxu0 0
        %4541 = vmatpush1.bf16.msra.mxu0 %v4518
        %4542 = vmatprep.subr.bf16.mxu0 0
        %4543 = vmatpush1.bf16.msra.mxu0 %v4519
        %4544 = vmatprep.subr.bf16.mxu0 0
        %4545 = vmatpush1.bf16.msra.mxu0 0
        %4546 = vmatprep.subr.bf16.mxu0 0
        %4547 = vmatpush1.bf16.msra.mxu0 0
        %4548 = vmatprep.subr.bf16.mxu0 0
        %4549 = vmatpush1.bf16.msra.mxu0 0
        %4550 = vmatprep.subr.bf16.mxu0 0
        %4551 = vmatpush1.bf16.msra.mxu0 0
        %4552 = vmatprep.subr.bf16.mxu0 0
        %4553 = vmatpush1.bf16.msra.mxu0 0
        %4554 = vmatprep.subr.bf16.mxu0 0
        %4555 = vmatpush1.bf16.msra.mxu0 0
        %4556 = vmatprep.subr.bf16.mxu0 0
        %4557 = vmatpush1.bf16.msra.mxu0 0
        %4558 = vmatprep.subr.bf16.mxu0 0
        %4559 = vmatpush1.bf16.msra.mxu0 0
        %4560 = vmatprep.mubr.bf16.mxu0 0
        %4561 = vmatmul.mubr.bf16.gmra.mrb[0].mxu0 %v4466
        %v4562 = vpop.f32.mrb[0].mxu0
        %v4563 = vadd.f32 %v4478, %v4562
        %v4564 = vpop.f32.mrb[0].mxu0
        %v4565 = vpop.f32.mrb[0].mxu0
        %v4566 = vadd.f32 %v4478, %v4565
        %v4567 = vpop.f32.mrb[0].mxu0
        %4568 = vmatprep.mubr.bf16.mxu0 0
        %4569 = vmatmul.mubr.bf16.gmra.mrb[0].mxu0 %v4467
        %v4570 = vpop.f32.mrb[0].mxu0
        %v4571 = vadd.f32 %v4478, %v4570
        %v4572 = vpop.f32.mrb[0].mxu0
        %v4573 = vpop.f32.mrb[0].mxu0
        %v4574 = vadd.f32 %v4478, %v4573
        %v4575 = vpop.f32.mrb[0].mxu0
        %4576 = vmatprep.mubr.bf16.mxu0 0
        %4577 = vmatmul.mubr.bf16.gmra.mrb[0].mxu0 %v4468
        %v4578 = vpop.f32.mrb[0].mxu0
        %v4579 = vadd.f32 %v4478, %v4578
        %v4580 = vpop.f32.mrb[0].mxu0
        %v4581 = vpop.f32.mrb[0].mxu0
        %v4582 = vadd.f32 %v4478, %v4581
        %v4583 = vpop.f32.mrb[0].mxu0
        %4584 = vmatprep.mubr.bf16.mxu0 0
        %4585 = vmatmul.mubr.bf16.gmra.mrb[0].mxu0 %v4469
        %v4586 = vpop.f32.mrb[0].mxu0
        %v4587 = vadd.f32 %v4478, %v4586
        %v4588 = vpop.f32.mrb[0].mxu0
        %v4589 = vpop.f32.mrb[0].mxu0
        %v4590 = vadd.f32 %v4478, %v4589
        %v4591 = vpop.f32.mrb[0].mxu0
        %4592 = vmatprep.mubr.bf16.mxu0 0
        %4593 = vmatmul.mubr.bf16.gmra.mrb[0].mxu0 %v4470
        %v4594 = vpop.f32.mrb[0].mxu0
        %v4595 = vadd.f32 %v4478, %v4594
        %v4596 = vpop.f32.mrb[0].mxu0
        %v4597 = vpop.f32.mrb[0].mxu0
        %v4598 = vadd.f32 %v4478, %v4597
        %v4599 = vpop.f32.mrb[0].mxu0
        %4600 = vmatprep.mubr.bf16.mxu0 0
        %4601 = vmatmul.mubr.bf16.gmra.mrb[0].mxu0 %v4471
        %v4602 = vpop.f32.mrb[0].mxu0
        %v4603 = vadd.f32 %v4478, %v4602
        %v4604 = vpop.f32.mrb[0].mxu0
        %v4605 = vpop.f32.mrb[0].mxu0
        %v4606 = vadd.f32 %v4478, %v4605
        %v4607 = vpop.f32.mrb[0].mxu0
        %4608 = vmatprep.mubr.bf16.mxu0 0
        %4609 = vmatmul.mubr.bf16.gmra.mrb[0].mxu0 %v4472
        %v4610 = vpop.f32.mrb[0].mxu0
        %v4611 = vadd.f32 %v4478, %v4610
        %v4612 = vpop.f32.mrb[0].mxu0
        %v4613 = vpop.f32.mrb[0].mxu0
        %v4614 = vadd.f32 %v4478, %v4613
        %v4615 = vpop.f32.mrb[0].mxu0
        %4616 = vmatprep.mubr.bf16.mxu0 0
        %4617 = vmatmul.mubr.bf16.gmra.mrb[0].mxu0 %v4473
        %v4618 = vpop.f32.mrb[0].mxu0
        %v4619 = vadd.f32 %v4478, %v4618
        %v4620 = vpop.f32.mrb[0].mxu0
        %v4621 = vpop.f32.mrb[0].mxu0
        %v4622 = vadd.f32 %v4478, %v4621
        %v4623 = vpop.f32.mrb[0].mxu0
        %4624 = vdwg.mxu0
        %4625 = vst [vmem:[%s888] sm:$0xff] %v4563
        %4626 = vst [vmem:[%s888 + $0x8] sm:$0xff] %v4566
        %4627 = vst [vmem:[%s888 + $0x10] sm:$0xff] %v4571
        %4628 = vst [vmem:[%s888 + $0x18] sm:$0xff] %v4574
        %4629 = vst [vmem:[%s888 + $0x20] sm:$0xff] %v4579
        %4630 = vst [vmem:[%s888 + $0x28] sm:$0xff] %v4582
        %4631 = vst [vmem:[%s888 + $0x30] sm:$0xff] %v4587
        %4632 = vst [vmem:[%s888 + $0x38] sm:$0xff] %v4590
        %4633 = vst [vmem:[%s888 + $0x40] sm:$0xff] %v4595
        %4634 = vst [vmem:[%s888 + $0x48] sm:$0xff] %v4598
        %4635 = vst [vmem:[%s888 + $0x50] sm:$0xff] %v4603
        %4636 = vst [vmem:[%s888 + $0x58] sm:$0xff] %v4606
        %4637 = vst [vmem:[%s888 + $0x60] sm:$0xff] %v4611
        %4638 = vst [vmem:[%s888 + $0x68] sm:$0xff] %v4614
        %4639 = vst [vmem:[%s888 + $0x70] sm:$0xff] %v4619
        %4640 = vst [vmem:[%s888 + $0x78] sm:$0xff] %v4622
        %s4641 = sand.u32 %s468, 1
        %s4642 = scalar_lea.sflag [#allocation4], %s4641
        %s4643 = sand.u32 %s468, 1
        %s4644 = smul.addr %s4643, 128
        %s4645 = scalar_lea.vmem [#allocation29], %s4644
        // Predicated region
        $region165: #{tpu_custom_call.1} parent=95 // pred_check
          %p4646 = pneg %p478
        $region166: #{tpu_custom_call.1} parent=95 // pred_check_branch
          %4648 = sbr.rel (%p4646) target = $region168
        $region167: #{tpu_custom_call.1} parent=95 // pred_region
          %s4649 = smul.u32 16, %s46
          %s4651 = ssub.s32 2048, 2048
          %4652 = vsyncadd %s4642, %s4651
          %s4653 = smul.addr %s4649, 128
          %s4654 = scalar_lea.hbm %s19, %s4653
          %s4655 = sshll.u32 %s4645, 4
          %s4656 = int_to_ptr.vmem [resolvable:$true] %s4655
          %4661 = dma.vmem_to_hbm [thread:$0]  %s4656, 2048, %s4654, %s4642, 128, 128, 8
        $region168: #{tpu_custom_call.1} parent=95 // pred_fallthru
          _
      $region96: #{tpu_custom_call.1} parent=5 // pred_fallthru
        _
      %p4662 = scmp.le.s32.totalorder 2, %s41
      // Predicated region
      $region169: #{tpu_custom_call.1} parent=5 // pred_check
        %p4663 = pneg %p4662
      $region170: #{tpu_custom_call.1} parent=5 // pred_check_branch
        %4665 = sbr.rel (%p4663) target = $region172
      $region171: #{tpu_custom_call.1} parent=5 // pred_region
        %s4666 = ssub.s32 %s41, 2
        // Predicated region
        $region173: #{tpu_custom_call.1} parent=171 // pred_check
          %p4667 = pneg %p484
        $region174: #{tpu_custom_call.1} parent=171 // pred_check_branch
          %4669 = sbr.rel (%p4667) target = $region176
        $region175: #{tpu_custom_call.1} parent=171 // pred_region
          %s4670 = sand.u32 %s469, 1
          %s4671 = scalar_lea.sflag [#allocation4], %s4670
          %s4672 = sand.u32 %s469, 1
          %s4673 = smul.addr %s4672, 128
          %s4674 = scalar_lea.vmem [#allocation29], %s4673
          %4675 = dma.done %s4671, 2048
        $region176: #{tpu_custom_call.1} parent=171 // pred_fallthru
          _
      $region172: #{tpu_custom_call.1} parent=5 // pred_fallthru
        _
    $region6: #{tpu_custom_call.1} parent=1 // loop_footer
      %s45 = sadd.s32 1, %s41
    $region7: #{tpu_custom_call.1} parent=1 // loop_footer_branch
      %40 = sbr.rel target = $region3
    $region8: #{tpu_custom_call.1} parent=1 // loop_exit
      _
    %4676 = vsyncpa [#allocation3], 1
    %s4677 = scalar_lea.sflag [#allocation3], 1
    %4678 = vsyncpa %s4677, 1
    %4679 = vsyncpa [#allocation6], 1
    %s4680 = scalar_lea.sflag [#allocation6], 1
    %4681 = vsyncpa %s4680, 1
    %4682 = vsyncpa [#allocation9], 1
    %4683 = vsyncpa [#allocation12], 1
    %4684 = vsyncpa [#allocation15], 1
    %4685 = vsyncpa [#allocation18], 1
    %4686 = vsyncpa [#allocation21], 1
    %4687 = vsyncpa [#allocation24], 1
    %4688 = vsyncpa [#allocation27], 1
    %4689 = vsyncpa [#allocation4], 1
    %s4690 = scalar_lea.sflag [#allocation4], 1
    %4691 = vsyncpa %s4690, 1

</llo_original>
